<compile_context>
chip_gen: v7x
topology: tpu7x:2x2x1
jax: 0.10.0
libtpu: 0.0.40
codegen_flags: <defaults>
</compile_context>

<pallas_src>
import jax
import jax.numpy as jnp
from jax.experimental import pallas as pl
from jax.experimental.pallas import tpu as pltpu

BN_EPS = 1e-5   # BatchNorm2d eval-mode semantics (running stats)
LANE = 128
SUBLANE_BF16 = 16


# ----------------------------- Pallas kernel -------------------------------
def _fused_heads_kernel(p_ref, pool_ref, wq_ref, qs_ref, shift_ref,
                        wf_ref, bf_ref, o_ref):
    # One grid step == one classification head.
    # p_ref:     (M, K)        bf16 im2col patches, M = N * Ho*Wo (batch folded into M)
    # pool_ref:  (N, M)        bf16 per-sample mean matrix (1/P inside each sample's rows)
    # wq_ref:    (1, K, 512)   int8 conv weight (BN scale pre-folded, per-column quantized)
    # qs_ref:    (1, 1, 512)   f32  per-channel dequant scale (includes BN gamma/sqrt(var))
    # shift_ref: (1, 1, 512)   f32  fused conv-bias + BN shift
    # wf_ref:    (1, 512, Cp)  bf16 fused Linear weight  w1 @ w2   (lane padded)
    # bf_ref:    (1, 1, Cp)    f32  fused Linear bias    b1 @ w2 + b2
    wc = wq_ref[0].astype(jnp.bfloat16)                                # int8 -> bf16 dequant (unscaled)
    conv = jnp.dot(p_ref[...], wc,
                   preferred_element_type=jnp.float32)                 # Conv2d as GEMM -> (M, 512)
    y = conv * qs_ref[0] + shift_ref[0]                                # dequant scale + BN (eval) affine
    y = y * jax.nn.sigmoid(y)                                          # SiLU
    pooled = jnp.dot(pool_ref[...], y.astype(jnp.bfloat16),
                     preferred_element_type=jnp.float32)               # AdaptiveAvgPool2d -> (N, 512)
    logits = jnp.dot(pooled.astype(jnp.bfloat16), wf_ref[0],
                     preferred_element_type=jnp.float32) + bf_ref[0]   # fused Linear(512,512)+Linear(512,C)
    o_ref[0] = logits.astype(o_ref.dtype)


def run_heads(patches, pool_mat, wq, qscale, shift, wf, bf):
    M, K = patches.shape
    N = pool_mat.shape[0]
    n_heads, _, mid = wq.shape
    c_pad = wf.shape[2]

    # Advisory cost estimate so XLA can overlap the exposed head-0 weight DMA.
    flops = n_heads * (2 * M * K * mid + 2 * N * M * mid + 2 * N * mid * c_pad)
    transcendentals = n_heads * M * mid                      # sigmoid (EUP exp)
    bytes_accessed = (M * K * 2 + N * M * 2 +
                      n_heads * (K * mid * 1 + 2 * mid * 4 +
                                 mid * c_pad * 2 + c_pad * 4 + N * c_pad * 4))

    return pl.pallas_call(
        _fused_heads_kernel,
        out_shape=jax.ShapeDtypeStruct((n_heads, N, c_pad), jnp.float32),
        grid_spec=pltpu.PrefetchScalarGridSpec(
            num_scalar_prefetch=0,
            grid=(n_heads,),
            in_specs=[
                pl.BlockSpec((M, K), lambda h: (0, 0)),             # patches (constant -> one DMA)
                pl.BlockSpec((N, M), lambda h: (0, 0)),             # pooling matrix (constant)
                pl.BlockSpec((1, K, mid), lambda h: (h, 0, 0)),     # int8 conv weight, per head
                pl.BlockSpec((1, 1, mid), lambda h: (h, 0, 0)),     # dequant/BN scale
                pl.BlockSpec((1, 1, mid), lambda h: (h, 0, 0)),     # BN shift
                pl.BlockSpec((1, mid, c_pad), lambda h: (h, 0, 0)), # fused linear weight
                pl.BlockSpec((1, 1, c_pad), lambda h: (h, 0, 0)),   # fused linear bias
            ],
            out_specs=pl.BlockSpec((1, N, c_pad), lambda h: (h, 0, 0)),
        ),
        compiler_params=pltpu.CompilerParams(
            dimension_semantics=("parallel",),        # megacore split over heads (even count in demo)
            vmem_limit_bytes=32 * 1024 * 1024),
        cost_estimate=pl.CostEstimate(flops=flops,
                                      transcendentals=transcendentals,
                                      bytes_accessed=bytes_accessed),
    )(patches, pool_mat, wq, qscale, shift, wf, bf)


# ------------------------- one-time weight preparation ----------------------
def prepare_heads(head_params, class_num_lst):
    """Fold BN into the conv weight, quantize it to int8 (per-output-channel),
    fuse the two back-to-back Linears, pad class_num to a lane-dense multiple
    of 128, and stack heads.  Done once, outside the per-call forward path."""
    c_pad = ((max(class_num_lst) + LANE - 1) // LANE) * LANE
    wq_l, qs_l, sh_l, wf_l, bf_l = [], [], [], [], []
    for hp, c in zip(head_params, class_num_lst):
        mid = hp["wconv_oihw"].shape[0]
        bnscale = hp["gamma"] / jnp.sqrt(hp["var"] + BN_EPS)
        shift = (hp["bconv"] - hp["mean"]) * bnscale + hp["beta"]
        # OIHW (512, Cin, 3, 3) -> (dy, dx, Cin, 512) -> (9*Cin, 512); matches im2col order.
        wc = jnp.transpose(hp["wconv_oihw"], (2, 3, 1, 0)).reshape(-1, mid)
        wc = wc * bnscale[None, :]                              # fold BN scale into the weight
        q = jnp.maximum(jnp.max(jnp.abs(wc), axis=0) / 127.0, 1e-12)
        wq = jnp.clip(jnp.round(wc / q[None, :]), -127, 127).astype(jnp.int8)
        # Fuse Linear(512,512) -> Linear(512,C): no activation between them in the module.
        wf = hp["w1"] @ hp["w2"]                                # (512, C)
        bf = hp["b1"] @ hp["w2"] + hp["b2"]                     # (C,)
        wf_p = jnp.zeros((mid, c_pad), jnp.float32).at[:, :c].set(wf)
        bf_p = jnp.zeros((c_pad,), jnp.float32).at[:c].set(bf)
        wq_l.append(wq); qs_l.append(q); sh_l.append(shift)
        wf_l.append(wf_p); bf_l.append(bf_p)
    stack = lambda xs: jnp.stack(xs, axis=0)
    return {
        "wq":     stack(wq_l),                                   # (H, 9*Cin, 512) int8
        "qscale": stack(qs_l)[:, None, :].astype(jnp.float32),   # (H, 1, 512)
        "shift":  stack(sh_l)[:, None, :].astype(jnp.float32),   # (H, 1, 512)
        "wf":     stack(wf_l).astype(jnp.bfloat16),              # (H, 512, c_pad)
        "bf":     stack(bf_l)[:, None, :].astype(jnp.float32),   # (H, 1, c_pad)
        "class_num_lst": tuple(int(c) for c in class_num_lst),
    }


# ------------------------------- JAX glue -----------------------------------
def _im2col_nhwc(x_nhwc, kh=3, kw=3):
    N, H, W, Cin = x_nhwc.shape
    Ho, Wo = H - kh + 1, W - kw + 1
    cols = [x_nhwc[:, dy:dy + Ho, dx:dx + Wo, :]
            for dy in range(kh) for dx in range(kw)]
    p = jnp.stack(cols, axis=3)                       # (N, Ho, Wo, 9, Cin)
    return p.reshape(N, Ho * Wo, kh * kw * Cin)


def build_patches(x_nchw):
    """im2col of the backbone feature map; batch folded into M, M padded to a
    multiple of 16 for bf16 sublane packing (pad rows are ignored by pool_mat)."""
    x_nhwc = jnp.transpose(x_nchw, (0, 2, 3, 1)).astype(jnp.float32)
    patches = _im2col_nhwc(x_nhwc)                    # (N, P, 9*Cin)
    N, P, K = patches.shape
    M = N * P
    M_pad = ((M + SUBLANE_BF16 - 1) // SUBLANE_BF16) * SUBLANE_BF16
    flat = jnp.pad(patches.reshape(M, K), ((0, M_pad - M), (0, 0)))
    return flat.astype(jnp.bfloat16), N, P, M_pad


def make_pool_mat(n, p, m_pad):
    """Segment-mean matrix: row i averages sample i's P spatial rows (1/P folded in).
    Precomputed once (hoisted out of the per-call forward path)."""
    pm = jnp.repeat(jnp.eye(n, dtype=jnp.float32), p, axis=1) / p    # (N, N*P)
    pm = jnp.pad(pm, ((0, 0), (0, m_pad - n * p)))                   # ignore M padding rows
    return pm.astype(jnp.bfloat16)


def custom_model_forward(x_nchw, prepped, pool_mat=None):
    """Mirrors CustomModel.forward on the backbone feature map: returns a list,
    one logits array of shape (N, class_num) per entry of class_num_lst."""
    patches, N, P, M_pad = build_patches(x_nchw)
    if pool_mat is None:
        pool_mat = make_pool_mat(N, P, M_pad)
    out = run_heads(patches, pool_mat,
                    prepped["wq"], prepped["qscale"], prepped["shift"],
                    prepped["wf"], prepped["bf"])
    return [out[i, :, :c] for i, c in enumerate(prepped["class_num_lst"])]


def reference_forward(x_nchw, head_params):
    """Pure-JAX f32 reference (lax conv, unfused, unquantized) for correctness."""
    outs = []
    for hp in head_params:
        conv = jax.lax.conv_general_dilated(
            x_nchw.astype(jnp.float32), hp["wconv_oihw"], (1, 1), "VALID",
            dimension_numbers=("NCHW", "OIHW", "NCHW"))
        conv = conv + hp["bconv"][None, :, None, None]
        scale = hp["gamma"] / jnp.sqrt(hp["var"] + BN_EPS)
        y = ((conv - hp["mean"][None, :, None, None]) * scale[None, :, None, None]
             + hp["beta"][None, :, None, None])
        y = y * jax.nn.sigmoid(y)
        pooled = jnp.mean(y, axis=(2, 3))
        h = pooled @ hp["w1"] + hp["b1"]
        outs.append(h @ hp["w2"] + hp["b2"])
    return outs


def init_head_params(key, feature_dim, mid, class_num):
    ks = jax.random.split(key, 10)
    return {
        "wconv_oihw": 0.02 * jax.random.normal(ks[0], (mid, feature_dim, 3, 3), jnp.float32),
        "bconv":      0.01 * jax.random.normal(ks[1], (mid,), jnp.float32),
        "gamma":      1.0 + 0.1 * jax.random.normal(ks[2], (mid,), jnp.float32),
        "beta":       0.05 * jax.random.normal(ks[3], (mid,), jnp.float32),
        "mean":       0.05 * jax.random.normal(ks[4], (mid,), jnp.float32),
        "var":        1.0 + 0.1 * jax.random.uniform(ks[5], (mid,), jnp.float32),
        "w1":         0.05 * jax.random.normal(ks[6], (mid, mid), jnp.float32),
        "b1":         0.01 * jax.random.normal(ks[7], (mid,), jnp.float32),
        "w2":         0.05 * jax.random.normal(ks[8], (mid, class_num), jnp.float32),
        "b2":         0.01 * jax.random.normal(ks[9], (class_num,), jnp.float32),
    }


if __name__ == "__main__":
    # Small shapes consistent with the module's per-head pipeline.
    N, feature_dim, H, W = 2, 256, 8, 8      # backbone feature map (NCHW)
    mid = 512                                 # hardcoded in the module
    class_num_lst = [5, 7]                    # even head count -> both v7x TensorCores get work

    root = jax.random.PRNGKey(0)
    kx, kp = jax.random.split(root)
    x = jax.random.normal(kx, (N, feature_dim, H, W), jnp.float32)

    head_keys = jax.random.split(kp, len(class_num_lst))
    head_params = [init_head_params(k, feature_dim, mid, c)
                   for k, c in zip(head_keys, class_num_lst)]

    prepped = prepare_heads(head_params, class_num_lst)

    # Hoisted constants (per batch/spatial shape), built once outside the hot path.
    P = (H - 2) * (W - 2)
    M_pad = ((N * P + SUBLANE_BF16 - 1) // SUBLANE_BF16) * SUBLANE_BF16
    pool_mat = make_pool_mat(N, P, M_pad)

    outs = custom_model_forward(x, prepped, pool_mat)
    outs = [jax.block_until_ready(o) for o in outs]

    refs = reference_forward(x, head_params)
    for o, r, c in zip(outs, refs, class_num_lst):
        assert o.shape == (N, c), (o.shape, c)
        # int8 conv weights + bf16 activations with f32 accumulation vs the
        # exact f32 reference: tolerance chosen to cover the quantization.
        err = float(jnp.max(jnp.abs(o - r)))
        assert jnp.allclose(o, r, atol=5e-2, rtol=5e-2), err

    print("KERNEL_OK")
</pallas_src>

<mosaic_0001>
module attributes {stable_mosaic.version = 11 : i64} {
  func.func @_fused_heads_kernel(%arg0: i32, %arg1: memref<80x2304xbf16, #tpu.memory_space<vmem>>, %arg2: memref<2x80xbf16, #tpu.memory_space<vmem>>, %arg3: memref<1x2304x512xi8, #tpu.memory_space<vmem>>, %arg4: memref<1x1x512xf32, #tpu.memory_space<vmem>>, %arg5: memref<1x1x512xf32, #tpu.memory_space<vmem>>, %arg6: memref<1x512x128xbf16, #tpu.memory_space<vmem>>, %arg7: memref<1x1x128xf32, #tpu.memory_space<vmem>>, %arg8: memref<1x2x128xf32, #tpu.memory_space<vmem>>) attributes {dimension_semantics = [#tpu.dimension_semantics<parallel>], iteration_bounds = array<i64: 2>, scalar_prefetch = 0 : i64, scratch_operands = 0 : i64, tpu.core_type = #tpu.core_type<tc>, window_params = [{pipeline_mode = #tpu.pipeline_mode<synchronous>, transform_indices = @transform_0, window_bounds = array<i64: 80, 2304>}, {pipeline_mode = #tpu.pipeline_mode<synchronous>, transform_indices = @transform_1, window_bounds = array<i64: 2, 80>}, {transform_indices = @transform_2, window_bounds = array<i64: 1, 2304, 512>}, {transform_indices = @transform_3, window_bounds = array<i64: 1, 1, 512>}, {transform_indices = @transform_4, window_bounds = array<i64: 1, 1, 512>}, {transform_indices = @transform_5, window_bounds = array<i64: 1, 512, 128>}, {transform_indices = @transform_6, window_bounds = array<i64: 1, 1, 128>}, {transform_indices = @transform_7, window_bounds = array<i64: 1, 2, 128>}]} {
    %c0 = arith.constant 0 : index
    %c0_0 = arith.constant 0 : index
    %c0_1 = arith.constant 0 : index
    %0 = vector.load %arg3[%c0, %c0_0, %c0_1] : memref<1x2304x512xi8, #tpu.memory_space<vmem>>, vector<1x2304x512xi8>
    %1 = vector.shape_cast %0 : vector<1x2304x512xi8> to vector<2304x512xi8>
    %2 = arith.sitofp %1 : vector<2304x512xi8> to vector<2304x512xbf16>
    %c0_2 = arith.constant 0 : index
    %c0_3 = arith.constant 0 : index
    %3 = vector.load %arg1[%c0_2, %c0_3] : memref<80x2304xbf16, #tpu.memory_space<vmem>>, vector<80x2304xbf16>
    %cst = arith.constant dense<0.000000e+00> : vector<80x512xf32>
    %4 = tpu.matmul %3, %2, %cst {dimension_numbers = #tpu.dot_dimension_numbers<[1], [0], [0], [1], [0, 0, 1, 1], [], []>} : vector<80x2304xbf16>, vector<2304x512xbf16>, vector<80x512xf32> -> vector<80x512xf32>
    %c0_4 = arith.constant 0 : index
    %c0_5 = arith.constant 0 : index
    %c0_6 = arith.constant 0 : index
    %5 = vector.load %arg4[%c0_4, %c0_5, %c0_6] : memref<1x1x512xf32, #tpu.memory_space<vmem>>, vector<1x1x512xf32>
    %6 = vector.shape_cast %5 : vector<1x1x512xf32> to vector<1x512xf32>
    %7 = vector.broadcast %6 : vector<1x512xf32> to vector<80x512xf32>
    %8 = arith.mulf %4, %7 : vector<80x512xf32>
    %c0_7 = arith.constant 0 : index
    %c0_8 = arith.constant 0 : index
    %c0_9 = arith.constant 0 : index
    %9 = vector.load %arg5[%c0_7, %c0_8, %c0_9] : memref<1x1x512xf32, #tpu.memory_space<vmem>>, vector<1x1x512xf32>
    %10 = vector.shape_cast %9 : vector<1x1x512xf32> to vector<1x512xf32>
    %11 = vector.broadcast %10 : vector<1x512xf32> to vector<80x512xf32>
    %12 = arith.addf %8, %11 : vector<80x512xf32>
    %13 = arith.negf %12 : vector<80x512xf32>
    %14 = math.exp %13 : vector<80x512xf32>
    %cst_10 = arith.constant 1.000000e+00 : f32
    %15 = vector.broadcast %cst_10 : f32 to vector<80x512xf32>
    %16 = arith.addf %15, %14 : vector<80x512xf32>
    %17 = arith.divf %15, %16 : vector<80x512xf32>
    %18 = arith.mulf %12, %17 : vector<80x512xf32>
    %c0_11 = arith.constant 0 : index
    %c0_12 = arith.constant 0 : index
    %19 = vector.load %arg2[%c0_11, %c0_12] : memref<2x80xbf16, #tpu.memory_space<vmem>>, vector<2x80xbf16>
    %20 = arith.truncf %18 : vector<80x512xf32> to vector<80x512xbf16>
    %cst_13 = arith.constant dense<0.000000e+00> : vector<2x512xf32>
    %21 = tpu.matmul %19, %20, %cst_13 {dimension_numbers = #tpu.dot_dimension_numbers<[1], [0], [0], [1], [0, 0, 1, 1], [], []>} : vector<2x80xbf16>, vector<80x512xbf16>, vector<2x512xf32> -> vector<2x512xf32>
    %22 = arith.truncf %21 : vector<2x512xf32> to vector<2x512xbf16>
    %c0_14 = arith.constant 0 : index
    %c0_15 = arith.constant 0 : index
    %c0_16 = arith.constant 0 : index
    %23 = vector.load %arg6[%c0_14, %c0_15, %c0_16] : memref<1x512x128xbf16, #tpu.memory_space<vmem>>, vector<1x512x128xbf16>
    %24 = vector.shape_cast %23 : vector<1x512x128xbf16> to vector<512x128xbf16>
    %cst_17 = arith.constant dense<0.000000e+00> : vector<2x128xf32>
    %25 = tpu.matmul %22, %24, %cst_17 {dimension_numbers = #tpu.dot_dimension_numbers<[1], [0], [0], [1], [0, 0, 1, 1], [], []>} : vector<2x512xbf16>, vector<512x128xbf16>, vector<2x128xf32> -> vector<2x128xf32>
    %c0_18 = arith.constant 0 : index
    %c0_19 = arith.constant 0 : index
    %c0_20 = arith.constant 0 : index
    %26 = vector.load %arg7[%c0_18, %c0_19, %c0_20] : memref<1x1x128xf32, #tpu.memory_space<vmem>>, vector<1x1x128xf32>
    %27 = vector.shape_cast %26 : vector<1x1x128xf32> to vector<1x128xf32>
    %28 = vector.broadcast %27 : vector<1x128xf32> to vector<2x128xf32>
    %29 = arith.addf %25, %28 : vector<2x128xf32>
    %c0_21 = arith.constant 0 : index
    %c0_22 = arith.constant 0 : index
    %c0_23 = arith.constant 0 : index
    %30 = vector.load %arg8[%c0_21, %c0_22, %c0_23] : memref<1x2x128xf32, #tpu.memory_space<vmem>>, vector<1x2x128xf32>
    %31 = vector.shape_cast %30 : vector<1x2x128xf32> to vector<2x128xf32>
    %32 = vector.shape_cast %29 : vector<2x128xf32> to vector<1x2x128xf32>
    tpu.vector_store %arg8[%c0_21, %c0_22, %c0_23], %32 {strides = array<i32>} : memref<1x2x128xf32, #tpu.memory_space<vmem>>, vector<1x2x128xf32>,
    return
  }
  func.func @transform_0(%arg0: i32) -> (i32, i32) {
    %c0_i32 = arith.constant 0 : i32
    %c0_i32_0 = arith.constant 0 : i32
    %c0_i32_1 = arith.constant 0 : i32
    return %c0_i32, %c0_i32_0 : i32, i32
  }
  func.func @transform_1(%arg0: i32) -> (i32, i32) {
    %c0_i32 = arith.constant 0 : i32
    %c0_i32_0 = arith.constant 0 : i32
    %c0_i32_1 = arith.constant 0 : i32
    return %c0_i32, %c0_i32_0 : i32, i32
  }
  func.func @transform_2(%arg0: i32) -> (i32, i32, i32) {
    %c0_i32 = arith.constant 0 : i32
    %c0_i32_0 = arith.constant 0 : i32
    %c0_i32_1 = arith.constant 0 : i32
    return %arg0, %c0_i32, %c0_i32_0 : i32, i32, i32
  }
  func.func @transform_3(%arg0: i32) -> (i32, i32, i32) {
    %c0_i32 = arith.constant 0 : i32
    %c0_i32_0 = arith.constant 0 : i32
    %c0_i32_1 = arith.constant 0 : i32
    return %arg0, %c0_i32, %c0_i32_0 : i32, i32, i32
  }
  func.func @transform_4(%arg0: i32) -> (i32, i32, i32) {
    %c0_i32 = arith.constant 0 : i32
    %c0_i32_0 = arith.constant 0 : i32
    %c0_i32_1 = arith.constant 0 : i32
    return %arg0, %c0_i32, %c0_i32_0 : i32, i32, i32
  }
  func.func @transform_5(%arg0: i32) -> (i32, i32, i32) {
    %c0_i32 = arith.constant 0 : i32
    %c0_i32_0 = arith.constant 0 : i32
    %c0_i32_1 = arith.constant 0 : i32
    return %arg0, %c0_i32, %c0_i32_0 : i32, i32, i32
  }
  func.func @transform_6(%arg0: i32) -> (i32, i32, i32) {
    %c0_i32 = arith.constant 0 : i32
    %c0_i32_0 = arith.constant 0 : i32
    %c0_i32_1 = arith.constant 0 : i32
    return %arg0, %c0_i32, %c0_i32_0 : i32, i32, i32
  }
  func.func @transform_7(%arg0: i32) -> (i32, i32, i32) {
    %c0_i32 = arith.constant 0 : i32
    %c0_i32_0 = arith.constant 0 : i32
    %c0_i32_1 = arith.constant 0 : i32
    return %arg0, %c0_i32, %c0_i32_0 : i32, i32, i32
  }
}

</mosaic_0001>

<llo_original>
// kernel: tpu_custom_call.1
$region0: #{tpu_custom_call.1}
  #allocation0 [shape = 'u32[]', space=smem, size = 0x4, offset = 0x4, fixed_abs, tag = 'smem constant byte address 0x4 - core index']
  #allocation1 [shape = 'u32[144,128]{1,0:T(1,128)}', space=vmem, size = 0x12000, scoped, tag = 'internal scratch']
  %s0 = inlined_call_operand.hbm [shape: bf16[80,2304], index: 0, kind: input, shape index: {}]
  %s1 = inlined_call_operand.hbm [shape: bf16[2,80], index: 1, kind: input, shape index: {}]
  %s2 = inlined_call_operand.hbm [shape: s8[2,2304,512], index: 2, kind: input, shape index: {}]
  %s3 = inlined_call_operand.hbm [shape: f32[2,1,512], index: 3, kind: input, shape index: {}]
  %s4 = inlined_call_operand.hbm [shape: f32[2,1,512], index: 4, kind: input, shape index: {}]
  %s5 = inlined_call_operand.hbm [shape: bf16[2,512,128], index: 5, kind: input, shape index: {}]
  %s6 = inlined_call_operand.hbm [shape: f32[2,1,128], index: 6, kind: input, shape index: {}]
  %s7 = inlined_call_operand.hbm [shape: f32[2,2,128], index: 7, kind: output, shape index: {}]
  %s8 = sld [smem:[#allocation0]]
  $region89: #{tpu_custom_call.1} parent=0
    _
  %s10 = ssub.s32 1, %s8
  %s11 = scalar_select 0, %s10, %s8
  $region1: #{tpu_custom_call.1} parent=0
    #allocation2 [shape = 'u8[368640]{0}', space=vmem, size = 0x5a000, scoped, tag = 'input window, operand 0, single buffered']
    #allocation3 [shape = 's32[2]{0}', space=sflag, size = 0x8, scoped, tag = 'scoped memory for tpu_custom_call.1']
    #allocation4 [shape = 's32[2]{0}', space=sflag, size = 0x8, scoped, tag = 'scoped memory for tpu_custom_call.1']
    #allocation5 [shape = 'u8[512]{0}', space=vmem, size = 0x400, scoped, tag = 'input window, operand 1, single buffered']
    #allocation6 [shape = 's32[1]{0}', space=sflag, size = 0x4, scoped, tag = 'scoped memory for tpu_custom_call.1']
    #allocation7 [shape = 'u8[2359296]{0}', space=vmem, size = 0x240000, scoped, tag = 'input window, operand 2']
    #allocation8 [shape = 'u8[4096]{0}', space=vmem, size = 0x1000, scoped, tag = 'input window, operand 3']
    #allocation9 [shape = 'u8[4096]{0}', space=vmem, size = 0x1000, scoped, tag = 'input window, operand 4']
    #allocation10 [shape = 'u8[262144]{0}', space=vmem, size = 0x40000, scoped, tag = 'input window, operand 5']
    #allocation11 [shape = 'u8[1024]{0}', space=vmem, size = 0x400, scoped, tag = 'input window, operand 6']
    #allocation12 [shape = 'u8[2048]{0}', space=vmem, size = 0x800, scoped, tag = 'output window, operand 0']
    %12 = vsyncpa [#allocation3], 0
    %13 = vsyncpa [#allocation6], 0
    %14 = vsyncpa [#allocation4], 0
    %s15 = scalar_lea.sflag [#allocation4], 1
    %16 = vsyncpa %s15, 0
    loop: start=0, step=1, limit=4
    $region2: #{tpu_custom_call.1} parent=1 // loop_pre_header
      _
    $region3: #{tpu_custom_call.1} parent=1 // loop_header
      %s18 = sphi 0, %s22
      %p19 = scmp.ge.s32.totalorder %s18, 4
      %s26 = sphi 0, %s26
      %s28 = sphi 0, %s26
      %s29 = sphi 0, %s28
      %s43 = sphi 0, %s29
      %s47 = sphi 0, %s47
      %s49 = sphi 0, %s47
      %s50 = sphi 0, %s49
      %s64 = sphi 0, %s50
      %s70 = sphi 0, %s72
      %s73 = sphi 0, %s70
      %s74 = sphi 0, %s73
      %s90 = sphi 0, %s74
      %s96 = sphi 0, %s98
      %s99 = sphi 0, %s96
      %s100 = sphi 0, %s99
      %s116 = sphi 0, %s100
      %s122 = sphi 0, %s124
      %s125 = sphi 0, %s122
      %s126 = sphi 0, %s125
      %s142 = sphi 0, %s126
      %s148 = sphi 0, %s150
      %s151 = sphi 0, %s148
      %s152 = sphi 0, %s151
      %s168 = sphi 0, %s152
      %s174 = sphi 0, %s176
      %s177 = sphi 0, %s174
      %s178 = sphi 0, %s177
      %s194 = sphi 0, %s178
      %s200 = sphi 0, %s202
      %s203 = sphi 0, %s200
      %s204 = sphi 0, %s203
      %s220 = sphi 0, %s204
    $region4: #{tpu_custom_call.1} parent=1 // loop_header_branch
      %21 = sbr.rel (%p19) target = $region8
    $region5: #{tpu_custom_call.1} parent=1 // loop_body
      %s23 = ssub.s32 %s18, 1
      %s24 = ssub.s32 %s18, 2
      %s25 = sadd.s32 %s18, 1
      %s27 = sadd.s32 %s26, 1
      %p30 = scmp.eq.s32.totalorder %s18, 1
      %p31 = scmp.ne.s32.totalorder %s26, %s28
      %p32 = scmp.eq.s32.totalorder %s18, 0
      %p33 = por %p31, %p32
      %p34 = scmp.ne.s32.totalorder %s26, %s28
      %p35 = scmp.eq.s32.totalorder %s23, 1
      %p36 = por %p34, %p35
      %p37 = scmp.ne.s32.totalorder %s28, %s29
      %p38 = scmp.eq.s32.totalorder %s23, 0
      %p39 = por %p37, %p38
      %p40 = scmp.ne.s32.totalorder %s28, %s29
      %p41 = scmp.eq.s32.totalorder %s24, 1
      %p42 = por %p40, %p41
      %p44 = scmp.ne.s32.totalorder %s29, %s43
      %p45 = scmp.eq.s32.totalorder %s24, 0
      %p46 = por %p44, %p45
      %s48 = sadd.s32 %s47, 1
      %p51 = scmp.eq.s32.totalorder %s18, 1
      %p52 = scmp.ne.s32.totalorder %s47, %s49
      %p53 = scmp.eq.s32.totalorder %s18, 0
      %p54 = por %p52, %p53
      %p55 = scmp.ne.s32.totalorder %s47, %s49
      %p56 = scmp.eq.s32.totalorder %s23, 1
      %p57 = por %p55, %p56
      %p58 = scmp.ne.s32.totalorder %s49, %s50
      %p59 = scmp.eq.s32.totalorder %s23, 0
      %p60 = por %p58, %p59
      %p61 = scmp.ne.s32.totalorder %s49, %s50
      %p62 = scmp.eq.s32.totalorder %s24, 1
      %p63 = por %p61, %p62
      %p65 = scmp.ne.s32.totalorder %s50, %s64
      %p66 = scmp.eq.s32.totalorder %s24, 0
      %p67 = por %p65, %p66
      %s68 = ssub.s32 %s18, %s25
      %p69 = scmp.eq.s32.totalorder %s68, 0
      %s71 = sadd.s32 %s70, 1
      %s72 = scalar_select %p69, %s70, %s71
      %p75 = pneg %p69
      %p76 = scmp.eq.s32.totalorder %s18, 1
      %p77 = por %p75, %p76
      %p78 = scmp.ne.s32.totalorder %s70, %s73
      %p79 = scmp.eq.s32.totalorder %s18, 0
      %p80 = por %p78, %p79
      %p81 = scmp.ne.s32.totalorder %s70, %s73
      %p82 = scmp.eq.s32.totalorder %s23, 1
      %p83 = por %p81, %p82
      %p84 = scmp.ne.s32.totalorder %s73, %s74
      %p85 = scmp.eq.s32.totalorder %s23, 0
      %p86 = por %p84, %p85
      %p87 = scmp.ne.s32.totalorder %s73, %s74
      %p88 = scmp.eq.s32.totalorder %s24, 1
      %p89 = por %p87, %p88
      %p91 = scmp.ne.s32.totalorder %s74, %s90
      %p92 = scmp.eq.s32.totalorder %s24, 0
      %p93 = por %p91, %p92
      %s94 = ssub.s32 %s18, %s25
      %p95 = scmp.eq.s32.totalorder %s94, 0
      %s97 = sadd.s32 %s96, 1
      %s98 = scalar_select %p95, %s96, %s97
      %p101 = pneg %p95
      %p102 = scmp.eq.s32.totalorder %s18, 1
      %p103 = por %p101, %p102
      %p104 = scmp.ne.s32.totalorder %s96, %s99
      %p105 = scmp.eq.s32.totalorder %s18, 0
      %p106 = por %p104, %p105
      %p107 = scmp.ne.s32.totalorder %s96, %s99
      %p108 = scmp.eq.s32.totalorder %s23, 1
      %p109 = por %p107, %p108
      %p110 = scmp.ne.s32.totalorder %s99, %s100
      %p111 = scmp.eq.s32.totalorder %s23, 0
      %p112 = por %p110, %p111
      %p113 = scmp.ne.s32.totalorder %s99, %s100
      %p114 = scmp.eq.s32.totalorder %s24, 1
      %p115 = por %p113, %p114
      %p117 = scmp.ne.s32.totalorder %s100, %s116
      %p118 = scmp.eq.s32.totalorder %s24, 0
      %p119 = por %p117, %p118
      %s120 = ssub.s32 %s18, %s25
      %p121 = scmp.eq.s32.totalorder %s120, 0
      %s123 = sadd.s32 %s122, 1
      %s124 = scalar_select %p121, %s122, %s123
      %p127 = pneg %p121
      %p128 = scmp.eq.s32.totalorder %s18, 1
      %p129 = por %p127, %p128
      %p130 = scmp.ne.s32.totalorder %s122, %s125
      %p131 = scmp.eq.s32.totalorder %s18, 0
      %p132 = por %p130, %p131
      %p133 = scmp.ne.s32.totalorder %s122, %s125
      %p134 = scmp.eq.s32.totalorder %s23, 1
      %p135 = por %p133, %p134
      %p136 = scmp.ne.s32.totalorder %s125, %s126
      %p137 = scmp.eq.s32.totalorder %s23, 0
      %p138 = por %p136, %p137
      %p139 = scmp.ne.s32.totalorder %s125, %s126
      %p140 = scmp.eq.s32.totalorder %s24, 1
      %p141 = por %p139, %p140
      %p143 = scmp.ne.s32.totalorder %s126, %s142
      %p144 = scmp.eq.s32.totalorder %s24, 0
      %p145 = por %p143, %p144
      %s146 = ssub.s32 %s18, %s25
      %p147 = scmp.eq.s32.totalorder %s146, 0
      %s149 = sadd.s32 %s148, 1
      %s150 = scalar_select %p147, %s148, %s149
      %p153 = pneg %p147
      %p154 = scmp.eq.s32.totalorder %s18, 1
      %p155 = por %p153, %p154
      %p156 = scmp.ne.s32.totalorder %s148, %s151
      %p157 = scmp.eq.s32.totalorder %s18, 0
      %p158 = por %p156, %p157
      %p159 = scmp.ne.s32.totalorder %s148, %s151
      %p160 = scmp.eq.s32.totalorder %s23, 1
      %p161 = por %p159, %p160
      %p162 = scmp.ne.s32.totalorder %s151, %s152
      %p163 = scmp.eq.s32.totalorder %s23, 0
      %p164 = por %p162, %p163
      %p165 = scmp.ne.s32.totalorder %s151, %s152
      %p166 = scmp.eq.s32.totalorder %s24, 1
      %p167 = por %p165, %p166
      %p169 = scmp.ne.s32.totalorder %s152, %s168
      %p170 = scmp.eq.s32.totalorder %s24, 0
      %p171 = por %p169, %p170
      %s172 = ssub.s32 %s18, %s25
      %p173 = scmp.eq.s32.totalorder %s172, 0
      %s175 = sadd.s32 %s174, 1
      %s176 = scalar_select %p173, %s174, %s175
      %p179 = pneg %p173
      %p180 = scmp.eq.s32.totalorder %s18, 1
      %p181 = por %p179, %p180
      %p182 = scmp.ne.s32.totalorder %s174, %s177
      %p183 = scmp.eq.s32.totalorder %s18, 0
      %p184 = por %p182, %p183
      %p185 = scmp.ne.s32.totalorder %s174, %s177
      %p186 = scmp.eq.s32.totalorder %s23, 1
      %p187 = por %p185, %p186
      %p188 = scmp.ne.s32.totalorder %s177, %s178
      %p189 = scmp.eq.s32.totalorder %s23, 0
      %p190 = por %p188, %p189
      %p191 = scmp.ne.s32.totalorder %s177, %s178
      %p192 = scmp.eq.s32.totalorder %s24, 1
      %p193 = por %p191, %p192
      %p195 = scmp.ne.s32.totalorder %s178, %s194
      %p196 = scmp.eq.s32.totalorder %s24, 0
      %p197 = por %p195, %p196
      %s198 = ssub.s32 %s18, %s25
      %p199 = scmp.eq.s32.totalorder %s198, 0
      %s201 = sadd.s32 %s200, 1
      %s202 = scalar_select %p199, %s200, %s201
      %p205 = pneg %p199
      %p206 = scmp.eq.s32.totalorder %s18, 1
      %p207 = por %p205, %p206
      %p208 = scmp.ne.s32.totalorder %s200, %s203
      %p209 = scmp.eq.s32.totalorder %s18, 0
      %p210 = por %p208, %p209
      %p211 = scmp.ne.s32.totalorder %s200, %s203
      %p212 = scmp.eq.s32.totalorder %s23, 1
      %p213 = por %p211, %p212
      %p214 = scmp.ne.s32.totalorder %s203, %s204
      %p215 = scmp.eq.s32.totalorder %s23, 0
      %p216 = por %p214, %p215
      %p217 = scmp.ne.s32.totalorder %s203, %s204
      %p218 = scmp.eq.s32.totalorder %s24, 1
      %p219 = por %p217, %p218
      %p221 = scmp.ne.s32.totalorder %s204, %s220
      %p222 = scmp.eq.s32.totalorder %s24, 0
      %p223 = por %p221, %p222
      %p224 = scmp.le.s32.totalorder 1, %s18
      %p225 = scmp.lt.s32.totalorder %s18, 3
      %p226 = pnand %p224, %p225
      %p227 = pneg %p226
      // Predicated region
      $region9: #{tpu_custom_call.1} parent=5 // pred_check
        _
      $region10: #{tpu_custom_call.1} parent=5 // pred_check_branch
        %229 = sbr.rel (%p226) target = $region12
      $region11: #{tpu_custom_call.1} parent=5 // pred_region
        %s230 = ssub.s32 %s18, 1
        // Predicated region
        $region13: #{tpu_custom_call.1} parent=11 // pred_check
          %p231 = pneg %p39
        $region14: #{tpu_custom_call.1} parent=11 // pred_check_branch
          %233 = sbr.rel (%p231) target = $region16
        $region15: #{tpu_custom_call.1} parent=11 // pred_region
          %s235 = ssub.s32 11520, 11520
          %236 = vsyncadd [#allocation3], %s235
          %s237 = sshll.u32 [#allocation2], 4
          %s238 = int_to_ptr.vmem [resolvable:$true] %s237
          %243 = dma.hbm_to_vmem [thread:$0]  %s0, 11520, %s238, [#allocation3], 1152, 1152, 72
        $region16: #{tpu_custom_call.1} parent=11 // pred_fallthru
          _
        // Predicated region
        $region17: #{tpu_custom_call.1} parent=11 // pred_check
          %p244 = pneg %p60
        $region18: #{tpu_custom_call.1} parent=11 // pred_check_branch
          %246 = sbr.rel (%p244) target = $region20
        $region19: #{tpu_custom_call.1} parent=11 // pred_region
          %s248 = ssub.s32 16, 16
          %249 = vsyncadd [#allocation6], %s248
          %s251 = sshll.u32 [#allocation5], 4
          %s252 = int_to_ptr.vmem [resolvable:$true] %s251
          %254 = dma.hbm_to_vmem [thread:$0]  %s1, 16, %s252, [#allocation6]
        $region20: #{tpu_custom_call.1} parent=11 // pred_fallthru
          _
      $region12: #{tpu_custom_call.1} parent=5 // pred_fallthru
        _
      %p255 = scmp.lt.s32.totalorder %s18, 2
      // Predicated region
      $region21: #{tpu_custom_call.1} parent=5 // pred_check
        %p256 = pneg %p255
      $region22: #{tpu_custom_call.1} parent=5 // pred_check_branch
        %258 = sbr.rel (%p256) target = $region24
      $region23: #{tpu_custom_call.1} parent=5 // pred_region
        // Predicated region
        $region25: #{tpu_custom_call.1} parent=23 // pred_check
          %p259 = pneg %p80
        $region26: #{tpu_custom_call.1} parent=23 // pred_check_branch
          %261 = sbr.rel (%p259) target = $region28
        $region27: #{tpu_custom_call.1} parent=23 // pred_region
          %s262 = sand.u32 %s18, 1
          %s263 = scalar_lea.sflag [#allocation3], %s262
          %s264 = sand.u32 %s70, 1
          %s265 = smul.addr %s264, 2304
          %s266 = scalar_lea.vmem [#allocation7], %s265
          %s268 = ssub.s32 36864, 36864
          %269 = vsyncadd %s263, %s268
          %s270 = smul.addr %s18, 288
          %s271 = smul.addr %s270, 128
          %s272 = scalar_lea.hbm %s2, %s271
          %s273 = sshll.u32 %s266, 4
          %s274 = int_to_ptr.vmem [resolvable:$true] %s273
          %279 = dma.hbm_to_vmem [thread:$0]  %s272, 36864, %s274, %s263, 512, 512, 32
        $region28: #{tpu_custom_call.1} parent=23 // pred_fallthru
          _
        // Predicated region
        $region29: #{tpu_custom_call.1} parent=23 // pred_check
          %p280 = pneg %p106
        $region30: #{tpu_custom_call.1} parent=23 // pred_check_branch
          %282 = sbr.rel (%p280) target = $region32
        $region31: #{tpu_custom_call.1} parent=23 // pred_region
          %s283 = sand.u32 %s18, 1
          %s284 = scalar_lea.sflag [#allocation3], %s283
          %s285 = sand.u32 %s96, 1
          %s286 = smul.addr %s285, 4
          %s287 = scalar_lea.vmem [#allocation8], %s286
          %s289 = ssub.s32 64, 64
          %290 = vsyncadd %s284, %s289
          %s291 = smul.addr %s18, 4
          %s292 = smul.addr %s291, 16
          %s293 = scalar_lea.hbm %s3, %s292
          %s295 = sshll.u32 %s287, 4
          %s296 = int_to_ptr.vmem [resolvable:$true] %s295
          %298 = dma.hbm_to_vmem [thread:$0]  %s293, 64, %s296, %s284
        $region32: #{tpu_custom_call.1} parent=23 // pred_fallthru
          _
        // Predicated region
        $region33: #{tpu_custom_call.1} parent=23 // pred_check
          %p299 = pneg %p132
        $region34: #{tpu_custom_call.1} parent=23 // pred_check_branch
          %301 = sbr.rel (%p299) target = $region36
        $region35: #{tpu_custom_call.1} parent=23 // pred_region
          %s302 = sand.u32 %s18, 1
          %s303 = scalar_lea.sflag [#allocation3], %s302
          %s304 = sand.u32 %s122, 1
          %s305 = smul.addr %s304, 4
          %s306 = scalar_lea.vmem [#allocation9], %s305
          %s308 = ssub.s32 64, 64
          %309 = vsyncadd %s303, %s308
          %s310 = smul.addr %s18, 4
          %s311 = smul.addr %s310, 16
          %s312 = scalar_lea.hbm %s4, %s311
          %s314 = sshll.u32 %s306, 4
          %s315 = int_to_ptr.vmem [resolvable:$true] %s314
          %317 = dma.hbm_to_vmem [thread:$0]  %s312, 64, %s315, %s303
        $region36: #{tpu_custom_call.1} parent=23 // pred_fallthru
          _
        // Predicated region
        $region37: #{tpu_custom_call.1} parent=23 // pred_check
          %p318 = pneg %p158
        $region38: #{tpu_custom_call.1} parent=23 // pred_check_branch
          %320 = sbr.rel (%p318) target = $region40
        $region39: #{tpu_custom_call.1} parent=23 // pred_region
          %s321 = sand.u32 %s18, 1
          %s322 = scalar_lea.sflag [#allocation3], %s321
          %s323 = sand.u32 %s148, 1
          %s324 = smul.addr %s323, 256
          %s325 = scalar_lea.vmem [#allocation10], %s324
          %s327 = ssub.s32 4096, 4096
          %328 = vsyncadd %s322, %s327
          %s329 = smul.addr %s18, 64
          %s330 = smul.addr %s329, 64
          %s331 = scalar_lea.hbm %s5, %s330
          %s332 = sshll.u32 %s325, 4
          %s333 = int_to_ptr.vmem [resolvable:$true] %s332
          %338 = dma.hbm_to_vmem [thread:$0]  %s331, 4096, %s333, %s322, 64, 64, 4
        $region40: #{tpu_custom_call.1} parent=23 // pred_fallthru
          _
        // Predicated region
        $region41: #{tpu_custom_call.1} parent=23 // pred_check
          %p339 = pneg %p184
        $region42: #{tpu_custom_call.1} parent=23 // pred_check_branch
          %341 = sbr.rel (%p339) target = $region44
        $region43: #{tpu_custom_call.1} parent=23 // pred_region
          %s342 = sand.u32 %s18, 1
          %s343 = scalar_lea.sflag [#allocation3], %s342
          %s344 = sand.u32 %s174, 1
          %s345 = scalar_lea.vmem [#allocation11], %s344
          %s347 = ssub.s32 16, 16
          %348 = vsyncadd %s343, %s347
          %s349 = smul.addr %s18, 16
          %s350 = scalar_lea.hbm %s6, %s349
          %s352 = sshll.u32 %s345, 4
          %s353 = int_to_ptr.vmem [resolvable:$true] %s352
          %355 = dma.hbm_to_vmem [thread:$0]  %s350, 16, %s353, %s343
        $region44: #{tpu_custom_call.1} parent=23 // pred_fallthru
          _
      $region24: #{tpu_custom_call.1} parent=5 // pred_fallthru
        _
      %p356 = scmp.le.s32.totalorder 1, %s18
      %p357 = scmp.lt.s32.totalorder %s18, 3
      %p358 = pnand %p356, %p357
      %p359 = pneg %p358
      // Predicated region
      $region45: #{tpu_custom_call.1} parent=5 // pred_check
        _
      $region46: #{tpu_custom_call.1} parent=5 // pred_check_branch
        %361 = sbr.rel (%p358) target = $region48
      $region47: #{tpu_custom_call.1} parent=5 // pred_region
        %s362 = ssub.s32 %s18, 1
        // Predicated region
        $region49: #{tpu_custom_call.1} parent=47 // pred_check
          %p363 = pneg %p39
        $region50: #{tpu_custom_call.1} parent=47 // pred_check_branch
          %365 = sbr.rel (%p363) target = $region52
        $region51: #{tpu_custom_call.1} parent=47 // pred_region
          %366 = dma.done [#allocation3], 11520
        $region52: #{tpu_custom_call.1} parent=47 // pred_fallthru
          _
        // Predicated region
        $region53: #{tpu_custom_call.1} parent=47 // pred_check
          %p367 = pneg %p60
        $region54: #{tpu_custom_call.1} parent=47 // pred_check_branch
          %369 = sbr.rel (%p367) target = $region56
        $region55: #{tpu_custom_call.1} parent=47 // pred_region
          %370 = dma.done [#allocation6], 16
        $region56: #{tpu_custom_call.1} parent=47 // pred_fallthru
          _
        %s371 = sand.u32 %s23, 1
        %s372 = scalar_lea.sflag [#allocation3], %s371
        %s373 = sand.u32 %s73, 1
        %s374 = smul.addr %s373, 2304
        %s375 = scalar_lea.vmem [#allocation7], %s374
        // Predicated region
        $region57: #{tpu_custom_call.1} parent=47 // pred_check
          %p376 = pneg %p86
        $region58: #{tpu_custom_call.1} parent=47 // pred_check_branch
          %378 = sbr.rel (%p376) target = $region60
        $region59: #{tpu_custom_call.1} parent=47 // pred_region
          %379 = dma.done %s372, 36864
        $region60: #{tpu_custom_call.1} parent=47 // pred_fallthru
          _
        %s380 = sand.u32 %s23, 1
        %s381 = scalar_lea.sflag [#allocation3], %s380
        %s382 = sand.u32 %s99, 1
        %s383 = smul.addr %s382, 4
        %s384 = scalar_lea.vmem [#allocation8], %s383
        // Predicated region
        $region61: #{tpu_custom_call.1} parent=47 // pred_check
          %p385 = pneg %p112
        $region62: #{tpu_custom_call.1} parent=47 // pred_check_branch
          %387 = sbr.rel (%p385) target = $region64
        $region63: #{tpu_custom_call.1} parent=47 // pred_region
          %388 = dma.done %s381, 64
        $region64: #{tpu_custom_call.1} parent=47 // pred_fallthru
          _
        %s389 = sand.u32 %s23, 1
        %s390 = scalar_lea.sflag [#allocation3], %s389
        %s391 = sand.u32 %s125, 1
        %s392 = smul.addr %s391, 4
        %s393 = scalar_lea.vmem [#allocation9], %s392
        // Predicated region
        $region65: #{tpu_custom_call.1} parent=47 // pred_check
          %p394 = pneg %p138
        $region66: #{tpu_custom_call.1} parent=47 // pred_check_branch
          %396 = sbr.rel (%p394) target = $region68
        $region67: #{tpu_custom_call.1} parent=47 // pred_region
          %397 = dma.done %s390, 64
        $region68: #{tpu_custom_call.1} parent=47 // pred_fallthru
          _
        %s398 = sand.u32 %s23, 1
        %s399 = scalar_lea.sflag [#allocation3], %s398
        %s400 = sand.u32 %s151, 1
        %s401 = smul.addr %s400, 256
        %s402 = scalar_lea.vmem [#allocation10], %s401
        // Predicated region
        $region69: #{tpu_custom_call.1} parent=47 // pred_check
          %p403 = pneg %p164
        $region70: #{tpu_custom_call.1} parent=47 // pred_check_branch
          %405 = sbr.rel (%p403) target = $region72
        $region71: #{tpu_custom_call.1} parent=47 // pred_region
          %406 = dma.done %s399, 4096
        $region72: #{tpu_custom_call.1} parent=47 // pred_fallthru
          _
        %s407 = sand.u32 %s23, 1
        %s408 = scalar_lea.sflag [#allocation3], %s407
        %s409 = sand.u32 %s177, 1
        %s410 = scalar_lea.vmem [#allocation11], %s409
        // Predicated region
        $region73: #{tpu_custom_call.1} parent=47 // pred_check
          %p411 = pneg %p190
        $region74: #{tpu_custom_call.1} parent=47 // pred_check_branch
          %413 = sbr.rel (%p411) target = $region76
        $region75: #{tpu_custom_call.1} parent=47 // pred_region
          %414 = dma.done %s408, 16
        $region76: #{tpu_custom_call.1} parent=47 // pred_fallthru
          _
        %p415 = pneg %p39
        %p416 = pneg %p36
        %p417 = pneg %p60
        %p418 = pneg %p57
        %s419 = sand.u32 %s23, 1
        %s420 = scalar_lea.sflag [#allocation3], %s419
        %s421 = sand.u32 %s73, 1
        %s422 = smul.addr %s421, 2304
        %s423 = scalar_lea.vmem [#allocation7], %s422
        %p424 = pneg %p86
        %p425 = pneg %p83
        %s426 = sand.u32 %s23, 1
        %s427 = scalar_lea.sflag [#allocation3], %s426
        %s428 = sand.u32 %s99, 1
        %s429 = smul.addr %s428, 4
        %s430 = scalar_lea.vmem [#allocation8], %s429
        %p431 = pneg %p112
        %p432 = pneg %p109
        %s433 = sand.u32 %s23, 1
        %s434 = scalar_lea.sflag [#allocation3], %s433
        %s435 = sand.u32 %s125, 1
        %s436 = smul.addr %s435, 4
        %s437 = scalar_lea.vmem [#allocation9], %s436
        %p438 = pneg %p138
        %p439 = pneg %p135
        %s440 = sand.u32 %s23, 1
        %s441 = scalar_lea.sflag [#allocation3], %s440
        %s442 = sand.u32 %s151, 1
        %s443 = smul.addr %s442, 256
        %s444 = scalar_lea.vmem [#allocation10], %s443
        %p445 = pneg %p164
        %p446 = pneg %p161
        %s447 = sand.u32 %s23, 1
        %s448 = scalar_lea.sflag [#allocation3], %s447
        %s449 = sand.u32 %s177, 1
        %s450 = scalar_lea.vmem [#allocation11], %s449
        %p451 = pneg %p190
        %p452 = pneg %p187
        %p453 = pneg %p216
        %p454 = pneg %p213
        %s455 = sand.u32 %s203, 1
        %s456 = scalar_lea.sflag [#allocation4], %s455
        %s457 = sand.u32 %s203, 1
        %s458 = smul.addr %s457, 2
        %s459 = scalar_lea.vmem [#allocation12], %s458
        %v461 = vld [vmem:[%s375] sm:$0xff]
        %v462 = vld [vmem:[%s375 + $0x8] sm:$0xff]
        %v463 = vld [vmem:[%s375 + $0x10] sm:$0xff]
        %v464 = vld [vmem:[%s375 + $0x18] sm:$0xff]
        %v465 = vld [vmem:[%s375 + $0x20] sm:$0xff]
        %v466 = vld [vmem:[%s375 + $0x28] sm:$0xff]
        %v467 = vld [vmem:[%s375 + $0x30] sm:$0xff]
        %v468 = vld [vmem:[%s375 + $0x38] sm:$0xff]
        %v469 = vld [vmem:[%s375 + $0x40] sm:$0xff]
        %v470 = vld [vmem:[%s375 + $0x48] sm:$0xff]
        %v471 = vld [vmem:[%s375 + $0x50] sm:$0xff]
        %v472 = vld [vmem:[%s375 + $0x58] sm:$0xff]
        %v473 = vld [vmem:[%s375 + $0x60] sm:$0xff]
        %v474 = vld [vmem:[%s375 + $0x68] sm:$0xff]
        %v475 = vld [vmem:[%s375 + $0x70] sm:$0xff]
        %v476 = vld [vmem:[%s375 + $0x78] sm:$0xff]
        %v477 = vld [vmem:[%s375 + $0x80] sm:$0xff]
        %v478 = vld [vmem:[%s375 + $0x88] sm:$0xff]
        %v479 = vld [vmem:[%s375 + $0x90] sm:$0xff]
        %v480 = vld [vmem:[%s375 + $0x98] sm:$0xff]
        %v481 = vld [vmem:[%s375 + $0xa0] sm:$0xff]
        %v482 = vld [vmem:[%s375 + $0xa8] sm:$0xff]
        %v483 = vld [vmem:[%s375 + $0xb0] sm:$0xff]
        %v484 = vld [vmem:[%s375 + $0xb8] sm:$0xff]
        %v485 = vld [vmem:[%s375 + $0xc0] sm:$0xff]
        %v486 = vld [vmem:[%s375 + $0xc8] sm:$0xff]
        %v487 = vld [vmem:[%s375 + $0xd0] sm:$0xff]
        %v488 = vld [vmem:[%s375 + $0xd8] sm:$0xff]
        %v489 = vld [vmem:[%s375 + $0xe0] sm:$0xff]
        %v490 = vld [vmem:[%s375 + $0xe8] sm:$0xff]
        %v491 = vld [vmem:[%s375 + $0xf0] sm:$0xff]
        %v492 = vld [vmem:[%s375 + $0xf8] sm:$0xff]
        %v493 = vld [vmem:[%s375 + $0x100] sm:$0xff]
        %v494 = vld [vmem:[%s375 + $0x108] sm:$0xff]
        %v495 = vld [vmem:[%s375 + $0x110] sm:$0xff]
        %v496 = vld [vmem:[%s375 + $0x118] sm:$0xff]
        %v497 = vld [vmem:[%s375 + $0x120] sm:$0xff]
        %v498 = vld [vmem:[%s375 + $0x128] sm:$0xff]
        %v499 = vld [vmem:[%s375 + $0x130] sm:$0xff]
        %v500 = vld [vmem:[%s375 + $0x138] sm:$0xff]
        %v501 = vld [vmem:[%s375 + $0x140] sm:$0xff]
        %v502 = vld [vmem:[%s375 + $0x148] sm:$0xff]
        %v503 = vld [vmem:[%s375 + $0x150] sm:$0xff]
        %v504 = vld [vmem:[%s375 + $0x158] sm:$0xff]
        %v505 = vld [vmem:[%s375 + $0x160] sm:$0xff]
        %v506 = vld [vmem:[%s375 + $0x168] sm:$0xff]
        %v507 = vld [vmem:[%s375 + $0x170] sm:$0xff]
        %v508 = vld [vmem:[%s375 + $0x178] sm:$0xff]
        %v509 = vld [vmem:[%s375 + $0x180] sm:$0xff]
        %v510 = vld [vmem:[%s375 + $0x188] sm:$0xff]
        %v511 = vld [vmem:[%s375 + $0x190] sm:$0xff]
        %v512 = vld [vmem:[%s375 + $0x198] sm:$0xff]
        %v513 = vld [vmem:[%s375 + $0x1a0] sm:$0xff]
        %v514 = vld [vmem:[%s375 + $0x1a8] sm:$0xff]
        %v515 = vld [vmem:[%s375 + $0x1b0] sm:$0xff]
        %v516 = vld [vmem:[%s375 + $0x1b8] sm:$0xff]
        %v517 = vld [vmem:[%s375 + $0x1c0] sm:$0xff]
        %v518 = vld [vmem:[%s375 + $0x1c8] sm:$0xff]
        %v519 = vld [vmem:[%s375 + $0x1d0] sm:$0xff]
        %v520 = vld [vmem:[%s375 + $0x1d8] sm:$0xff]
        %v521 = vld [vmem:[%s375 + $0x1e0] sm:$0xff]
        %v522 = vld [vmem:[%s375 + $0x1e8] sm:$0xff]
        %v523 = vld [vmem:[%s375 + $0x1f0] sm:$0xff]
        %v524 = vld [vmem:[%s375 + $0x1f8] sm:$0xff]
        %v525 = vld [vmem:[%s375 + $0x200] sm:$0xff]
        %v526 = vld [vmem:[%s375 + $0x208] sm:$0xff]
        %v527 = vld [vmem:[%s375 + $0x210] sm:$0xff]
        %v528 = vld [vmem:[%s375 + $0x218] sm:$0xff]
        %v529 = vld [vmem:[%s375 + $0x220] sm:$0xff]
        %v530 = vld [vmem:[%s375 + $0x228] sm:$0xff]
        %v531 = vld [vmem:[%s375 + $0x230] sm:$0xff]
        %v532 = vld [vmem:[%s375 + $0x238] sm:$0xff]
        %v533 = vld [vmem:[%s375 + $0x240] sm:$0xff]
        %v534 = vld [vmem:[%s375 + $0x248] sm:$0xff]
        %v535 = vld [vmem:[%s375 + $0x250] sm:$0xff]
        %v536 = vld [vmem:[%s375 + $0x258] sm:$0xff]
        %v537 = vld [vmem:[%s375 + $0x260] sm:$0xff]
        %v538 = vld [vmem:[%s375 + $0x268] sm:$0xff]
        %v539 = vld [vmem:[%s375 + $0x270] sm:$0xff]
        %v540 = vld [vmem:[%s375 + $0x278] sm:$0xff]
        %v541 = vld [vmem:[%s375 + $0x280] sm:$0xff]
        %v542 = vld [vmem:[%s375 + $0x288] sm:$0xff]
        %v543 = vld [vmem:[%s375 + $0x290] sm:$0xff]
        %v544 = vld [vmem:[%s375 + $0x298] sm:$0xff]
        %v545 = vld [vmem:[%s375 + $0x2a0] sm:$0xff]
        %v546 = vld [vmem:[%s375 + $0x2a8] sm:$0xff]
        %v547 = vld [vmem:[%s375 + $0x2b0] sm:$0xff]
        %v548 = vld [vmem:[%s375 + $0x2b8] sm:$0xff]
        %v549 = vld [vmem:[%s375 + $0x2c0] sm:$0xff]
        %v550 = vld [vmem:[%s375 + $0x2c8] sm:$0xff]
        %v551 = vld [vmem:[%s375 + $0x2d0] sm:$0xff]
        %v552 = vld [vmem:[%s375 + $0x2d8] sm:$0xff]
        %v553 = vld [vmem:[%s375 + $0x2e0] sm:$0xff]
        %v554 = vld [vmem:[%s375 + $0x2e8] sm:$0xff]
        %v555 = vld [vmem:[%s375 + $0x2f0] sm:$0xff]
        %v556 = vld [vmem:[%s375 + $0x2f8] sm:$0xff]
        %v557 = vld [vmem:[%s375 + $0x300] sm:$0xff]
        %v558 = vld [vmem:[%s375 + $0x308] sm:$0xff]
        %v559 = vld [vmem:[%s375 + $0x310] sm:$0xff]
        %v560 = vld [vmem:[%s375 + $0x318] sm:$0xff]
        %v561 = vld [vmem:[%s375 + $0x320] sm:$0xff]
        %v562 = vld [vmem:[%s375 + $0x328] sm:$0xff]
        %v563 = vld [vmem:[%s375 + $0x330] sm:$0xff]
        %v564 = vld [vmem:[%s375 + $0x338] sm:$0xff]
        %v565 = vld [vmem:[%s375 + $0x340] sm:$0xff]
        %v566 = vld [vmem:[%s375 + $0x348] sm:$0xff]
        %v567 = vld [vmem:[%s375 + $0x350] sm:$0xff]
        %v568 = vld [vmem:[%s375 + $0x358] sm:$0xff]
        %v569 = vld [vmem:[%s375 + $0x360] sm:$0xff]
        %v570 = vld [vmem:[%s375 + $0x368] sm:$0xff]
        %v571 = vld [vmem:[%s375 + $0x370] sm:$0xff]
        %v572 = vld [vmem:[%s375 + $0x378] sm:$0xff]
        %v573 = vld [vmem:[%s375 + $0x380] sm:$0xff]
        %v574 = vld [vmem:[%s375 + $0x388] sm:$0xff]
        %v575 = vld [vmem:[%s375 + $0x390] sm:$0xff]
        %v576 = vld [vmem:[%s375 + $0x398] sm:$0xff]
        %v577 = vld [vmem:[%s375 + $0x3a0] sm:$0xff]
        %v578 = vld [vmem:[%s375 + $0x3a8] sm:$0xff]
        %v579 = vld [vmem:[%s375 + $0x3b0] sm:$0xff]
        %v580 = vld [vmem:[%s375 + $0x3b8] sm:$0xff]
        %v581 = vld [vmem:[%s375 + $0x3c0] sm:$0xff]
        %v582 = vld [vmem:[%s375 + $0x3c8] sm:$0xff]
        %v583 = vld [vmem:[%s375 + $0x3d0] sm:$0xff]
        %v584 = vld [vmem:[%s375 + $0x3d8] sm:$0xff]
        %v585 = vld [vmem:[%s375 + $0x3e0] sm:$0xff]
        %v586 = vld [vmem:[%s375 + $0x3e8] sm:$0xff]
        %v587 = vld [vmem:[%s375 + $0x3f0] sm:$0xff]
        %v588 = vld [vmem:[%s375 + $0x3f8] sm:$0xff]
        %v589 = vld [vmem:[%s375 + $0x400] sm:$0xff]
        %v590 = vld [vmem:[%s375 + $0x408] sm:$0xff]
        %v591 = vld [vmem:[%s375 + $0x410] sm:$0xff]
        %v592 = vld [vmem:[%s375 + $0x418] sm:$0xff]
        %v593 = vld [vmem:[%s375 + $0x420] sm:$0xff]
        %v594 = vld [vmem:[%s375 + $0x428] sm:$0xff]
        %v595 = vld [vmem:[%s375 + $0x430] sm:$0xff]
        %v596 = vld [vmem:[%s375 + $0x438] sm:$0xff]
        %v597 = vld [vmem:[%s375 + $0x440] sm:$0xff]
        %v598 = vld [vmem:[%s375 + $0x448] sm:$0xff]
        %v599 = vld [vmem:[%s375 + $0x450] sm:$0xff]
        %v600 = vld [vmem:[%s375 + $0x458] sm:$0xff]
        %v601 = vld [vmem:[%s375 + $0x460] sm:$0xff]
        %v602 = vld [vmem:[%s375 + $0x468] sm:$0xff]
        %v603 = vld [vmem:[%s375 + $0x470] sm:$0xff]
        %v604 = vld [vmem:[%s375 + $0x478] sm:$0xff]
        %v605 = vld [vmem:[%s375 + $0x480] sm:$0xff]
        %v606 = vld [vmem:[%s375 + $0x488] sm:$0xff]
        %v607 = vld [vmem:[%s375 + $0x490] sm:$0xff]
        %v608 = vld [vmem:[%s375 + $0x498] sm:$0xff]
        %v609 = vld [vmem:[%s375 + $0x4a0] sm:$0xff]
        %v610 = vld [vmem:[%s375 + $0x4a8] sm:$0xff]
        %v611 = vld [vmem:[%s375 + $0x4b0] sm:$0xff]
        %v612 = vld [vmem:[%s375 + $0x4b8] sm:$0xff]
        %v613 = vld [vmem:[%s375 + $0x4c0] sm:$0xff]
        %v614 = vld [vmem:[%s375 + $0x4c8] sm:$0xff]
        %v615 = vld [vmem:[%s375 + $0x4d0] sm:$0xff]
        %v616 = vld [vmem:[%s375 + $0x4d8] sm:$0xff]
        %v617 = vld [vmem:[%s375 + $0x4e0] sm:$0xff]
        %v618 = vld [vmem:[%s375 + $0x4e8] sm:$0xff]
        %v619 = vld [vmem:[%s375 + $0x4f0] sm:$0xff]
        %v620 = vld [vmem:[%s375 + $0x4f8] sm:$0xff]
        %v621 = vld [vmem:[%s375 + $0x500] sm:$0xff]
        %v622 = vld [vmem:[%s375 + $0x508] sm:$0xff]
        %v623 = vld [vmem:[%s375 + $0x510] sm:$0xff]
        %v624 = vld [vmem:[%s375 + $0x518] sm:$0xff]
        %v625 = vld [vmem:[%s375 + $0x520] sm:$0xff]
        %v626 = vld [vmem:[%s375 + $0x528] sm:$0xff]
        %v627 = vld [vmem:[%s375 + $0x530] sm:$0xff]
        %v628 = vld [vmem:[%s375 + $0x538] sm:$0xff]
        %v629 = vld [vmem:[%s375 + $0x540] sm:$0xff]
        %v630 = vld [vmem:[%s375 + $0x548] sm:$0xff]
        %v631 = vld [vmem:[%s375 + $0x550] sm:$0xff]
        %v632 = vld [vmem:[%s375 + $0x558] sm:$0xff]
        %v633 = vld [vmem:[%s375 + $0x560] sm:$0xff]
        %v634 = vld [vmem:[%s375 + $0x568] sm:$0xff]
        %v635 = vld [vmem:[%s375 + $0x570] sm:$0xff]
        %v636 = vld [vmem:[%s375 + $0x578] sm:$0xff]
        %v637 = vld [vmem:[%s375 + $0x580] sm:$0xff]
        %v638 = vld [vmem:[%s375 + $0x588] sm:$0xff]
        %v639 = vld [vmem:[%s375 + $0x590] sm:$0xff]
        %v640 = vld [vmem:[%s375 + $0x598] sm:$0xff]
        %v641 = vld [vmem:[%s375 + $0x5a0] sm:$0xff]
        %v642 = vld [vmem:[%s375 + $0x5a8] sm:$0xff]
        %v643 = vld [vmem:[%s375 + $0x5b0] sm:$0xff]
        %v644 = vld [vmem:[%s375 + $0x5b8] sm:$0xff]
        %v645 = vld [vmem:[%s375 + $0x5c0] sm:$0xff]
        %v646 = vld [vmem:[%s375 + $0x5c8] sm:$0xff]
        %v647 = vld [vmem:[%s375 + $0x5d0] sm:$0xff]
        %v648 = vld [vmem:[%s375 + $0x5d8] sm:$0xff]
        %v649 = vld [vmem:[%s375 + $0x5e0] sm:$0xff]
        %v650 = vld [vmem:[%s375 + $0x5e8] sm:$0xff]
        %v651 = vld [vmem:[%s375 + $0x5f0] sm:$0xff]
        %v652 = vld [vmem:[%s375 + $0x5f8] sm:$0xff]
        %v653 = vld [vmem:[%s375 + $0x600] sm:$0xff]
        %v654 = vld [vmem:[%s375 + $0x608] sm:$0xff]
        %v655 = vld [vmem:[%s375 + $0x610] sm:$0xff]
        %v656 = vld [vmem:[%s375 + $0x618] sm:$0xff]
        %v657 = vld [vmem:[%s375 + $0x620] sm:$0xff]
        %v658 = vld [vmem:[%s375 + $0x628] sm:$0xff]
        %v659 = vld [vmem:[%s375 + $0x630] sm:$0xff]
        %v660 = vld [vmem:[%s375 + $0x638] sm:$0xff]
        %v661 = vld [vmem:[%s375 + $0x640] sm:$0xff]
        %v662 = vld [vmem:[%s375 + $0x648] sm:$0xff]
        %v663 = vld [vmem:[%s375 + $0x650] sm:$0xff]
        %v664 = vld [vmem:[%s375 + $0x658] sm:$0xff]
        %v665 = vld [vmem:[%s375 + $0x660] sm:$0xff]
        %v666 = vld [vmem:[%s375 + $0x668] sm:$0xff]
        %v667 = vld [vmem:[%s375 + $0x670] sm:$0xff]
        %v668 = vld [vmem:[%s375 + $0x678] sm:$0xff]
        %v669 = vld [vmem:[%s375 + $0x680] sm:$0xff]
        %v670 = vld [vmem:[%s375 + $0x688] sm:$0xff]
        %v671 = vld [vmem:[%s375 + $0x690] sm:$0xff]
        %v672 = vld [vmem:[%s375 + $0x698] sm:$0xff]
        %v673 = vld [vmem:[%s375 + $0x6a0] sm:$0xff]
        %v674 = vld [vmem:[%s375 + $0x6a8] sm:$0xff]
        %v675 = vld [vmem:[%s375 + $0x6b0] sm:$0xff]
        %v676 = vld [vmem:[%s375 + $0x6b8] sm:$0xff]
        %v677 = vld [vmem:[%s375 + $0x6c0] sm:$0xff]
        %v678 = vld [vmem:[%s375 + $0x6c8] sm:$0xff]
        %v679 = vld [vmem:[%s375 + $0x6d0] sm:$0xff]
        %v680 = vld [vmem:[%s375 + $0x6d8] sm:$0xff]
        %v681 = vld [vmem:[%s375 + $0x6e0] sm:$0xff]
        %v682 = vld [vmem:[%s375 + $0x6e8] sm:$0xff]
        %v683 = vld [vmem:[%s375 + $0x6f0] sm:$0xff]
        %v684 = vld [vmem:[%s375 + $0x6f8] sm:$0xff]
        %v685 = vld [vmem:[%s375 + $0x700] sm:$0xff]
        %v686 = vld [vmem:[%s375 + $0x708] sm:$0xff]
        %v687 = vld [vmem:[%s375 + $0x710] sm:$0xff]
        %v688 = vld [vmem:[%s375 + $0x718] sm:$0xff]
        %v689 = vld [vmem:[%s375 + $0x720] sm:$0xff]
        %v690 = vld [vmem:[%s375 + $0x728] sm:$0xff]
        %v691 = vld [vmem:[%s375 + $0x730] sm:$0xff]
        %v692 = vld [vmem:[%s375 + $0x738] sm:$0xff]
        %v693 = vld [vmem:[%s375 + $0x740] sm:$0xff]
        %v694 = vld [vmem:[%s375 + $0x748] sm:$0xff]
        %v695 = vld [vmem:[%s375 + $0x750] sm:$0xff]
        %v696 = vld [vmem:[%s375 + $0x758] sm:$0xff]
        %v697 = vld [vmem:[%s375 + $0x760] sm:$0xff]
        %v698 = vld [vmem:[%s375 + $0x768] sm:$0xff]
        %v699 = vld [vmem:[%s375 + $0x770] sm:$0xff]
        %v700 = vld [vmem:[%s375 + $0x778] sm:$0xff]
        %v701 = vld [vmem:[%s375 + $0x780] sm:$0xff]
        %v702 = vld [vmem:[%s375 + $0x788] sm:$0xff]
        %v703 = vld [vmem:[%s375 + $0x790] sm:$0xff]
        %v704 = vld [vmem:[%s375 + $0x798] sm:$0xff]
        %v705 = vld [vmem:[%s375 + $0x7a0] sm:$0xff]
        %v706 = vld [vmem:[%s375 + $0x7a8] sm:$0xff]
        %v707 = vld [vmem:[%s375 + $0x7b0] sm:$0xff]
        %v708 = vld [vmem:[%s375 + $0x7b8] sm:$0xff]
        %v709 = vld [vmem:[%s375 + $0x7c0] sm:$0xff]
        %v710 = vld [vmem:[%s375 + $0x7c8] sm:$0xff]
        %v711 = vld [vmem:[%s375 + $0x7d0] sm:$0xff]
        %v712 = vld [vmem:[%s375 + $0x7d8] sm:$0xff]
        %v713 = vld [vmem:[%s375 + $0x7e0] sm:$0xff]
        %v714 = vld [vmem:[%s375 + $0x7e8] sm:$0xff]
        %v715 = vld [vmem:[%s375 + $0x7f0] sm:$0xff]
        %v716 = vld [vmem:[%s375 + $0x7f8] sm:$0xff]
        %v717 = vld [vmem:[%s375 + $0x800] sm:$0xff]
        %v718 = vld [vmem:[%s375 + $0x808] sm:$0xff]
        %v719 = vld [vmem:[%s375 + $0x810] sm:$0xff]
        %v720 = vld [vmem:[%s375 + $0x818] sm:$0xff]
        %v721 = vld [vmem:[%s375 + $0x820] sm:$0xff]
        %v722 = vld [vmem:[%s375 + $0x828] sm:$0xff]
        %v723 = vld [vmem:[%s375 + $0x830] sm:$0xff]
        %v724 = vld [vmem:[%s375 + $0x838] sm:$0xff]
        %v725 = vld [vmem:[%s375 + $0x840] sm:$0xff]
        %v726 = vld [vmem:[%s375 + $0x848] sm:$0xff]
        %v727 = vld [vmem:[%s375 + $0x850] sm:$0xff]
        %v728 = vld [vmem:[%s375 + $0x858] sm:$0xff]
        %v729 = vld [vmem:[%s375 + $0x860] sm:$0xff]
        %v730 = vld [vmem:[%s375 + $0x868] sm:$0xff]
        %v731 = vld [vmem:[%s375 + $0x870] sm:$0xff]
        %v732 = vld [vmem:[%s375 + $0x878] sm:$0xff]
        %v733 = vld [vmem:[%s375 + $0x880] sm:$0xff]
        %v734 = vld [vmem:[%s375 + $0x888] sm:$0xff]
        %v735 = vld [vmem:[%s375 + $0x890] sm:$0xff]
        %v736 = vld [vmem:[%s375 + $0x898] sm:$0xff]
        %v737 = vld [vmem:[%s375 + $0x8a0] sm:$0xff]
        %v738 = vld [vmem:[%s375 + $0x8a8] sm:$0xff]
        %v739 = vld [vmem:[%s375 + $0x8b0] sm:$0xff]
        %v740 = vld [vmem:[%s375 + $0x8b8] sm:$0xff]
        %v741 = vld [vmem:[%s375 + $0x8c0] sm:$0xff]
        %v742 = vld [vmem:[%s375 + $0x8c8] sm:$0xff]
        %v743 = vld [vmem:[%s375 + $0x8d0] sm:$0xff]
        %v744 = vld [vmem:[%s375 + $0x8d8] sm:$0xff]
        %v745 = vld [vmem:[%s375 + $0x8e0] sm:$0xff]
        %v746 = vld [vmem:[%s375 + $0x8e8] sm:$0xff]
        %v747 = vld [vmem:[%s375 + $0x8f0] sm:$0xff]
        %v748 = vld [vmem:[%s375 + $0x8f8] sm:$0xff]
        %v749 = vunpack.c.l.s8.bf16 %v461
        %v750 = vunpack.c.l.s8.bf16 %v462
        %v751 = vunpack.c.l.s8.bf16 %v463
        %v752 = vunpack.c.l.s8.bf16 %v464
        %v753 = vunpack.c.h.s8.bf16 %v461
        %v754 = vunpack.c.h.s8.bf16 %v462
        %v755 = vunpack.c.h.s8.bf16 %v463
        %v756 = vunpack.c.h.s8.bf16 %v464
        %v757 = vunpack.c.l.s8.bf16 %v465
        %v758 = vunpack.c.l.s8.bf16 %v466
        %v759 = vunpack.c.l.s8.bf16 %v467
        %v760 = vunpack.c.l.s8.bf16 %v468
        %v761 = vunpack.c.h.s8.bf16 %v465
        %v762 = vunpack.c.h.s8.bf16 %v466
        %v763 = vunpack.c.h.s8.bf16 %v467
        %v764 = vunpack.c.h.s8.bf16 %v468
        %v765 = vunpack.c.l.s8.bf16 %v469
        %v766 = vunpack.c.l.s8.bf16 %v470
        %v767 = vunpack.c.l.s8.bf16 %v471
        %v768 = vunpack.c.l.s8.bf16 %v472
        %v769 = vunpack.c.h.s8.bf16 %v469
        %v770 = vunpack.c.h.s8.bf16 %v470
        %v771 = vunpack.c.h.s8.bf16 %v471
        %v772 = vunpack.c.h.s8.bf16 %v472
        %v773 = vunpack.c.l.s8.bf16 %v473
        %v774 = vunpack.c.l.s8.bf16 %v474
        %v775 = vunpack.c.l.s8.bf16 %v475
        %v776 = vunpack.c.l.s8.bf16 %v476
        %v777 = vunpack.c.h.s8.bf16 %v473
        %v778 = vunpack.c.h.s8.bf16 %v474
        %v779 = vunpack.c.h.s8.bf16 %v475
        %v780 = vunpack.c.h.s8.bf16 %v476
        %v781 = vunpack.c.l.s8.bf16 %v477
        %v782 = vunpack.c.l.s8.bf16 %v478
        %v783 = vunpack.c.l.s8.bf16 %v479
        %v784 = vunpack.c.l.s8.bf16 %v480
        %v785 = vunpack.c.h.s8.bf16 %v477
        %v786 = vunpack.c.h.s8.bf16 %v478
        %v787 = vunpack.c.h.s8.bf16 %v479
        %v788 = vunpack.c.h.s8.bf16 %v480
        %v789 = vunpack.c.l.s8.bf16 %v481
        %v790 = vunpack.c.l.s8.bf16 %v482
        %v791 = vunpack.c.l.s8.bf16 %v483
        %v792 = vunpack.c.l.s8.bf16 %v484
        %v793 = vunpack.c.h.s8.bf16 %v481
        %v794 = vunpack.c.h.s8.bf16 %v482
        %v795 = vunpack.c.h.s8.bf16 %v483
        %v796 = vunpack.c.h.s8.bf16 %v484
        %v797 = vunpack.c.l.s8.bf16 %v485
        %v798 = vunpack.c.l.s8.bf16 %v486
        %v799 = vunpack.c.l.s8.bf16 %v487
        %v800 = vunpack.c.l.s8.bf16 %v488
        %v801 = vunpack.c.h.s8.bf16 %v485
        %v802 = vunpack.c.h.s8.bf16 %v486
        %v803 = vunpack.c.h.s8.bf16 %v487
        %v804 = vunpack.c.h.s8.bf16 %v488
        %v805 = vunpack.c.l.s8.bf16 %v489
        %v806 = vunpack.c.l.s8.bf16 %v490
        %v807 = vunpack.c.l.s8.bf16 %v491
        %v808 = vunpack.c.l.s8.bf16 %v492
        %v809 = vunpack.c.h.s8.bf16 %v489
        %v810 = vunpack.c.h.s8.bf16 %v490
        %v811 = vunpack.c.h.s8.bf16 %v491
        %v812 = vunpack.c.h.s8.bf16 %v492
        %v813 = vunpack.c.l.s8.bf16 %v493
        %v814 = vunpack.c.l.s8.bf16 %v494
        %v815 = vunpack.c.l.s8.bf16 %v495
        %v816 = vunpack.c.l.s8.bf16 %v496
        %v817 = vunpack.c.h.s8.bf16 %v493
        %v818 = vunpack.c.h.s8.bf16 %v494
        %v819 = vunpack.c.h.s8.bf16 %v495
        %v820 = vunpack.c.h.s8.bf16 %v496
        %v821 = vunpack.c.l.s8.bf16 %v497
        %v822 = vunpack.c.l.s8.bf16 %v498
        %v823 = vunpack.c.l.s8.bf16 %v499
        %v824 = vunpack.c.l.s8.bf16 %v500
        %v825 = vunpack.c.h.s8.bf16 %v497
        %v826 = vunpack.c.h.s8.bf16 %v498
        %v827 = vunpack.c.h.s8.bf16 %v499
        %v828 = vunpack.c.h.s8.bf16 %v500
        %v829 = vunpack.c.l.s8.bf16 %v501
        %v830 = vunpack.c.l.s8.bf16 %v502
        %v831 = vunpack.c.l.s8.bf16 %v503
        %v832 = vunpack.c.l.s8.bf16 %v504
        %v833 = vunpack.c.h.s8.bf16 %v501
        %v834 = vunpack.c.h.s8.bf16 %v502
        %v835 = vunpack.c.h.s8.bf16 %v503
        %v836 = vunpack.c.h.s8.bf16 %v504
        %v837 = vunpack.c.l.s8.bf16 %v505
        %v838 = vunpack.c.l.s8.bf16 %v506
        %v839 = vunpack.c.l.s8.bf16 %v507
        %v840 = vunpack.c.l.s8.bf16 %v508
        %v841 = vunpack.c.h.s8.bf16 %v505
        %v842 = vunpack.c.h.s8.bf16 %v506
        %v843 = vunpack.c.h.s8.bf16 %v507
        %v844 = vunpack.c.h.s8.bf16 %v508
        %v845 = vunpack.c.l.s8.bf16 %v509
        %v846 = vunpack.c.l.s8.bf16 %v510
        %v847 = vunpack.c.l.s8.bf16 %v511
        %v848 = vunpack.c.l.s8.bf16 %v512
        %v849 = vunpack.c.h.s8.bf16 %v509
        %v850 = vunpack.c.h.s8.bf16 %v510
        %v851 = vunpack.c.h.s8.bf16 %v511
        %v852 = vunpack.c.h.s8.bf16 %v512
        %v853 = vunpack.c.l.s8.bf16 %v513
        %v854 = vunpack.c.l.s8.bf16 %v514
        %v855 = vunpack.c.l.s8.bf16 %v515
        %v856 = vunpack.c.l.s8.bf16 %v516
        %v857 = vunpack.c.h.s8.bf16 %v513
        %v858 = vunpack.c.h.s8.bf16 %v514
        %v859 = vunpack.c.h.s8.bf16 %v515
        %v860 = vunpack.c.h.s8.bf16 %v516
        %v861 = vunpack.c.l.s8.bf16 %v517
        %v862 = vunpack.c.l.s8.bf16 %v518
        %v863 = vunpack.c.l.s8.bf16 %v519
        %v864 = vunpack.c.l.s8.bf16 %v520
        %v865 = vunpack.c.h.s8.bf16 %v517
        %v866 = vunpack.c.h.s8.bf16 %v518
        %v867 = vunpack.c.h.s8.bf16 %v519
        %v868 = vunpack.c.h.s8.bf16 %v520
        %v869 = vunpack.c.l.s8.bf16 %v521
        %v870 = vunpack.c.l.s8.bf16 %v522
        %v871 = vunpack.c.l.s8.bf16 %v523
        %v872 = vunpack.c.l.s8.bf16 %v524
        %v873 = vunpack.c.h.s8.bf16 %v521
        %v874 = vunpack.c.h.s8.bf16 %v522
        %v875 = vunpack.c.h.s8.bf16 %v523
        %v876 = vunpack.c.h.s8.bf16 %v524
        %v877 = vunpack.c.l.s8.bf16 %v525
        %v878 = vunpack.c.l.s8.bf16 %v526
        %v879 = vunpack.c.l.s8.bf16 %v527
        %v880 = vunpack.c.l.s8.bf16 %v528
        %v881 = vunpack.c.h.s8.bf16 %v525
        %v882 = vunpack.c.h.s8.bf16 %v526
        %v883 = vunpack.c.h.s8.bf16 %v527
        %v884 = vunpack.c.h.s8.bf16 %v528
        %v885 = vunpack.c.l.s8.bf16 %v529
        %v886 = vunpack.c.l.s8.bf16 %v530
        %v887 = vunpack.c.l.s8.bf16 %v531
        %v888 = vunpack.c.l.s8.bf16 %v532
        %v889 = vunpack.c.h.s8.bf16 %v529
        %v890 = vunpack.c.h.s8.bf16 %v530
        %v891 = vunpack.c.h.s8.bf16 %v531
        %v892 = vunpack.c.h.s8.bf16 %v532
        %v893 = vunpack.c.l.s8.bf16 %v533
        %v894 = vunpack.c.l.s8.bf16 %v534
        %v895 = vunpack.c.l.s8.bf16 %v535
        %v896 = vunpack.c.l.s8.bf16 %v536
        %v897 = vunpack.c.h.s8.bf16 %v533
        %v898 = vunpack.c.h.s8.bf16 %v534
        %v899 = vunpack.c.h.s8.bf16 %v535
        %v900 = vunpack.c.h.s8.bf16 %v536
        %v901 = vunpack.c.l.s8.bf16 %v537
        %v902 = vunpack.c.l.s8.bf16 %v538
        %v903 = vunpack.c.l.s8.bf16 %v539
        %v904 = vunpack.c.l.s8.bf16 %v540
        %v905 = vunpack.c.h.s8.bf16 %v537
        %v906 = vunpack.c.h.s8.bf16 %v538
        %v907 = vunpack.c.h.s8.bf16 %v539
        %v908 = vunpack.c.h.s8.bf16 %v540
        %v909 = vunpack.c.l.s8.bf16 %v541
        %v910 = vunpack.c.l.s8.bf16 %v542
        %v911 = vunpack.c.l.s8.bf16 %v543
        %v912 = vunpack.c.l.s8.bf16 %v544
        %v913 = vunpack.c.h.s8.bf16 %v541
        %v914 = vunpack.c.h.s8.bf16 %v542
        %v915 = vunpack.c.h.s8.bf16 %v543
        %v916 = vunpack.c.h.s8.bf16 %v544
        %v917 = vunpack.c.l.s8.bf16 %v545
        %v918 = vunpack.c.l.s8.bf16 %v546
        %v919 = vunpack.c.l.s8.bf16 %v547
        %v920 = vunpack.c.l.s8.bf16 %v548
        %v921 = vunpack.c.h.s8.bf16 %v545
        %v922 = vunpack.c.h.s8.bf16 %v546
        %v923 = vunpack.c.h.s8.bf16 %v547
        %v924 = vunpack.c.h.s8.bf16 %v548
        %v925 = vunpack.c.l.s8.bf16 %v549
        %v926 = vunpack.c.l.s8.bf16 %v550
        %v927 = vunpack.c.l.s8.bf16 %v551
        %v928 = vunpack.c.l.s8.bf16 %v552
        %v929 = vunpack.c.h.s8.bf16 %v549
        %v930 = vunpack.c.h.s8.bf16 %v550
        %v931 = vunpack.c.h.s8.bf16 %v551
        %v932 = vunpack.c.h.s8.bf16 %v552
        %v933 = vunpack.c.l.s8.bf16 %v553
        %v934 = vunpack.c.l.s8.bf16 %v554
        %v935 = vunpack.c.l.s8.bf16 %v555
        %v936 = vunpack.c.l.s8.bf16 %v556
        %v937 = vunpack.c.h.s8.bf16 %v553
        %v938 = vunpack.c.h.s8.bf16 %v554
        %v939 = vunpack.c.h.s8.bf16 %v555
        %v940 = vunpack.c.h.s8.bf16 %v556
        %v941 = vunpack.c.l.s8.bf16 %v557
        %v942 = vunpack.c.l.s8.bf16 %v558
        %v943 = vunpack.c.l.s8.bf16 %v559
        %v944 = vunpack.c.l.s8.bf16 %v560
        %v945 = vunpack.c.h.s8.bf16 %v557
        %v946 = vunpack.c.h.s8.bf16 %v558
        %v947 = vunpack.c.h.s8.bf16 %v559
        %v948 = vunpack.c.h.s8.bf16 %v560
        %v949 = vunpack.c.l.s8.bf16 %v561
        %v950 = vunpack.c.l.s8.bf16 %v562
        %v951 = vunpack.c.l.s8.bf16 %v563
        %v952 = vunpack.c.l.s8.bf16 %v564
        %v953 = vunpack.c.h.s8.bf16 %v561
        %v954 = vunpack.c.h.s8.bf16 %v562
        %v955 = vunpack.c.h.s8.bf16 %v563
        %v956 = vunpack.c.h.s8.bf16 %v564
        %v957 = vunpack.c.l.s8.bf16 %v565
        %v958 = vunpack.c.l.s8.bf16 %v566
        %v959 = vunpack.c.l.s8.bf16 %v567
        %v960 = vunpack.c.l.s8.bf16 %v568
        %v961 = vunpack.c.h.s8.bf16 %v565
        %v962 = vunpack.c.h.s8.bf16 %v566
        %v963 = vunpack.c.h.s8.bf16 %v567
        %v964 = vunpack.c.h.s8.bf16 %v568
        %v965 = vunpack.c.l.s8.bf16 %v569
        %v966 = vunpack.c.l.s8.bf16 %v570
        %v967 = vunpack.c.l.s8.bf16 %v571
        %v968 = vunpack.c.l.s8.bf16 %v572
        %v969 = vunpack.c.h.s8.bf16 %v569
        %v970 = vunpack.c.h.s8.bf16 %v570
        %v971 = vunpack.c.h.s8.bf16 %v571
        %v972 = vunpack.c.h.s8.bf16 %v572
        %v973 = vunpack.c.l.s8.bf16 %v573
        %v974 = vunpack.c.l.s8.bf16 %v574
        %v975 = vunpack.c.l.s8.bf16 %v575
        %v976 = vunpack.c.l.s8.bf16 %v576
        %v977 = vunpack.c.h.s8.bf16 %v573
        %v978 = vunpack.c.h.s8.bf16 %v574
        %v979 = vunpack.c.h.s8.bf16 %v575
        %v980 = vunpack.c.h.s8.bf16 %v576
        %v981 = vunpack.c.l.s8.bf16 %v577
        %v982 = vunpack.c.l.s8.bf16 %v578
        %v983 = vunpack.c.l.s8.bf16 %v579
        %v984 = vunpack.c.l.s8.bf16 %v580
        %v985 = vunpack.c.h.s8.bf16 %v577
        %v986 = vunpack.c.h.s8.bf16 %v578
        %v987 = vunpack.c.h.s8.bf16 %v579
        %v988 = vunpack.c.h.s8.bf16 %v580
        %v989 = vunpack.c.l.s8.bf16 %v581
        %v990 = vunpack.c.l.s8.bf16 %v582
        %v991 = vunpack.c.l.s8.bf16 %v583
        %v992 = vunpack.c.l.s8.bf16 %v584
        %v993 = vunpack.c.h.s8.bf16 %v581
        %v994 = vunpack.c.h.s8.bf16 %v582
        %v995 = vunpack.c.h.s8.bf16 %v583
        %v996 = vunpack.c.h.s8.bf16 %v584
        %v997 = vunpack.c.l.s8.bf16 %v585
        %v998 = vunpack.c.l.s8.bf16 %v586
        %v999 = vunpack.c.l.s8.bf16 %v587
        %v1000 = vunpack.c.l.s8.bf16 %v588
        %v1001 = vunpack.c.h.s8.bf16 %v585
        %v1002 = vunpack.c.h.s8.bf16 %v586
        %v1003 = vunpack.c.h.s8.bf16 %v587
        %v1004 = vunpack.c.h.s8.bf16 %v588
        %v1005 = vunpack.c.l.s8.bf16 %v589
        %v1006 = vunpack.c.l.s8.bf16 %v590
        %v1007 = vunpack.c.l.s8.bf16 %v591
        %v1008 = vunpack.c.l.s8.bf16 %v592
        %v1009 = vunpack.c.h.s8.bf16 %v589
        %v1010 = vunpack.c.h.s8.bf16 %v590
        %v1011 = vunpack.c.h.s8.bf16 %v591
        %v1012 = vunpack.c.h.s8.bf16 %v592
        %v1013 = vunpack.c.l.s8.bf16 %v593
        %v1014 = vunpack.c.l.s8.bf16 %v594
        %v1015 = vunpack.c.l.s8.bf16 %v595
        %v1016 = vunpack.c.l.s8.bf16 %v596
        %v1017 = vunpack.c.h.s8.bf16 %v593
        %v1018 = vunpack.c.h.s8.bf16 %v594
        %v1019 = vunpack.c.h.s8.bf16 %v595
        %v1020 = vunpack.c.h.s8.bf16 %v596
        %v1021 = vunpack.c.l.s8.bf16 %v597
        %v1022 = vunpack.c.l.s8.bf16 %v598
        %v1023 = vunpack.c.l.s8.bf16 %v599
        %v1024 = vunpack.c.l.s8.bf16 %v600
        %v1025 = vunpack.c.h.s8.bf16 %v597
        %v1026 = vunpack.c.h.s8.bf16 %v598
        %v1027 = vunpack.c.h.s8.bf16 %v599
        %v1028 = vunpack.c.h.s8.bf16 %v600
        %v1029 = vunpack.c.l.s8.bf16 %v601
        %v1030 = vunpack.c.l.s8.bf16 %v602
        %v1031 = vunpack.c.l.s8.bf16 %v603
        %v1032 = vunpack.c.l.s8.bf16 %v604
        %v1033 = vunpack.c.h.s8.bf16 %v601
        %v1034 = vunpack.c.h.s8.bf16 %v602
        %v1035 = vunpack.c.h.s8.bf16 %v603
        %v1036 = vunpack.c.h.s8.bf16 %v604
        %v1037 = vunpack.c.l.s8.bf16 %v605
        %v1038 = vunpack.c.l.s8.bf16 %v606
        %v1039 = vunpack.c.l.s8.bf16 %v607
        %v1040 = vunpack.c.l.s8.bf16 %v608
        %v1041 = vunpack.c.h.s8.bf16 %v605
        %v1042 = vunpack.c.h.s8.bf16 %v606
        %v1043 = vunpack.c.h.s8.bf16 %v607
        %v1044 = vunpack.c.h.s8.bf16 %v608
        %v1045 = vunpack.c.l.s8.bf16 %v609
        %v1046 = vunpack.c.l.s8.bf16 %v610
        %v1047 = vunpack.c.l.s8.bf16 %v611
        %v1048 = vunpack.c.l.s8.bf16 %v612
        %v1049 = vunpack.c.h.s8.bf16 %v609
        %v1050 = vunpack.c.h.s8.bf16 %v610
        %v1051 = vunpack.c.h.s8.bf16 %v611
        %v1052 = vunpack.c.h.s8.bf16 %v612
        %v1053 = vunpack.c.l.s8.bf16 %v613
        %v1054 = vunpack.c.l.s8.bf16 %v614
        %v1055 = vunpack.c.l.s8.bf16 %v615
        %v1056 = vunpack.c.l.s8.bf16 %v616
        %v1057 = vunpack.c.h.s8.bf16 %v613
        %v1058 = vunpack.c.h.s8.bf16 %v614
        %v1059 = vunpack.c.h.s8.bf16 %v615
        %v1060 = vunpack.c.h.s8.bf16 %v616
        %v1061 = vunpack.c.l.s8.bf16 %v617
        %v1062 = vunpack.c.l.s8.bf16 %v618
        %v1063 = vunpack.c.l.s8.bf16 %v619
        %v1064 = vunpack.c.l.s8.bf16 %v620
        %v1065 = vunpack.c.h.s8.bf16 %v617
        %v1066 = vunpack.c.h.s8.bf16 %v618
        %v1067 = vunpack.c.h.s8.bf16 %v619
        %v1068 = vunpack.c.h.s8.bf16 %v620
        %v1069 = vunpack.c.l.s8.bf16 %v621
        %v1070 = vunpack.c.l.s8.bf16 %v622
        %v1071 = vunpack.c.l.s8.bf16 %v623
        %v1072 = vunpack.c.l.s8.bf16 %v624
        %v1073 = vunpack.c.h.s8.bf16 %v621
        %v1074 = vunpack.c.h.s8.bf16 %v622
        %v1075 = vunpack.c.h.s8.bf16 %v623
        %v1076 = vunpack.c.h.s8.bf16 %v624
        %v1077 = vunpack.c.l.s8.bf16 %v625
        %v1078 = vunpack.c.l.s8.bf16 %v626
        %v1079 = vunpack.c.l.s8.bf16 %v627
        %v1080 = vunpack.c.l.s8.bf16 %v628
        %v1081 = vunpack.c.h.s8.bf16 %v625
        %v1082 = vunpack.c.h.s8.bf16 %v626
        %v1083 = vunpack.c.h.s8.bf16 %v627
        %v1084 = vunpack.c.h.s8.bf16 %v628
        %v1085 = vunpack.c.l.s8.bf16 %v629
        %v1086 = vunpack.c.l.s8.bf16 %v630
        %v1087 = vunpack.c.l.s8.bf16 %v631
        %v1088 = vunpack.c.l.s8.bf16 %v632
        %v1089 = vunpack.c.h.s8.bf16 %v629
        %v1090 = vunpack.c.h.s8.bf16 %v630
        %v1091 = vunpack.c.h.s8.bf16 %v631
        %v1092 = vunpack.c.h.s8.bf16 %v632
        %v1093 = vunpack.c.l.s8.bf16 %v633
        %v1094 = vunpack.c.l.s8.bf16 %v634
        %v1095 = vunpack.c.l.s8.bf16 %v635
        %v1096 = vunpack.c.l.s8.bf16 %v636
        %v1097 = vunpack.c.h.s8.bf16 %v633
        %v1098 = vunpack.c.h.s8.bf16 %v634
        %v1099 = vunpack.c.h.s8.bf16 %v635
        %v1100 = vunpack.c.h.s8.bf16 %v636
        %v1101 = vunpack.c.l.s8.bf16 %v637
        %v1102 = vunpack.c.l.s8.bf16 %v638
        %v1103 = vunpack.c.l.s8.bf16 %v639
        %v1104 = vunpack.c.l.s8.bf16 %v640
        %v1105 = vunpack.c.h.s8.bf16 %v637
        %v1106 = vunpack.c.h.s8.bf16 %v638
        %v1107 = vunpack.c.h.s8.bf16 %v639
        %v1108 = vunpack.c.h.s8.bf16 %v640
        %v1109 = vunpack.c.l.s8.bf16 %v641
        %v1110 = vunpack.c.l.s8.bf16 %v642
        %v1111 = vunpack.c.l.s8.bf16 %v643
        %v1112 = vunpack.c.l.s8.bf16 %v644
        %v1113 = vunpack.c.h.s8.bf16 %v641
        %v1114 = vunpack.c.h.s8.bf16 %v642
        %v1115 = vunpack.c.h.s8.bf16 %v643
        %v1116 = vunpack.c.h.s8.bf16 %v644
        %v1117 = vunpack.c.l.s8.bf16 %v645
        %v1118 = vunpack.c.l.s8.bf16 %v646
        %v1119 = vunpack.c.l.s8.bf16 %v647
        %v1120 = vunpack.c.l.s8.bf16 %v648
        %v1121 = vunpack.c.h.s8.bf16 %v645
        %v1122 = vunpack.c.h.s8.bf16 %v646
        %v1123 = vunpack.c.h.s8.bf16 %v647
        %v1124 = vunpack.c.h.s8.bf16 %v648
        %v1125 = vunpack.c.l.s8.bf16 %v649
        %v1126 = vunpack.c.l.s8.bf16 %v650
        %v1127 = vunpack.c.l.s8.bf16 %v651
        %v1128 = vunpack.c.l.s8.bf16 %v652
        %v1129 = vunpack.c.h.s8.bf16 %v649
        %v1130 = vunpack.c.h.s8.bf16 %v650
        %v1131 = vunpack.c.h.s8.bf16 %v651
        %v1132 = vunpack.c.h.s8.bf16 %v652
        %v1133 = vunpack.c.l.s8.bf16 %v653
        %v1134 = vunpack.c.l.s8.bf16 %v654
        %v1135 = vunpack.c.l.s8.bf16 %v655
        %v1136 = vunpack.c.l.s8.bf16 %v656
        %v1137 = vunpack.c.h.s8.bf16 %v653
        %v1138 = vunpack.c.h.s8.bf16 %v654
        %v1139 = vunpack.c.h.s8.bf16 %v655
        %v1140 = vunpack.c.h.s8.bf16 %v656
        %v1141 = vunpack.c.l.s8.bf16 %v657
        %v1142 = vunpack.c.l.s8.bf16 %v658
        %v1143 = vunpack.c.l.s8.bf16 %v659
        %v1144 = vunpack.c.l.s8.bf16 %v660
        %v1145 = vunpack.c.h.s8.bf16 %v657
        %v1146 = vunpack.c.h.s8.bf16 %v658
        %v1147 = vunpack.c.h.s8.bf16 %v659
        %v1148 = vunpack.c.h.s8.bf16 %v660
        %v1149 = vunpack.c.l.s8.bf16 %v661
        %v1150 = vunpack.c.l.s8.bf16 %v662
        %v1151 = vunpack.c.l.s8.bf16 %v663
        %v1152 = vunpack.c.l.s8.bf16 %v664
        %v1153 = vunpack.c.h.s8.bf16 %v661
        %v1154 = vunpack.c.h.s8.bf16 %v662
        %v1155 = vunpack.c.h.s8.bf16 %v663
        %v1156 = vunpack.c.h.s8.bf16 %v664
        %v1157 = vunpack.c.l.s8.bf16 %v665
        %v1158 = vunpack.c.l.s8.bf16 %v666
        %v1159 = vunpack.c.l.s8.bf16 %v667
        %v1160 = vunpack.c.l.s8.bf16 %v668
        %v1161 = vunpack.c.h.s8.bf16 %v665
        %v1162 = vunpack.c.h.s8.bf16 %v666
        %v1163 = vunpack.c.h.s8.bf16 %v667
        %v1164 = vunpack.c.h.s8.bf16 %v668
        %v1165 = vunpack.c.l.s8.bf16 %v669
        %v1166 = vunpack.c.l.s8.bf16 %v670
        %v1167 = vunpack.c.l.s8.bf16 %v671
        %v1168 = vunpack.c.l.s8.bf16 %v672
        %v1169 = vunpack.c.h.s8.bf16 %v669
        %v1170 = vunpack.c.h.s8.bf16 %v670
        %v1171 = vunpack.c.h.s8.bf16 %v671
        %v1172 = vunpack.c.h.s8.bf16 %v672
        %v1173 = vunpack.c.l.s8.bf16 %v673
        %v1174 = vunpack.c.l.s8.bf16 %v674
        %v1175 = vunpack.c.l.s8.bf16 %v675
        %v1176 = vunpack.c.l.s8.bf16 %v676
        %v1177 = vunpack.c.h.s8.bf16 %v673
        %v1178 = vunpack.c.h.s8.bf16 %v674
        %v1179 = vunpack.c.h.s8.bf16 %v675
        %v1180 = vunpack.c.h.s8.bf16 %v676
        %v1181 = vunpack.c.l.s8.bf16 %v677
        %v1182 = vunpack.c.l.s8.bf16 %v678
        %v1183 = vunpack.c.l.s8.bf16 %v679
        %v1184 = vunpack.c.l.s8.bf16 %v680
        %v1185 = vunpack.c.h.s8.bf16 %v677
        %v1186 = vunpack.c.h.s8.bf16 %v678
        %v1187 = vunpack.c.h.s8.bf16 %v679
        %v1188 = vunpack.c.h.s8.bf16 %v680
        %v1189 = vunpack.c.l.s8.bf16 %v681
        %v1190 = vunpack.c.l.s8.bf16 %v682
        %v1191 = vunpack.c.l.s8.bf16 %v683
        %v1192 = vunpack.c.l.s8.bf16 %v684
        %v1193 = vunpack.c.h.s8.bf16 %v681
        %v1194 = vunpack.c.h.s8.bf16 %v682
        %v1195 = vunpack.c.h.s8.bf16 %v683
        %v1196 = vunpack.c.h.s8.bf16 %v684
        %v1197 = vunpack.c.l.s8.bf16 %v685
        %v1198 = vunpack.c.l.s8.bf16 %v686
        %v1199 = vunpack.c.l.s8.bf16 %v687
        %v1200 = vunpack.c.l.s8.bf16 %v688
        %v1201 = vunpack.c.h.s8.bf16 %v685
        %v1202 = vunpack.c.h.s8.bf16 %v686
        %v1203 = vunpack.c.h.s8.bf16 %v687
        %v1204 = vunpack.c.h.s8.bf16 %v688
        %v1205 = vunpack.c.l.s8.bf16 %v689
        %v1206 = vunpack.c.l.s8.bf16 %v690
        %v1207 = vunpack.c.l.s8.bf16 %v691
        %v1208 = vunpack.c.l.s8.bf16 %v692
        %v1209 = vunpack.c.h.s8.bf16 %v689
        %v1210 = vunpack.c.h.s8.bf16 %v690
        %v1211 = vunpack.c.h.s8.bf16 %v691
        %v1212 = vunpack.c.h.s8.bf16 %v692
        %v1213 = vunpack.c.l.s8.bf16 %v693
        %v1214 = vunpack.c.l.s8.bf16 %v694
        %v1215 = vunpack.c.l.s8.bf16 %v695
        %v1216 = vunpack.c.l.s8.bf16 %v696
        %v1217 = vunpack.c.h.s8.bf16 %v693
        %v1218 = vunpack.c.h.s8.bf16 %v694
        %v1219 = vunpack.c.h.s8.bf16 %v695
        %v1220 = vunpack.c.h.s8.bf16 %v696
        %v1221 = vunpack.c.l.s8.bf16 %v697
        %v1222 = vunpack.c.l.s8.bf16 %v698
        %v1223 = vunpack.c.l.s8.bf16 %v699
        %v1224 = vunpack.c.l.s8.bf16 %v700
        %v1225 = vunpack.c.h.s8.bf16 %v697
        %v1226 = vunpack.c.h.s8.bf16 %v698
        %v1227 = vunpack.c.h.s8.bf16 %v699
        %v1228 = vunpack.c.h.s8.bf16 %v700
        %v1229 = vunpack.c.l.s8.bf16 %v701
        %v1230 = vunpack.c.l.s8.bf16 %v702
        %v1231 = vunpack.c.l.s8.bf16 %v703
        %v1232 = vunpack.c.l.s8.bf16 %v704
        %v1233 = vunpack.c.h.s8.bf16 %v701
        %v1234 = vunpack.c.h.s8.bf16 %v702
        %v1235 = vunpack.c.h.s8.bf16 %v703
        %v1236 = vunpack.c.h.s8.bf16 %v704
        %v1237 = vunpack.c.l.s8.bf16 %v705
        %v1238 = vunpack.c.l.s8.bf16 %v706
        %v1239 = vunpack.c.l.s8.bf16 %v707
        %v1240 = vunpack.c.l.s8.bf16 %v708
        %v1241 = vunpack.c.h.s8.bf16 %v705
        %v1242 = vunpack.c.h.s8.bf16 %v706
        %v1243 = vunpack.c.h.s8.bf16 %v707
        %v1244 = vunpack.c.h.s8.bf16 %v708
        %v1245 = vunpack.c.l.s8.bf16 %v709
        %v1246 = vunpack.c.l.s8.bf16 %v710
        %v1247 = vunpack.c.l.s8.bf16 %v711
        %v1248 = vunpack.c.l.s8.bf16 %v712
        %v1249 = vunpack.c.h.s8.bf16 %v709
        %v1250 = vunpack.c.h.s8.bf16 %v710
        %v1251 = vunpack.c.h.s8.bf16 %v711
        %v1252 = vunpack.c.h.s8.bf16 %v712
        %v1253 = vunpack.c.l.s8.bf16 %v713
        %v1254 = vunpack.c.l.s8.bf16 %v714
        %v1255 = vunpack.c.l.s8.bf16 %v715
        %v1256 = vunpack.c.l.s8.bf16 %v716
        %v1257 = vunpack.c.h.s8.bf16 %v713
        %v1258 = vunpack.c.h.s8.bf16 %v714
        %v1259 = vunpack.c.h.s8.bf16 %v715
        %v1260 = vunpack.c.h.s8.bf16 %v716
        %v1261 = vunpack.c.l.s8.bf16 %v717
        %v1262 = vunpack.c.l.s8.bf16 %v718
        %v1263 = vunpack.c.l.s8.bf16 %v719
        %v1264 = vunpack.c.l.s8.bf16 %v720
        %v1265 = vunpack.c.h.s8.bf16 %v717
        %v1266 = vunpack.c.h.s8.bf16 %v718
        %v1267 = vunpack.c.h.s8.bf16 %v719
        %v1268 = vunpack.c.h.s8.bf16 %v720
        %v1269 = vunpack.c.l.s8.bf16 %v721
        %v1270 = vunpack.c.l.s8.bf16 %v722
        %v1271 = vunpack.c.l.s8.bf16 %v723
        %v1272 = vunpack.c.l.s8.bf16 %v724
        %v1273 = vunpack.c.h.s8.bf16 %v721
        %v1274 = vunpack.c.h.s8.bf16 %v722
        %v1275 = vunpack.c.h.s8.bf16 %v723
        %v1276 = vunpack.c.h.s8.bf16 %v724
        %v1277 = vunpack.c.l.s8.bf16 %v725
        %v1278 = vunpack.c.l.s8.bf16 %v726
        %v1279 = vunpack.c.l.s8.bf16 %v727
        %v1280 = vunpack.c.l.s8.bf16 %v728
        %v1281 = vunpack.c.h.s8.bf16 %v725
        %v1282 = vunpack.c.h.s8.bf16 %v726
        %v1283 = vunpack.c.h.s8.bf16 %v727
        %v1284 = vunpack.c.h.s8.bf16 %v728
        %v1285 = vunpack.c.l.s8.bf16 %v729
        %v1286 = vunpack.c.l.s8.bf16 %v730
        %v1287 = vunpack.c.l.s8.bf16 %v731
        %v1288 = vunpack.c.l.s8.bf16 %v732
        %v1289 = vunpack.c.h.s8.bf16 %v729
        %v1290 = vunpack.c.h.s8.bf16 %v730
        %v1291 = vunpack.c.h.s8.bf16 %v731
        %v1292 = vunpack.c.h.s8.bf16 %v732
        %v1293 = vunpack.c.l.s8.bf16 %v733
        %v1294 = vunpack.c.l.s8.bf16 %v734
        %v1295 = vunpack.c.l.s8.bf16 %v735
        %v1296 = vunpack.c.l.s8.bf16 %v736
        %v1297 = vunpack.c.h.s8.bf16 %v733
        %v1298 = vunpack.c.h.s8.bf16 %v734
        %v1299 = vunpack.c.h.s8.bf16 %v735
        %v1300 = vunpack.c.h.s8.bf16 %v736
        %v1301 = vunpack.c.l.s8.bf16 %v737
        %v1302 = vunpack.c.l.s8.bf16 %v738
        %v1303 = vunpack.c.l.s8.bf16 %v739
        %v1304 = vunpack.c.l.s8.bf16 %v740
        %v1305 = vunpack.c.h.s8.bf16 %v737
        %v1306 = vunpack.c.h.s8.bf16 %v738
        %v1307 = vunpack.c.h.s8.bf16 %v739
        %v1308 = vunpack.c.h.s8.bf16 %v740
        %v1309 = vunpack.c.l.s8.bf16 %v741
        %v1310 = vunpack.c.l.s8.bf16 %v742
        %v1311 = vunpack.c.l.s8.bf16 %v743
        %v1312 = vunpack.c.l.s8.bf16 %v744
        %v1313 = vunpack.c.h.s8.bf16 %v741
        %v1314 = vunpack.c.h.s8.bf16 %v742
        %v1315 = vunpack.c.h.s8.bf16 %v743
        %v1316 = vunpack.c.h.s8.bf16 %v744
        %v1317 = vunpack.c.l.s8.bf16 %v745
        %v1318 = vunpack.c.l.s8.bf16 %v746
        %v1319 = vunpack.c.l.s8.bf16 %v747
        %v1320 = vunpack.c.l.s8.bf16 %v748
        %v1321 = vunpack.c.h.s8.bf16 %v745
        %v1322 = vunpack.c.h.s8.bf16 %v746
        %v1323 = vunpack.c.h.s8.bf16 %v747
        %v1324 = vunpack.c.h.s8.bf16 %v748
        %v1325 = vld [vmem:[#allocation2] sm:$0xff]
        %v1326 = vld [vmem:[#allocation2 + $0x8] sm:$0xff]
        %v1327 = vld [vmem:[#allocation2 + $0x10] sm:$0xff]
        %v1328 = vld [vmem:[#allocation2 + $0x18] sm:$0xff]
        %v1329 = vld [vmem:[#allocation2 + $0x20] sm:$0xff]
        %v1330 = vld [vmem:[#allocation2 + $0x28] sm:$0xff]
        %v1331 = vld [vmem:[#allocation2 + $0x30] sm:$0xff]
        %v1332 = vld [vmem:[#allocation2 + $0x38] sm:$0xff]
        %v1333 = vld [vmem:[#allocation2 + $0x40] sm:$0xff]
        %v1334 = vld [vmem:[#allocation2 + $0x48] sm:$0xff]
        %v1335 = vld [vmem:[#allocation2 + $0x50] sm:$0xff]
        %v1336 = vld [vmem:[#allocation2 + $0x58] sm:$0xff]
        %v1337 = vld [vmem:[#allocation2 + $0x60] sm:$0xff]
        %v1338 = vld [vmem:[#allocation2 + $0x68] sm:$0xff]
        %v1339 = vld [vmem:[#allocation2 + $0x70] sm:$0xff]
        %v1340 = vld [vmem:[#allocation2 + $0x78] sm:$0xff]
        %v1341 = vld [vmem:[#allocation2 + $0x80] sm:$0xff]
        %v1342 = vld [vmem:[#allocation2 + $0x88] sm:$0xff]
        %v1343 = vld [vmem:[#allocation2 + $0x90] sm:$0xff]
        %v1344 = vld [vmem:[#allocation2 + $0x98] sm:$0xff]
        %v1345 = vld [vmem:[#allocation2 + $0xa0] sm:$0xff]
        %v1346 = vld [vmem:[#allocation2 + $0xa8] sm:$0xff]
        %v1347 = vld [vmem:[#allocation2 + $0xb0] sm:$0xff]
        %v1348 = vld [vmem:[#allocation2 + $0xb8] sm:$0xff]
        %v1349 = vld [vmem:[#allocation2 + $0xc0] sm:$0xff]
        %v1350 = vld [vmem:[#allocation2 + $0xc8] sm:$0xff]
        %v1351 = vld [vmem:[#allocation2 + $0xd0] sm:$0xff]
        %v1352 = vld [vmem:[#allocation2 + $0xd8] sm:$0xff]
        %v1353 = vld [vmem:[#allocation2 + $0xe0] sm:$0xff]
        %v1354 = vld [vmem:[#allocation2 + $0xe8] sm:$0xff]
        %v1355 = vld [vmem:[#allocation2 + $0xf0] sm:$0xff]
        %v1356 = vld [vmem:[#allocation2 + $0xf8] sm:$0xff]
        %v1357 = vld [vmem:[#allocation2 + $0x100] sm:$0xff]
        %v1358 = vld [vmem:[#allocation2 + $0x108] sm:$0xff]
        %v1359 = vld [vmem:[#allocation2 + $0x110] sm:$0xff]
        %v1360 = vld [vmem:[#allocation2 + $0x118] sm:$0xff]
        %v1361 = vld [vmem:[#allocation2 + $0x120] sm:$0xff]
        %v1362 = vld [vmem:[#allocation2 + $0x128] sm:$0xff]
        %v1363 = vld [vmem:[#allocation2 + $0x130] sm:$0xff]
        %v1364 = vld [vmem:[#allocation2 + $0x138] sm:$0xff]
        %v1365 = vld [vmem:[#allocation2 + $0x140] sm:$0xff]
        %v1366 = vld [vmem:[#allocation2 + $0x148] sm:$0xff]
        %v1367 = vld [vmem:[#allocation2 + $0x150] sm:$0xff]
        %v1368 = vld [vmem:[#allocation2 + $0x158] sm:$0xff]
        %v1369 = vld [vmem:[#allocation2 + $0x160] sm:$0xff]
        %v1370 = vld [vmem:[#allocation2 + $0x168] sm:$0xff]
        %v1371 = vld [vmem:[#allocation2 + $0x170] sm:$0xff]
        %v1372 = vld [vmem:[#allocation2 + $0x178] sm:$0xff]
        %v1373 = vld [vmem:[#allocation2 + $0x180] sm:$0xff]
        %v1374 = vld [vmem:[#allocation2 + $0x188] sm:$0xff]
        %v1375 = vld [vmem:[#allocation2 + $0x190] sm:$0xff]
        %v1376 = vld [vmem:[#allocation2 + $0x198] sm:$0xff]
        %v1377 = vld [vmem:[#allocation2 + $0x1a0] sm:$0xff]
        %v1378 = vld [vmem:[#allocation2 + $0x1a8] sm:$0xff]
        %v1379 = vld [vmem:[#allocation2 + $0x1b0] sm:$0xff]
        %v1380 = vld [vmem:[#allocation2 + $0x1b8] sm:$0xff]
        %v1381 = vld [vmem:[#allocation2 + $0x1c0] sm:$0xff]
        %v1382 = vld [vmem:[#allocation2 + $0x1c8] sm:$0xff]
        %v1383 = vld [vmem:[#allocation2 + $0x1d0] sm:$0xff]
        %v1384 = vld [vmem:[#allocation2 + $0x1d8] sm:$0xff]
        %v1385 = vld [vmem:[#allocation2 + $0x1e0] sm:$0xff]
        %v1386 = vld [vmem:[#allocation2 + $0x1e8] sm:$0xff]
        %v1387 = vld [vmem:[#allocation2 + $0x1f0] sm:$0xff]
        %v1388 = vld [vmem:[#allocation2 + $0x1f8] sm:$0xff]
        %v1389 = vld [vmem:[#allocation2 + $0x200] sm:$0xff]
        %v1390 = vld [vmem:[#allocation2 + $0x208] sm:$0xff]
        %v1391 = vld [vmem:[#allocation2 + $0x210] sm:$0xff]
        %v1392 = vld [vmem:[#allocation2 + $0x218] sm:$0xff]
        %v1393 = vld [vmem:[#allocation2 + $0x220] sm:$0xff]
        %v1394 = vld [vmem:[#allocation2 + $0x228] sm:$0xff]
        %v1395 = vld [vmem:[#allocation2 + $0x230] sm:$0xff]
        %v1396 = vld [vmem:[#allocation2 + $0x238] sm:$0xff]
        %v1397 = vld [vmem:[#allocation2 + $0x240] sm:$0xff]
        %v1398 = vld [vmem:[#allocation2 + $0x248] sm:$0xff]
        %v1399 = vld [vmem:[#allocation2 + $0x250] sm:$0xff]
        %v1400 = vld [vmem:[#allocation2 + $0x258] sm:$0xff]
        %v1401 = vld [vmem:[#allocation2 + $0x260] sm:$0xff]
        %v1402 = vld [vmem:[#allocation2 + $0x268] sm:$0xff]
        %v1403 = vld [vmem:[#allocation2 + $0x270] sm:$0xff]
        %v1404 = vld [vmem:[#allocation2 + $0x278] sm:$0xff]
        %v1405 = vld [vmem:[#allocation2 + $0x280] sm:$0xff]
        %v1406 = vld [vmem:[#allocation2 + $0x288] sm:$0xff]
        %v1407 = vld [vmem:[#allocation2 + $0x290] sm:$0xff]
        %v1408 = vld [vmem:[#allocation2 + $0x298] sm:$0xff]
        %v1409 = vld [vmem:[#allocation2 + $0x2a0] sm:$0xff]
        %v1410 = vld [vmem:[#allocation2 + $0x2a8] sm:$0xff]
        %v1411 = vld [vmem:[#allocation2 + $0x2b0] sm:$0xff]
        %v1412 = vld [vmem:[#allocation2 + $0x2b8] sm:$0xff]
        %v1413 = vld [vmem:[#allocation2 + $0x2c0] sm:$0xff]
        %v1414 = vld [vmem:[#allocation2 + $0x2c8] sm:$0xff]
        %v1505 = vunpack.c.l.b16 %v1325
        %v1506 = vunpack.c.h.b16 %v1325
        %v1507 = vunpack.c.l.b16 %v1326
        %v1508 = vunpack.c.h.b16 %v1326
        %v1509 = vunpack.c.l.b16 %v1327
        %v1510 = vunpack.c.h.b16 %v1327
        %v1511 = vunpack.c.l.b16 %v1328
        %v1512 = vunpack.c.h.b16 %v1328
        %v1513 = vunpack.c.l.b16 %v1329
        %v1514 = vunpack.c.h.b16 %v1329
        %v1515 = vunpack.c.l.b16 %v1330
        %v1516 = vunpack.c.h.b16 %v1330
        %v1517 = vunpack.c.l.b16 %v1331
        %v1518 = vunpack.c.h.b16 %v1331
        %v1519 = vunpack.c.l.b16 %v1332
        %v1520 = vunpack.c.h.b16 %v1332
        %v1521 = vunpack.c.l.b16 %v1333
        %v1522 = vunpack.c.h.b16 %v1333
        %v1523 = vunpack.c.l.b16 %v1334
        %v1524 = vunpack.c.h.b16 %v1334
        %v1525 = vunpack.c.l.b16 %v1335
        %v1526 = vunpack.c.h.b16 %v1335
        %v1527 = vunpack.c.l.b16 %v1336
        %v1528 = vunpack.c.h.b16 %v1336
        %v1529 = vunpack.c.l.b16 %v1337
        %v1530 = vunpack.c.h.b16 %v1337
        %v1531 = vunpack.c.l.b16 %v1338
        %v1532 = vunpack.c.h.b16 %v1338
        %v1533 = vunpack.c.l.b16 %v1339
        %v1534 = vunpack.c.h.b16 %v1339
        %v1535 = vunpack.c.l.b16 %v1340
        %v1536 = vunpack.c.h.b16 %v1340
        %v1537 = vunpack.c.l.b16 %v1341
        %v1538 = vunpack.c.h.b16 %v1341
        %v1539 = vunpack.c.l.b16 %v1342
        %v1540 = vunpack.c.h.b16 %v1342
        %v1541 = vunpack.c.l.b16 %v1343
        %v1542 = vunpack.c.h.b16 %v1343
        %v1543 = vunpack.c.l.b16 %v1344
        %v1544 = vunpack.c.h.b16 %v1344
        %v1545 = vunpack.c.l.b16 %v1345
        %v1546 = vunpack.c.h.b16 %v1345
        %v1547 = vunpack.c.l.b16 %v1346
        %v1548 = vunpack.c.h.b16 %v1346
        %v1549 = vunpack.c.l.b16 %v1347
        %v1550 = vunpack.c.h.b16 %v1347
        %v1551 = vunpack.c.l.b16 %v1348
        %v1552 = vunpack.c.h.b16 %v1348
        %v1553 = vunpack.c.l.b16 %v1349
        %v1554 = vunpack.c.h.b16 %v1349
        %v1555 = vunpack.c.l.b16 %v1350
        %v1556 = vunpack.c.h.b16 %v1350
        %v1557 = vunpack.c.l.b16 %v1351
        %v1558 = vunpack.c.h.b16 %v1351
        %v1559 = vunpack.c.l.b16 %v1352
        %v1560 = vunpack.c.h.b16 %v1352
        %v1561 = vunpack.c.l.b16 %v1353
        %v1562 = vunpack.c.h.b16 %v1353
        %v1563 = vunpack.c.l.b16 %v1354
        %v1564 = vunpack.c.h.b16 %v1354
        %v1565 = vunpack.c.l.b16 %v1355
        %v1566 = vunpack.c.h.b16 %v1355
        %v1567 = vunpack.c.l.b16 %v1356
        %v1568 = vunpack.c.h.b16 %v1356
        %v1569 = vunpack.c.l.b16 %v1357
        %v1570 = vunpack.c.h.b16 %v1357
        %v1571 = vunpack.c.l.b16 %v1358
        %v1572 = vunpack.c.h.b16 %v1358
        %v1573 = vunpack.c.l.b16 %v1359
        %v1574 = vunpack.c.h.b16 %v1359
        %v1575 = vunpack.c.l.b16 %v1360
        %v1576 = vunpack.c.h.b16 %v1360
        %v1577 = vunpack.c.l.b16 %v1361
        %v1578 = vunpack.c.h.b16 %v1361
        %v1579 = vunpack.c.l.b16 %v1362
        %v1580 = vunpack.c.h.b16 %v1362
        %v1581 = vunpack.c.l.b16 %v1363
        %v1582 = vunpack.c.h.b16 %v1363
        %v1583 = vunpack.c.l.b16 %v1364
        %v1584 = vunpack.c.h.b16 %v1364
        %v1585 = vunpack.c.l.b16 %v1365
        %v1586 = vunpack.c.h.b16 %v1365
        %v1587 = vunpack.c.l.b16 %v1366
        %v1588 = vunpack.c.h.b16 %v1366
        %v1589 = vunpack.c.l.b16 %v1367
        %v1590 = vunpack.c.h.b16 %v1367
        %v1591 = vunpack.c.l.b16 %v1368
        %v1592 = vunpack.c.h.b16 %v1368
        %v1593 = vunpack.c.l.b16 %v1369
        %v1594 = vunpack.c.h.b16 %v1369
        %v1595 = vunpack.c.l.b16 %v1370
        %v1596 = vunpack.c.h.b16 %v1370
        %v1597 = vunpack.c.l.b16 %v1371
        %v1598 = vunpack.c.h.b16 %v1371
        %v1599 = vunpack.c.l.b16 %v1372
        %v1600 = vunpack.c.h.b16 %v1372
        %v1601 = vunpack.c.l.b16 %v1373
        %v1602 = vunpack.c.h.b16 %v1373
        %v1603 = vunpack.c.l.b16 %v1374
        %v1604 = vunpack.c.h.b16 %v1374
        %v1605 = vunpack.c.l.b16 %v1375
        %v1606 = vunpack.c.h.b16 %v1375
        %v1607 = vunpack.c.l.b16 %v1376
        %v1608 = vunpack.c.h.b16 %v1376
        %v1609 = vunpack.c.l.b16 %v1377
        %v1610 = vunpack.c.h.b16 %v1377
        %v1611 = vunpack.c.l.b16 %v1378
        %v1612 = vunpack.c.h.b16 %v1378
        %v1613 = vunpack.c.l.b16 %v1379
        %v1614 = vunpack.c.h.b16 %v1379
        %v1615 = vunpack.c.l.b16 %v1380
        %v1616 = vunpack.c.h.b16 %v1380
        %v1617 = vunpack.c.l.b16 %v1381
        %v1618 = vunpack.c.h.b16 %v1381
        %v1619 = vunpack.c.l.b16 %v1382
        %v1620 = vunpack.c.h.b16 %v1382
        %v1621 = vunpack.c.l.b16 %v1383
        %v1622 = vunpack.c.h.b16 %v1383
        %v1623 = vunpack.c.l.b16 %v1384
        %v1624 = vunpack.c.h.b16 %v1384
        %v1625 = vunpack.c.l.b16 %v1385
        %v1626 = vunpack.c.h.b16 %v1385
        %v1627 = vunpack.c.l.b16 %v1386
        %v1628 = vunpack.c.h.b16 %v1386
        %v1629 = vunpack.c.l.b16 %v1387
        %v1630 = vunpack.c.h.b16 %v1387
        %v1631 = vunpack.c.l.b16 %v1388
        %v1632 = vunpack.c.h.b16 %v1388
        %v1633 = vunpack.c.l.b16 %v1389
        %v1634 = vunpack.c.h.b16 %v1389
        %v1635 = vunpack.c.l.b16 %v1390
        %v1636 = vunpack.c.h.b16 %v1390
        %v1637 = vunpack.c.l.b16 %v1391
        %v1638 = vunpack.c.h.b16 %v1391
        %v1639 = vunpack.c.l.b16 %v1392
        %v1640 = vunpack.c.h.b16 %v1392
        %v1641 = vunpack.c.l.b16 %v1393
        %v1642 = vunpack.c.h.b16 %v1393
        %v1643 = vunpack.c.l.b16 %v1394
        %v1644 = vunpack.c.h.b16 %v1394
        %v1645 = vunpack.c.l.b16 %v1395
        %v1646 = vunpack.c.h.b16 %v1395
        %v1647 = vunpack.c.l.b16 %v1396
        %v1648 = vunpack.c.h.b16 %v1396
        %v1649 = vunpack.c.l.b16 %v1397
        %v1650 = vunpack.c.h.b16 %v1397
        %v1651 = vunpack.c.l.b16 %v1398
        %v1652 = vunpack.c.h.b16 %v1398
        %v1653 = vunpack.c.l.b16 %v1399
        %v1654 = vunpack.c.h.b16 %v1399
        %v1655 = vunpack.c.l.b16 %v1400
        %v1656 = vunpack.c.h.b16 %v1400
        %v1657 = vunpack.c.l.b16 %v1401
        %v1658 = vunpack.c.h.b16 %v1401
        %v1659 = vunpack.c.l.b16 %v1402
        %v1660 = vunpack.c.h.b16 %v1402
        %v1661 = vunpack.c.l.b16 %v1403
        %v1662 = vunpack.c.h.b16 %v1403
        %v1663 = vunpack.c.l.b16 %v1404
        %v1664 = vunpack.c.h.b16 %v1404
        %v1665 = vunpack.c.l.b16 %v1405
        %v1666 = vunpack.c.h.b16 %v1405
        %v1667 = vunpack.c.l.b16 %v1406
        %v1668 = vunpack.c.h.b16 %v1406
        %v1669 = vunpack.c.l.b16 %v1407
        %v1670 = vunpack.c.h.b16 %v1407
        %v1671 = vunpack.c.l.b16 %v1408
        %v1672 = vunpack.c.h.b16 %v1408
        %v1673 = vunpack.c.l.b16 %v1409
        %v1674 = vunpack.c.h.b16 %v1409
        %v1675 = vunpack.c.l.b16 %v1410
        %v1676 = vunpack.c.h.b16 %v1410
        %v1677 = vunpack.c.l.b16 %v1411
        %v1678 = vunpack.c.h.b16 %v1411
        %v1679 = vunpack.c.l.b16 %v1412
        %v1680 = vunpack.c.h.b16 %v1412
        %v1681 = vunpack.c.l.b16 %v1413
        %v1682 = vunpack.c.h.b16 %v1413
        %v1683 = vunpack.c.l.b16 %v1414
        %v1684 = vunpack.c.h.b16 %v1414
        %v1685 = vpack.c.b16 %v1523, %v1505
        %v1686 = vpack.c.b16 %v1524, %v1506
        %v1687 = vpack.c.b16 %v1525, %v1507
        %v1688 = vpack.c.b16 %v1526, %v1508
        %v1689 = vpack.c.b16 %v1527, %v1509
        %v1690 = vpack.c.b16 %v1528, %v1510
        %v1691 = vpack.c.b16 %v1529, %v1511
        %v1692 = vpack.c.b16 %v1530, %v1512
        %v1693 = vpack.c.b16 %v1531, %v1513
        %v1694 = vpack.c.b16 %v1532, %v1514
        %v1695 = vpack.c.b16 %v1533, %v1515
        %v1696 = vpack.c.b16 %v1534, %v1516
        %v1697 = vpack.c.b16 %v1535, %v1517
        %v1698 = vpack.c.b16 %v1536, %v1518
        %v1699 = vpack.c.b16 %v1537, %v1519
        %v1700 = vpack.c.b16 %v1538, %v1520
        %v1701 = vpack.c.b16 %v1539, %v1521
        %v1702 = vpack.c.b16 %v1540, %v1522
        %v1703 = vpack.c.b16 %v1559, %v1541
        %v1704 = vpack.c.b16 %v1560, %v1542
        %v1705 = vpack.c.b16 %v1561, %v1543
        %v1706 = vpack.c.b16 %v1562, %v1544
        %v1707 = vpack.c.b16 %v1563, %v1545
        %v1708 = vpack.c.b16 %v1564, %v1546
        %v1709 = vpack.c.b16 %v1565, %v1547
        %v1710 = vpack.c.b16 %v1566, %v1548
        %v1711 = vpack.c.b16 %v1567, %v1549
        %v1712 = vpack.c.b16 %v1568, %v1550
        %v1713 = vpack.c.b16 %v1569, %v1551
        %v1714 = vpack.c.b16 %v1570, %v1552
        %v1715 = vpack.c.b16 %v1571, %v1553
        %v1716 = vpack.c.b16 %v1572, %v1554
        %v1717 = vpack.c.b16 %v1573, %v1555
        %v1718 = vpack.c.b16 %v1574, %v1556
        %v1719 = vpack.c.b16 %v1575, %v1557
        %v1720 = vpack.c.b16 %v1576, %v1558
        %v1721 = vpack.c.b16 %v1595, %v1577
        %v1722 = vpack.c.b16 %v1596, %v1578
        %v1723 = vpack.c.b16 %v1597, %v1579
        %v1724 = vpack.c.b16 %v1598, %v1580
        %v1725 = vpack.c.b16 %v1599, %v1581
        %v1726 = vpack.c.b16 %v1600, %v1582
        %v1727 = vpack.c.b16 %v1601, %v1583
        %v1728 = vpack.c.b16 %v1602, %v1584
        %v1729 = vpack.c.b16 %v1603, %v1585
        %v1730 = vpack.c.b16 %v1604, %v1586
        %v1731 = vpack.c.b16 %v1605, %v1587
        %v1732 = vpack.c.b16 %v1606, %v1588
        %v1733 = vpack.c.b16 %v1607, %v1589
        %v1734 = vpack.c.b16 %v1608, %v1590
        %v1735 = vpack.c.b16 %v1609, %v1591
        %v1736 = vpack.c.b16 %v1610, %v1592
        %v1737 = vpack.c.b16 %v1611, %v1593
        %v1738 = vpack.c.b16 %v1612, %v1594
        %v1739 = vpack.c.b16 %v1631, %v1613
        %v1740 = vpack.c.b16 %v1632, %v1614
        %v1741 = vpack.c.b16 %v1633, %v1615
        %v1742 = vpack.c.b16 %v1634, %v1616
        %v1743 = vpack.c.b16 %v1635, %v1617
        %v1744 = vpack.c.b16 %v1636, %v1618
        %v1745 = vpack.c.b16 %v1637, %v1619
        %v1746 = vpack.c.b16 %v1638, %v1620
        %v1747 = vpack.c.b16 %v1639, %v1621
        %v1748 = vpack.c.b16 %v1640, %v1622
        %v1749 = vpack.c.b16 %v1641, %v1623
        %v1750 = vpack.c.b16 %v1642, %v1624
        %v1751 = vpack.c.b16 %v1643, %v1625
        %v1752 = vpack.c.b16 %v1644, %v1626
        %v1753 = vpack.c.b16 %v1645, %v1627
        %v1754 = vpack.c.b16 %v1646, %v1628
        %v1755 = vpack.c.b16 %v1647, %v1629
        %v1756 = vpack.c.b16 %v1648, %v1630
        %v1757 = vpack.c.b16 %v1667, %v1649
        %v1758 = vpack.c.b16 %v1668, %v1650
        %v1759 = vpack.c.b16 %v1669, %v1651
        %v1760 = vpack.c.b16 %v1670, %v1652
        %v1761 = vpack.c.b16 %v1671, %v1653
        %v1762 = vpack.c.b16 %v1672, %v1654
        %v1763 = vpack.c.b16 %v1673, %v1655
        %v1764 = vpack.c.b16 %v1674, %v1656
        %v1765 = vpack.c.b16 %v1675, %v1657
        %v1766 = vpack.c.b16 %v1676, %v1658
        %v1767 = vpack.c.b16 %v1677, %v1659
        %v1768 = vpack.c.b16 %v1678, %v1660
        %v1769 = vpack.c.b16 %v1679, %v1661
        %v1770 = vpack.c.b16 %v1680, %v1662
        %v1771 = vpack.c.b16 %v1681, %v1663
        %v1772 = vpack.c.b16 %v1682, %v1664
        %v1773 = vpack.c.b16 %v1683, %v1665
        %v1774 = vpack.c.b16 %v1684, %v1666
        %1865 = vmatprep.subr.bf16.mxu0 %v750
        %1866 = vmatpush1.bf16.msra.mxu0 %v749
        %1867 = vmatprep.subr.bf16.mxu0 %v754
        %1868 = vmatpush1.bf16.msra.mxu0 %v753
        %1869 = vmatprep.subr.bf16.mxu0 %v758
        %1870 = vmatpush1.bf16.msra.mxu0 %v757
        %1871 = vmatprep.subr.bf16.mxu0 %v762
        %1872 = vmatpush1.bf16.msra.mxu0 %v761
        %1873 = vmatprep.subr.bf16.mxu0 %v766
        %1874 = vmatpush1.bf16.msra.mxu0 %v765
        %1875 = vmatprep.subr.bf16.mxu0 %v770
        %1876 = vmatpush1.bf16.msra.mxu0 %v769
        %1877 = vmatprep.subr.bf16.mxu0 %v774
        %1878 = vmatpush1.bf16.msra.mxu0 %v773
        %1879 = vmatprep.subr.bf16.mxu0 %v778
        %1880 = vmatpush1.bf16.msra.mxu0 %v777
        %1881 = vmatprep.subr.bf16.mxu0 %v782
        %1882 = vmatpush1.bf16.msra.mxu0 %v781
        %1883 = vmatprep.subr.bf16.mxu0 %v786
        %1884 = vmatpush1.bf16.msra.mxu0 %v785
        %1885 = vmatprep.subr.bf16.mxu0 %v790
        %1886 = vmatpush1.bf16.msra.mxu0 %v789
        %1887 = vmatprep.subr.bf16.mxu0 %v794
        %1888 = vmatpush1.bf16.msra.mxu0 %v793
        %1889 = vmatprep.subr.bf16.mxu0 %v798
        %1890 = vmatpush1.bf16.msra.mxu0 %v797
        %1891 = vmatprep.subr.bf16.mxu0 %v802
        %1892 = vmatpush1.bf16.msra.mxu0 %v801
        %1893 = vmatprep.subr.bf16.mxu0 %v806
        %1894 = vmatpush1.bf16.msra.mxu0 %v805
        %1895 = vmatprep.subr.bf16.mxu0 %v810
        %1896 = vmatpush1.bf16.msra.mxu0 %v809
        %1897 = vmatprep.mubr.bf16.mxu0 %v1686
        %1898 = vmatmul.mubr.bf16.gmra.mrb[0].mxu0 %v1685
        %v1899 = vpop.f32.mrb[0].mxu0
        %v1900 = vadd.f32 0.0, %v1899
        %v1901 = vpop.f32.mrb[0].mxu0
        %v1902 = vadd.f32 0.0, %v1901
        %v1903 = vpop.f32.mrb[0].mxu0
        %v1904 = vadd.f32 0.0, %v1903
        %v1905 = vpop.f32.mrb[0].mxu0
        %v1906 = vadd.f32 0.0, %v1905
        %1907 = vmatprep.mubr.bf16.mxu0 %v1704
        %1908 = vmatmul.mubr.bf16.gmra.mrb[0].mxu0 %v1703
        %v1909 = vpop.f32.mrb[0].mxu0
        %v1910 = vadd.f32 0.0, %v1909
        %v1911 = vpop.f32.mrb[0].mxu0
        %v1912 = vadd.f32 0.0, %v1911
        %v1913 = vpop.f32.mrb[0].mxu0
        %v1914 = vadd.f32 0.0, %v1913
        %v1915 = vpop.f32.mrb[0].mxu0
        %v1916 = vadd.f32 0.0, %v1915
        %1917 = vmatprep.mubr.bf16.mxu0 %v1722
        %1918 = vmatmul.mubr.bf16.gmra.mrb[0].mxu0 %v1721
        %v1919 = vpop.f32.mrb[0].mxu0
        %v1920 = vadd.f32 0.0, %v1919
        %v1921 = vpop.f32.mrb[0].mxu0
        %v1922 = vadd.f32 0.0, %v1921
        %v1923 = vpop.f32.mrb[0].mxu0
        %v1924 = vadd.f32 0.0, %v1923
        %v1925 = vpop.f32.mrb[0].mxu0
        %v1926 = vadd.f32 0.0, %v1925
        %1927 = vmatprep.mubr.bf16.mxu0 %v1740
        %1928 = vmatmul.mubr.bf16.gmra.mrb[0].mxu0 %v1739
        %v1929 = vpop.f32.mrb[0].mxu0
        %v1930 = vadd.f32 0.0, %v1929
        %v1931 = vpop.f32.mrb[0].mxu0
        %v1932 = vadd.f32 0.0, %v1931
        %v1933 = vpop.f32.mrb[0].mxu0
        %v1934 = vadd.f32 0.0, %v1933
        %v1935 = vpop.f32.mrb[0].mxu0
        %v1936 = vadd.f32 0.0, %v1935
        %1937 = vmatprep.mubr.bf16.mxu0 %v1758
        %1938 = vmatmul.mubr.bf16.gmra.mrb[0].mxu0 %v1757
        %v1939 = vpop.f32.mrb[0].mxu0
        %v1940 = vadd.f32 0.0, %v1939
        %v1941 = vpop.f32.mrb[0].mxu0
        %v1942 = vadd.f32 0.0, %v1941
        %v1943 = vpop.f32.mrb[0].mxu0
        %v1944 = vadd.f32 0.0, %v1943
        %v1945 = vpop.f32.mrb[0].mxu0
        %v1946 = vadd.f32 0.0, %v1945
        %1947 = vdwg.mxu0
        %1948 = vmatprep.subr.bf16.mxu0 %v814
        %1949 = vmatpush1.bf16.msra.mxu0 %v813
        %1950 = vmatprep.subr.bf16.mxu0 %v818
        %1951 = vmatpush1.bf16.msra.mxu0 %v817
        %1952 = vmatprep.subr.bf16.mxu0 %v822
        %1953 = vmatpush1.bf16.msra.mxu0 %v821
        %1954 = vmatprep.subr.bf16.mxu0 %v826
        %1955 = vmatpush1.bf16.msra.mxu0 %v825
        %1956 = vmatprep.subr.bf16.mxu0 %v830
        %1957 = vmatpush1.bf16.msra.mxu0 %v829
        %1958 = vmatprep.subr.bf16.mxu0 %v834
        %1959 = vmatpush1.bf16.msra.mxu0 %v833
        %1960 = vmatprep.subr.bf16.mxu0 %v838
        %1961 = vmatpush1.bf16.msra.mxu0 %v837
        %1962 = vmatprep.subr.bf16.mxu0 %v842
        %1963 = vmatpush1.bf16.msra.mxu0 %v841
        %1964 = vmatprep.subr.bf16.mxu0 %v846
        %1965 = vmatpush1.bf16.msra.mxu0 %v845
        %1966 = vmatprep.subr.bf16.mxu0 %v850
        %1967 = vmatpush1.bf16.msra.mxu0 %v849
        %1968 = vmatprep.subr.bf16.mxu0 %v854
        %1969 = vmatpush1.bf16.msra.mxu0 %v853
        %1970 = vmatprep.subr.bf16.mxu0 %v858
        %1971 = vmatpush1.bf16.msra.mxu0 %v857
        %1972 = vmatprep.subr.bf16.mxu0 %v862
        %1973 = vmatpush1.bf16.msra.mxu0 %v861
        %1974 = vmatprep.subr.bf16.mxu0 %v866
        %1975 = vmatpush1.bf16.msra.mxu0 %v865
        %1976 = vmatprep.subr.bf16.mxu0 %v870
        %1977 = vmatpush1.bf16.msra.mxu0 %v869
        %1978 = vmatprep.subr.bf16.mxu0 %v874
        %1979 = vmatpush1.bf16.msra.mxu0 %v873
        %1980 = vmatprep.mubr.bf16.mxu0 %v1688
        %1981 = vmatmul.mubr.bf16.gmra.mrb[0].mxu0 %v1687
        %v1982 = vpop.f32.mrb[0].mxu0
        %v1983 = vadd.f32 %v1900, %v1982
        %v1984 = vpop.f32.mrb[0].mxu0
        %v1985 = vadd.f32 %v1902, %v1984
        %v1986 = vpop.f32.mrb[0].mxu0
        %v1987 = vadd.f32 %v1904, %v1986
        %v1988 = vpop.f32.mrb[0].mxu0
        %v1989 = vadd.f32 %v1906, %v1988
        %1990 = vmatprep.mubr.bf16.mxu0 %v1706
        %1991 = vmatmul.mubr.bf16.gmra.mrb[0].mxu0 %v1705
        %v1992 = vpop.f32.mrb[0].mxu0
        %v1993 = vadd.f32 %v1910, %v1992
        %v1994 = vpop.f32.mrb[0].mxu0
        %v1995 = vadd.f32 %v1912, %v1994
        %v1996 = vpop.f32.mrb[0].mxu0
        %v1997 = vadd.f32 %v1914, %v1996
        %v1998 = vpop.f32.mrb[0].mxu0
        %v1999 = vadd.f32 %v1916, %v1998
        %2000 = vmatprep.mubr.bf16.mxu0 %v1724
        %2001 = vmatmul.mubr.bf16.gmra.mrb[0].mxu0 %v1723
        %v2002 = vpop.f32.mrb[0].mxu0
        %v2003 = vadd.f32 %v1920, %v2002
        %v2004 = vpop.f32.mrb[0].mxu0
        %v2005 = vadd.f32 %v1922, %v2004
        %v2006 = vpop.f32.mrb[0].mxu0
        %v2007 = vadd.f32 %v1924, %v2006
        %v2008 = vpop.f32.mrb[0].mxu0
        %v2009 = vadd.f32 %v1926, %v2008
        %2010 = vmatprep.mubr.bf16.mxu0 %v1742
        %2011 = vmatmul.mubr.bf16.gmra.mrb[0].mxu0 %v1741
        %v2012 = vpop.f32.mrb[0].mxu0
        %v2013 = vadd.f32 %v1930, %v2012
        %v2014 = vpop.f32.mrb[0].mxu0
        %v2015 = vadd.f32 %v1932, %v2014
        %v2016 = vpop.f32.mrb[0].mxu0
        %v2017 = vadd.f32 %v1934, %v2016
        %v2018 = vpop.f32.mrb[0].mxu0
        %v2019 = vadd.f32 %v1936, %v2018
        %2020 = vmatprep.mubr.bf16.mxu0 %v1760
        %2021 = vmatmul.mubr.bf16.gmra.mrb[0].mxu0 %v1759
        %v2022 = vpop.f32.mrb[0].mxu0
        %v2023 = vadd.f32 %v1940, %v2022
        %v2024 = vpop.f32.mrb[0].mxu0
        %v2025 = vadd.f32 %v1942, %v2024
        %v2026 = vpop.f32.mrb[0].mxu0
        %v2027 = vadd.f32 %v1944, %v2026
        %v2028 = vpop.f32.mrb[0].mxu0
        %v2029 = vadd.f32 %v1946, %v2028
        %2030 = vdwg.mxu0
        %2031 = vmatprep.subr.bf16.mxu0 %v878
        %2032 = vmatpush1.bf16.msra.mxu0 %v877
        %2033 = vmatprep.subr.bf16.mxu0 %v882
        %2034 = vmatpush1.bf16.msra.mxu0 %v881
        %2035 = vmatprep.subr.bf16.mxu0 %v886
        %2036 = vmatpush1.bf16.msra.mxu0 %v885
        %2037 = vmatprep.subr.bf16.mxu0 %v890
        %2038 = vmatpush1.bf16.msra.mxu0 %v889
        %2039 = vmatprep.subr.bf16.mxu0 %v894
        %2040 = vmatpush1.bf16.msra.mxu0 %v893
        %2041 = vmatprep.subr.bf16.mxu0 %v898
        %2042 = vmatpush1.bf16.msra.mxu0 %v897
        %2043 = vmatprep.subr.bf16.mxu0 %v902
        %2044 = vmatpush1.bf16.msra.mxu0 %v901
        %2045 = vmatprep.subr.bf16.mxu0 %v906
        %2046 = vmatpush1.bf16.msra.mxu0 %v905
        %2047 = vmatprep.subr.bf16.mxu0 %v910
        %2048 = vmatpush1.bf16.msra.mxu0 %v909
        %2049 = vmatprep.subr.bf16.mxu0 %v914
        %2050 = vmatpush1.bf16.msra.mxu0 %v913
        %2051 = vmatprep.subr.bf16.mxu0 %v918
        %2052 = vmatpush1.bf16.msra.mxu0 %v917
        %2053 = vmatprep.subr.bf16.mxu0 %v922
        %2054 = vmatpush1.bf16.msra.mxu0 %v921
        %2055 = vmatprep.subr.bf16.mxu0 %v926
        %2056 = vmatpush1.bf16.msra.mxu0 %v925
        %2057 = vmatprep.subr.bf16.mxu0 %v930
        %2058 = vmatpush1.bf16.msra.mxu0 %v929
        %2059 = vmatprep.subr.bf16.mxu0 %v934
        %2060 = vmatpush1.bf16.msra.mxu0 %v933
        %2061 = vmatprep.subr.bf16.mxu0 %v938
        %2062 = vmatpush1.bf16.msra.mxu0 %v937
        %2063 = vmatprep.mubr.bf16.mxu0 %v1690
        %2064 = vmatmul.mubr.bf16.gmra.mrb[0].mxu0 %v1689
        %v2065 = vpop.f32.mrb[0].mxu0
        %v2066 = vadd.f32 %v1983, %v2065
        %v2067 = vpop.f32.mrb[0].mxu0
        %v2068 = vadd.f32 %v1985, %v2067
        %v2069 = vpop.f32.mrb[0].mxu0
        %v2070 = vadd.f32 %v1987, %v2069
        %v2071 = vpop.f32.mrb[0].mxu0
        %v2072 = vadd.f32 %v1989, %v2071
        %2073 = vmatprep.mubr.bf16.mxu0 %v1708
        %2074 = vmatmul.mubr.bf16.gmra.mrb[0].mxu0 %v1707
        %v2075 = vpop.f32.mrb[0].mxu0
        %v2076 = vadd.f32 %v1993, %v2075
        %v2077 = vpop.f32.mrb[0].mxu0
        %v2078 = vadd.f32 %v1995, %v2077
        %v2079 = vpop.f32.mrb[0].mxu0
        %v2080 = vadd.f32 %v1997, %v2079
        %v2081 = vpop.f32.mrb[0].mxu0
        %v2082 = vadd.f32 %v1999, %v2081
        %2083 = vmatprep.mubr.bf16.mxu0 %v1726
        %2084 = vmatmul.mubr.bf16.gmra.mrb[0].mxu0 %v1725
        %v2085 = vpop.f32.mrb[0].mxu0
        %v2086 = vadd.f32 %v2003, %v2085
        %v2087 = vpop.f32.mrb[0].mxu0
        %v2088 = vadd.f32 %v2005, %v2087
        %v2089 = vpop.f32.mrb[0].mxu0
        %v2090 = vadd.f32 %v2007, %v2089
        %v2091 = vpop.f32.mrb[0].mxu0
        %v2092 = vadd.f32 %v2009, %v2091
        %2093 = vmatprep.mubr.bf16.mxu0 %v1744
        %2094 = vmatmul.mubr.bf16.gmra.mrb[0].mxu0 %v1743
        %v2095 = vpop.f32.mrb[0].mxu0
        %v2096 = vadd.f32 %v2013, %v2095
        %v2097 = vpop.f32.mrb[0].mxu0
        %v2098 = vadd.f32 %v2015, %v2097
        %v2099 = vpop.f32.mrb[0].mxu0
        %v2100 = vadd.f32 %v2017, %v2099
        %v2101 = vpop.f32.mrb[0].mxu0
        %v2102 = vadd.f32 %v2019, %v2101
        %2103 = vmatprep.mubr.bf16.mxu0 %v1762
        %2104 = vmatmul.mubr.bf16.gmra.mrb[0].mxu0 %v1761
        %v2105 = vpop.f32.mrb[0].mxu0
        %v2106 = vadd.f32 %v2023, %v2105
        %v2107 = vpop.f32.mrb[0].mxu0
        %v2108 = vadd.f32 %v2025, %v2107
        %v2109 = vpop.f32.mrb[0].mxu0
        %v2110 = vadd.f32 %v2027, %v2109
        %v2111 = vpop.f32.mrb[0].mxu0
        %v2112 = vadd.f32 %v2029, %v2111
        %2113 = vdwg.mxu0
        %2114 = vmatprep.subr.bf16.mxu0 %v942
        %2115 = vmatpush1.bf16.msra.mxu0 %v941
        %2116 = vmatprep.subr.bf16.mxu0 %v946
        %2117 = vmatpush1.bf16.msra.mxu0 %v945
        %2118 = vmatprep.subr.bf16.mxu0 %v950
        %2119 = vmatpush1.bf16.msra.mxu0 %v949
        %2120 = vmatprep.subr.bf16.mxu0 %v954
        %2121 = vmatpush1.bf16.msra.mxu0 %v953
        %2122 = vmatprep.subr.bf16.mxu0 %v958
        %2123 = vmatpush1.bf16.msra.mxu0 %v957
        %2124 = vmatprep.subr.bf16.mxu0 %v962
        %2125 = vmatpush1.bf16.msra.mxu0 %v961
        %2126 = vmatprep.subr.bf16.mxu0 %v966
        %2127 = vmatpush1.bf16.msra.mxu0 %v965
        %2128 = vmatprep.subr.bf16.mxu0 %v970
        %2129 = vmatpush1.bf16.msra.mxu0 %v969
        %2130 = vmatprep.subr.bf16.mxu0 %v974
        %2131 = vmatpush1.bf16.msra.mxu0 %v973
        %2132 = vmatprep.subr.bf16.mxu0 %v978
        %2133 = vmatpush1.bf16.msra.mxu0 %v977
        %2134 = vmatprep.subr.bf16.mxu0 %v982
        %2135 = vmatpush1.bf16.msra.mxu0 %v981
        %2136 = vmatprep.subr.bf16.mxu0 %v986
        %2137 = vmatpush1.bf16.msra.mxu0 %v985
        %2138 = vmatprep.subr.bf16.mxu0 %v990
        %2139 = vmatpush1.bf16.msra.mxu0 %v989
        %2140 = vmatprep.subr.bf16.mxu0 %v994
        %2141 = vmatpush1.bf16.msra.mxu0 %v993
        %2142 = vmatprep.subr.bf16.mxu0 %v998
        %2143 = vmatpush1.bf16.msra.mxu0 %v997
        %2144 = vmatprep.subr.bf16.mxu0 %v1002
        %2145 = vmatpush1.bf16.msra.mxu0 %v1001
        %2146 = vmatprep.mubr.bf16.mxu0 %v1692
        %2147 = vmatmul.mubr.bf16.gmra.mrb[0].mxu0 %v1691
        %v2148 = vpop.f32.mrb[0].mxu0
        %v2149 = vadd.f32 %v2066, %v2148
        %v2150 = vpop.f32.mrb[0].mxu0
        %v2151 = vadd.f32 %v2068, %v2150
        %v2152 = vpop.f32.mrb[0].mxu0
        %v2153 = vadd.f32 %v2070, %v2152
        %v2154 = vpop.f32.mrb[0].mxu0
        %v2155 = vadd.f32 %v2072, %v2154
        %2156 = vmatprep.mubr.bf16.mxu0 %v1710
        %2157 = vmatmul.mubr.bf16.gmra.mrb[0].mxu0 %v1709
        %v2158 = vpop.f32.mrb[0].mxu0
        %v2159 = vadd.f32 %v2076, %v2158
        %v2160 = vpop.f32.mrb[0].mxu0
        %v2161 = vadd.f32 %v2078, %v2160
        %v2162 = vpop.f32.mrb[0].mxu0
        %v2163 = vadd.f32 %v2080, %v2162
        %v2164 = vpop.f32.mrb[0].mxu0
        %v2165 = vadd.f32 %v2082, %v2164
        %2166 = vmatprep.mubr.bf16.mxu0 %v1728
        %2167 = vmatmul.mubr.bf16.gmra.mrb[0].mxu0 %v1727
        %v2168 = vpop.f32.mrb[0].mxu0
        %v2169 = vadd.f32 %v2086, %v2168
        %v2170 = vpop.f32.mrb[0].mxu0
        %v2171 = vadd.f32 %v2088, %v2170
        %v2172 = vpop.f32.mrb[0].mxu0
        %v2173 = vadd.f32 %v2090, %v2172
        %v2174 = vpop.f32.mrb[0].mxu0
        %v2175 = vadd.f32 %v2092, %v2174
        %2176 = vmatprep.mubr.bf16.mxu0 %v1746
        %2177 = vmatmul.mubr.bf16.gmra.mrb[0].mxu0 %v1745
        %v2178 = vpop.f32.mrb[0].mxu0
        %v2179 = vadd.f32 %v2096, %v2178
        %v2180 = vpop.f32.mrb[0].mxu0
        %v2181 = vadd.f32 %v2098, %v2180
        %v2182 = vpop.f32.mrb[0].mxu0
        %v2183 = vadd.f32 %v2100, %v2182
        %v2184 = vpop.f32.mrb[0].mxu0
        %v2185 = vadd.f32 %v2102, %v2184
        %2186 = vmatprep.mubr.bf16.mxu0 %v1764
        %2187 = vmatmul.mubr.bf16.gmra.mrb[0].mxu0 %v1763
        %v2188 = vpop.f32.mrb[0].mxu0
        %v2189 = vadd.f32 %v2106, %v2188
        %v2190 = vpop.f32.mrb[0].mxu0
        %v2191 = vadd.f32 %v2108, %v2190
        %v2192 = vpop.f32.mrb[0].mxu0
        %v2193 = vadd.f32 %v2110, %v2192
        %v2194 = vpop.f32.mrb[0].mxu0
        %v2195 = vadd.f32 %v2112, %v2194
        %2196 = vdwg.mxu0
        %2197 = vmatprep.subr.bf16.mxu0 %v1006
        %2198 = vmatpush1.bf16.msra.mxu0 %v1005
        %2199 = vmatprep.subr.bf16.mxu0 %v1010
        %2200 = vmatpush1.bf16.msra.mxu0 %v1009
        %2201 = vmatprep.subr.bf16.mxu0 %v1014
        %2202 = vmatpush1.bf16.msra.mxu0 %v1013
        %2203 = vmatprep.subr.bf16.mxu0 %v1018
        %2204 = vmatpush1.bf16.msra.mxu0 %v1017
        %2205 = vmatprep.subr.bf16.mxu0 %v1022
        %2206 = vmatpush1.bf16.msra.mxu0 %v1021
        %2207 = vmatprep.subr.bf16.mxu0 %v1026
        %2208 = vmatpush1.bf16.msra.mxu0 %v1025
        %2209 = vmatprep.subr.bf16.mxu0 %v1030
        %2210 = vmatpush1.bf16.msra.mxu0 %v1029
        %2211 = vmatprep.subr.bf16.mxu0 %v1034
        %2212 = vmatpush1.bf16.msra.mxu0 %v1033
        %2213 = vmatprep.subr.bf16.mxu0 %v1038
        %2214 = vmatpush1.bf16.msra.mxu0 %v1037
        %2215 = vmatprep.subr.bf16.mxu0 %v1042
        %2216 = vmatpush1.bf16.msra.mxu0 %v1041
        %2217 = vmatprep.subr.bf16.mxu0 %v1046
        %2218 = vmatpush1.bf16.msra.mxu0 %v1045
        %2219 = vmatprep.subr.bf16.mxu0 %v1050
        %2220 = vmatpush1.bf16.msra.mxu0 %v1049
        %2221 = vmatprep.subr.bf16.mxu0 %v1054
        %2222 = vmatpush1.bf16.msra.mxu0 %v1053
        %2223 = vmatprep.subr.bf16.mxu0 %v1058
        %2224 = vmatpush1.bf16.msra.mxu0 %v1057
        %2225 = vmatprep.subr.bf16.mxu0 %v1062
        %2226 = vmatpush1.bf16.msra.mxu0 %v1061
        %2227 = vmatprep.subr.bf16.mxu0 %v1066
        %2228 = vmatpush1.bf16.msra.mxu0 %v1065
        %2229 = vmatprep.mubr.bf16.mxu0 %v1694
        %2230 = vmatmul.mubr.bf16.gmra.mrb[0].mxu0 %v1693
        %v2231 = vpop.f32.mrb[0].mxu0
        %v2232 = vadd.f32 %v2149, %v2231
        %v2233 = vpop.f32.mrb[0].mxu0
        %v2234 = vadd.f32 %v2151, %v2233
        %v2235 = vpop.f32.mrb[0].mxu0
        %v2236 = vadd.f32 %v2153, %v2235
        %v2237 = vpop.f32.mrb[0].mxu0
        %v2238 = vadd.f32 %v2155, %v2237
        %2239 = vmatprep.mubr.bf16.mxu0 %v1712
        %2240 = vmatmul.mubr.bf16.gmra.mrb[0].mxu0 %v1711
        %v2241 = vpop.f32.mrb[0].mxu0
        %v2242 = vadd.f32 %v2159, %v2241
        %v2243 = vpop.f32.mrb[0].mxu0
        %v2244 = vadd.f32 %v2161, %v2243
        %v2245 = vpop.f32.mrb[0].mxu0
        %v2246 = vadd.f32 %v2163, %v2245
        %v2247 = vpop.f32.mrb[0].mxu0
        %v2248 = vadd.f32 %v2165, %v2247
        %2249 = vmatprep.mubr.bf16.mxu0 %v1730
        %2250 = vmatmul.mubr.bf16.gmra.mrb[0].mxu0 %v1729
        %v2251 = vpop.f32.mrb[0].mxu0
        %v2252 = vadd.f32 %v2169, %v2251
        %v2253 = vpop.f32.mrb[0].mxu0
        %v2254 = vadd.f32 %v2171, %v2253
        %v2255 = vpop.f32.mrb[0].mxu0
        %v2256 = vadd.f32 %v2173, %v2255
        %v2257 = vpop.f32.mrb[0].mxu0
        %v2258 = vadd.f32 %v2175, %v2257
        %2259 = vmatprep.mubr.bf16.mxu0 %v1748
        %2260 = vmatmul.mubr.bf16.gmra.mrb[0].mxu0 %v1747
        %v2261 = vpop.f32.mrb[0].mxu0
        %v2262 = vadd.f32 %v2179, %v2261
        %v2263 = vpop.f32.mrb[0].mxu0
        %v2264 = vadd.f32 %v2181, %v2263
        %v2265 = vpop.f32.mrb[0].mxu0
        %v2266 = vadd.f32 %v2183, %v2265
        %v2267 = vpop.f32.mrb[0].mxu0
        %v2268 = vadd.f32 %v2185, %v2267
        %2269 = vmatprep.mubr.bf16.mxu0 %v1766
        %2270 = vmatmul.mubr.bf16.gmra.mrb[0].mxu0 %v1765
        %v2271 = vpop.f32.mrb[0].mxu0
        %v2272 = vadd.f32 %v2189, %v2271
        %v2273 = vpop.f32.mrb[0].mxu0
        %v2274 = vadd.f32 %v2191, %v2273
        %v2275 = vpop.f32.mrb[0].mxu0
        %v2276 = vadd.f32 %v2193, %v2275
        %v2277 = vpop.f32.mrb[0].mxu0
        %v2278 = vadd.f32 %v2195, %v2277
        %2279 = vdwg.mxu0
        %2280 = vmatprep.subr.bf16.mxu0 %v1070
        %2281 = vmatpush1.bf16.msra.mxu0 %v1069
        %2282 = vmatprep.subr.bf16.mxu0 %v1074
        %2283 = vmatpush1.bf16.msra.mxu0 %v1073
        %2284 = vmatprep.subr.bf16.mxu0 %v1078
        %2285 = vmatpush1.bf16.msra.mxu0 %v1077
        %2286 = vmatprep.subr.bf16.mxu0 %v1082
        %2287 = vmatpush1.bf16.msra.mxu0 %v1081
        %2288 = vmatprep.subr.bf16.mxu0 %v1086
        %2289 = vmatpush1.bf16.msra.mxu0 %v1085
        %2290 = vmatprep.subr.bf16.mxu0 %v1090
        %2291 = vmatpush1.bf16.msra.mxu0 %v1089
        %2292 = vmatprep.subr.bf16.mxu0 %v1094
        %2293 = vmatpush1.bf16.msra.mxu0 %v1093
        %2294 = vmatprep.subr.bf16.mxu0 %v1098
        %2295 = vmatpush1.bf16.msra.mxu0 %v1097
        %2296 = vmatprep.subr.bf16.mxu0 %v1102
        %2297 = vmatpush1.bf16.msra.mxu0 %v1101
        %2298 = vmatprep.subr.bf16.mxu0 %v1106
        %2299 = vmatpush1.bf16.msra.mxu0 %v1105
        %2300 = vmatprep.subr.bf16.mxu0 %v1110
        %2301 = vmatpush1.bf16.msra.mxu0 %v1109
        %2302 = vmatprep.subr.bf16.mxu0 %v1114
        %2303 = vmatpush1.bf16.msra.mxu0 %v1113
        %2304 = vmatprep.subr.bf16.mxu0 %v1118
        %2305 = vmatpush1.bf16.msra.mxu0 %v1117
        %2306 = vmatprep.subr.bf16.mxu0 %v1122
        %2307 = vmatpush1.bf16.msra.mxu0 %v1121
        %2308 = vmatprep.subr.bf16.mxu0 %v1126
        %2309 = vmatpush1.bf16.msra.mxu0 %v1125
        %2310 = vmatprep.subr.bf16.mxu0 %v1130
        %2311 = vmatpush1.bf16.msra.mxu0 %v1129
        %2312 = vmatprep.mubr.bf16.mxu0 %v1696
        %2313 = vmatmul.mubr.bf16.gmra.mrb[0].mxu0 %v1695
        %v2314 = vpop.f32.mrb[0].mxu0
        %v2315 = vadd.f32 %v2232, %v2314
        %v2316 = vpop.f32.mrb[0].mxu0
        %v2317 = vadd.f32 %v2234, %v2316
        %v2318 = vpop.f32.mrb[0].mxu0
        %v2319 = vadd.f32 %v2236, %v2318
        %v2320 = vpop.f32.mrb[0].mxu0
        %v2321 = vadd.f32 %v2238, %v2320
        %2322 = vmatprep.mubr.bf16.mxu0 %v1714
        %2323 = vmatmul.mubr.bf16.gmra.mrb[0].mxu0 %v1713
        %v2324 = vpop.f32.mrb[0].mxu0
        %v2325 = vadd.f32 %v2242, %v2324
        %v2326 = vpop.f32.mrb[0].mxu0
        %v2327 = vadd.f32 %v2244, %v2326
        %v2328 = vpop.f32.mrb[0].mxu0
        %v2329 = vadd.f32 %v2246, %v2328
        %v2330 = vpop.f32.mrb[0].mxu0
        %v2331 = vadd.f32 %v2248, %v2330
        %2332 = vmatprep.mubr.bf16.mxu0 %v1732
        %2333 = vmatmul.mubr.bf16.gmra.mrb[0].mxu0 %v1731
        %v2334 = vpop.f32.mrb[0].mxu0
        %v2335 = vadd.f32 %v2252, %v2334
        %v2336 = vpop.f32.mrb[0].mxu0
        %v2337 = vadd.f32 %v2254, %v2336
        %v2338 = vpop.f32.mrb[0].mxu0
        %v2339 = vadd.f32 %v2256, %v2338
        %v2340 = vpop.f32.mrb[0].mxu0
        %v2341 = vadd.f32 %v2258, %v2340
        %2342 = vmatprep.mubr.bf16.mxu0 %v1750
        %2343 = vmatmul.mubr.bf16.gmra.mrb[0].mxu0 %v1749
        %v2344 = vpop.f32.mrb[0].mxu0
        %v2345 = vadd.f32 %v2262, %v2344
        %v2346 = vpop.f32.mrb[0].mxu0
        %v2347 = vadd.f32 %v2264, %v2346
        %v2348 = vpop.f32.mrb[0].mxu0
        %v2349 = vadd.f32 %v2266, %v2348
        %v2350 = vpop.f32.mrb[0].mxu0
        %v2351 = vadd.f32 %v2268, %v2350
        %2352 = vmatprep.mubr.bf16.mxu0 %v1768
        %2353 = vmatmul.mubr.bf16.gmra.mrb[0].mxu0 %v1767
        %v2354 = vpop.f32.mrb[0].mxu0
        %v2355 = vadd.f32 %v2272, %v2354
        %v2356 = vpop.f32.mrb[0].mxu0
        %v2357 = vadd.f32 %v2274, %v2356
        %v2358 = vpop.f32.mrb[0].mxu0
        %v2359 = vadd.f32 %v2276, %v2358
        %v2360 = vpop.f32.mrb[0].mxu0
        %v2361 = vadd.f32 %v2278, %v2360
        %2362 = vdwg.mxu0
        %2363 = vmatprep.subr.bf16.mxu0 %v1134
        %2364 = vmatpush1.bf16.msra.mxu0 %v1133
        %2365 = vmatprep.subr.bf16.mxu0 %v1138
        %2366 = vmatpush1.bf16.msra.mxu0 %v1137
        %2367 = vmatprep.subr.bf16.mxu0 %v1142
        %2368 = vmatpush1.bf16.msra.mxu0 %v1141
        %2369 = vmatprep.subr.bf16.mxu0 %v1146
        %2370 = vmatpush1.bf16.msra.mxu0 %v1145
        %2371 = vmatprep.subr.bf16.mxu0 %v1150
        %2372 = vmatpush1.bf16.msra.mxu0 %v1149
        %2373 = vmatprep.subr.bf16.mxu0 %v1154
        %2374 = vmatpush1.bf16.msra.mxu0 %v1153
        %2375 = vmatprep.subr.bf16.mxu0 %v1158
        %2376 = vmatpush1.bf16.msra.mxu0 %v1157
        %2377 = vmatprep.subr.bf16.mxu0 %v1162
        %2378 = vmatpush1.bf16.msra.mxu0 %v1161
        %2379 = vmatprep.subr.bf16.mxu0 %v1166
        %2380 = vmatpush1.bf16.msra.mxu0 %v1165
        %2381 = vmatprep.subr.bf16.mxu0 %v1170
        %2382 = vmatpush1.bf16.msra.mxu0 %v1169
        %2383 = vmatprep.subr.bf16.mxu0 %v1174
        %2384 = vmatpush1.bf16.msra.mxu0 %v1173
        %2385 = vmatprep.subr.bf16.mxu0 %v1178
        %2386 = vmatpush1.bf16.msra.mxu0 %v1177
        %2387 = vmatprep.subr.bf16.mxu0 %v1182
        %2388 = vmatpush1.bf16.msra.mxu0 %v1181
        %2389 = vmatprep.subr.bf16.mxu0 %v1186
        %2390 = vmatpush1.bf16.msra.mxu0 %v1185
        %2391 = vmatprep.subr.bf16.mxu0 %v1190
        %2392 = vmatpush1.bf16.msra.mxu0 %v1189
        %2393 = vmatprep.subr.bf16.mxu0 %v1194
        %2394 = vmatpush1.bf16.msra.mxu0 %v1193
        %2395 = vmatprep.mubr.bf16.mxu0 %v1698
        %2396 = vmatmul.mubr.bf16.gmra.mrb[0].mxu0 %v1697
        %v2397 = vpop.f32.mrb[0].mxu0
        %v2398 = vadd.f32 %v2315, %v2397
        %v2399 = vpop.f32.mrb[0].mxu0
        %v2400 = vadd.f32 %v2317, %v2399
        %v2401 = vpop.f32.mrb[0].mxu0
        %v2402 = vadd.f32 %v2319, %v2401
        %v2403 = vpop.f32.mrb[0].mxu0
        %v2404 = vadd.f32 %v2321, %v2403
        %2405 = vmatprep.mubr.bf16.mxu0 %v1716
        %2406 = vmatmul.mubr.bf16.gmra.mrb[0].mxu0 %v1715
        %v2407 = vpop.f32.mrb[0].mxu0
        %v2408 = vadd.f32 %v2325, %v2407
        %v2409 = vpop.f32.mrb[0].mxu0
        %v2410 = vadd.f32 %v2327, %v2409
        %v2411 = vpop.f32.mrb[0].mxu0
        %v2412 = vadd.f32 %v2329, %v2411
        %v2413 = vpop.f32.mrb[0].mxu0
        %v2414 = vadd.f32 %v2331, %v2413
        %2415 = vmatprep.mubr.bf16.mxu0 %v1734
        %2416 = vmatmul.mubr.bf16.gmra.mrb[0].mxu0 %v1733
        %v2417 = vpop.f32.mrb[0].mxu0
        %v2418 = vadd.f32 %v2335, %v2417
        %v2419 = vpop.f32.mrb[0].mxu0
        %v2420 = vadd.f32 %v2337, %v2419
        %v2421 = vpop.f32.mrb[0].mxu0
        %v2422 = vadd.f32 %v2339, %v2421
        %v2423 = vpop.f32.mrb[0].mxu0
        %v2424 = vadd.f32 %v2341, %v2423
        %2425 = vmatprep.mubr.bf16.mxu0 %v1752
        %2426 = vmatmul.mubr.bf16.gmra.mrb[0].mxu0 %v1751
        %v2427 = vpop.f32.mrb[0].mxu0
        %v2428 = vadd.f32 %v2345, %v2427
        %v2429 = vpop.f32.mrb[0].mxu0
        %v2430 = vadd.f32 %v2347, %v2429
        %v2431 = vpop.f32.mrb[0].mxu0
        %v2432 = vadd.f32 %v2349, %v2431
        %v2433 = vpop.f32.mrb[0].mxu0
        %v2434 = vadd.f32 %v2351, %v2433
        %2435 = vmatprep.mubr.bf16.mxu0 %v1770
        %2436 = vmatmul.mubr.bf16.gmra.mrb[0].mxu0 %v1769
        %v2437 = vpop.f32.mrb[0].mxu0
        %v2438 = vadd.f32 %v2355, %v2437
        %v2439 = vpop.f32.mrb[0].mxu0
        %v2440 = vadd.f32 %v2357, %v2439
        %v2441 = vpop.f32.mrb[0].mxu0
        %v2442 = vadd.f32 %v2359, %v2441
        %v2443 = vpop.f32.mrb[0].mxu0
        %v2444 = vadd.f32 %v2361, %v2443
        %2445 = vdwg.mxu0
        %2446 = vmatprep.subr.bf16.mxu0 %v1198
        %2447 = vmatpush1.bf16.msra.mxu0 %v1197
        %2448 = vmatprep.subr.bf16.mxu0 %v1202
        %2449 = vmatpush1.bf16.msra.mxu0 %v1201
        %2450 = vmatprep.subr.bf16.mxu0 %v1206
        %2451 = vmatpush1.bf16.msra.mxu0 %v1205
        %2452 = vmatprep.subr.bf16.mxu0 %v1210
        %2453 = vmatpush1.bf16.msra.mxu0 %v1209
        %2454 = vmatprep.subr.bf16.mxu0 %v1214
        %2455 = vmatpush1.bf16.msra.mxu0 %v1213
        %2456 = vmatprep.subr.bf16.mxu0 %v1218
        %2457 = vmatpush1.bf16.msra.mxu0 %v1217
        %2458 = vmatprep.subr.bf16.mxu0 %v1222
        %2459 = vmatpush1.bf16.msra.mxu0 %v1221
        %2460 = vmatprep.subr.bf16.mxu0 %v1226
        %2461 = vmatpush1.bf16.msra.mxu0 %v1225
        %2462 = vmatprep.subr.bf16.mxu0 %v1230
        %2463 = vmatpush1.bf16.msra.mxu0 %v1229
        %2464 = vmatprep.subr.bf16.mxu0 %v1234
        %2465 = vmatpush1.bf16.msra.mxu0 %v1233
        %2466 = vmatprep.subr.bf16.mxu0 %v1238
        %2467 = vmatpush1.bf16.msra.mxu0 %v1237
        %2468 = vmatprep.subr.bf16.mxu0 %v1242
        %2469 = vmatpush1.bf16.msra.mxu0 %v1241
        %2470 = vmatprep.subr.bf16.mxu0 %v1246
        %2471 = vmatpush1.bf16.msra.mxu0 %v1245
        %2472 = vmatprep.subr.bf16.mxu0 %v1250
        %2473 = vmatpush1.bf16.msra.mxu0 %v1249
        %2474 = vmatprep.subr.bf16.mxu0 %v1254
        %2475 = vmatpush1.bf16.msra.mxu0 %v1253
        %2476 = vmatprep.subr.bf16.mxu0 %v1258
        %2477 = vmatpush1.bf16.msra.mxu0 %v1257
        %2478 = vmatprep.mubr.bf16.mxu0 %v1700
        %2479 = vmatmul.mubr.bf16.gmra.mrb[0].mxu0 %v1699
        %v2480 = vpop.f32.mrb[0].mxu0
        %v2481 = vadd.f32 %v2398, %v2480
        %v2482 = vpop.f32.mrb[0].mxu0
        %v2483 = vadd.f32 %v2400, %v2482
        %v2484 = vpop.f32.mrb[0].mxu0
        %v2485 = vadd.f32 %v2402, %v2484
        %v2486 = vpop.f32.mrb[0].mxu0
        %v2487 = vadd.f32 %v2404, %v2486
        %2488 = vmatprep.mubr.bf16.mxu0 %v1718
        %2489 = vmatmul.mubr.bf16.gmra.mrb[0].mxu0 %v1717
        %v2490 = vpop.f32.mrb[0].mxu0
        %v2491 = vadd.f32 %v2408, %v2490
        %v2492 = vpop.f32.mrb[0].mxu0
        %v2493 = vadd.f32 %v2410, %v2492
        %v2494 = vpop.f32.mrb[0].mxu0
        %v2495 = vadd.f32 %v2412, %v2494
        %v2496 = vpop.f32.mrb[0].mxu0
        %v2497 = vadd.f32 %v2414, %v2496
        %2498 = vmatprep.mubr.bf16.mxu0 %v1736
        %2499 = vmatmul.mubr.bf16.gmra.mrb[0].mxu0 %v1735
        %v2500 = vpop.f32.mrb[0].mxu0
        %v2501 = vadd.f32 %v2418, %v2500
        %v2502 = vpop.f32.mrb[0].mxu0
        %v2503 = vadd.f32 %v2420, %v2502
        %v2504 = vpop.f32.mrb[0].mxu0
        %v2505 = vadd.f32 %v2422, %v2504
        %v2506 = vpop.f32.mrb[0].mxu0
        %v2507 = vadd.f32 %v2424, %v2506
        %2508 = vmatprep.mubr.bf16.mxu0 %v1754
        %2509 = vmatmul.mubr.bf16.gmra.mrb[0].mxu0 %v1753
        %v2510 = vpop.f32.mrb[0].mxu0
        %v2511 = vadd.f32 %v2428, %v2510
        %v2512 = vpop.f32.mrb[0].mxu0
        %v2513 = vadd.f32 %v2430, %v2512
        %v2514 = vpop.f32.mrb[0].mxu0
        %v2515 = vadd.f32 %v2432, %v2514
        %v2516 = vpop.f32.mrb[0].mxu0
        %v2517 = vadd.f32 %v2434, %v2516
        %2518 = vmatprep.mubr.bf16.mxu0 %v1772
        %2519 = vmatmul.mubr.bf16.gmra.mrb[0].mxu0 %v1771
        %v2520 = vpop.f32.mrb[0].mxu0
        %v2521 = vadd.f32 %v2438, %v2520
        %v2522 = vpop.f32.mrb[0].mxu0
        %v2523 = vadd.f32 %v2440, %v2522
        %v2524 = vpop.f32.mrb[0].mxu0
        %v2525 = vadd.f32 %v2442, %v2524
        %v2526 = vpop.f32.mrb[0].mxu0
        %v2527 = vadd.f32 %v2444, %v2526
        %2528 = vdwg.mxu0
        %2529 = vmatprep.subr.bf16.mxu0 %v1262
        %2530 = vmatpush1.bf16.msra.mxu0 %v1261
        %2531 = vmatprep.subr.bf16.mxu0 %v1266
        %2532 = vmatpush1.bf16.msra.mxu0 %v1265
        %2533 = vmatprep.subr.bf16.mxu0 %v1270
        %2534 = vmatpush1.bf16.msra.mxu0 %v1269
        %2535 = vmatprep.subr.bf16.mxu0 %v1274
        %2536 = vmatpush1.bf16.msra.mxu0 %v1273
        %2537 = vmatprep.subr.bf16.mxu0 %v1278
        %2538 = vmatpush1.bf16.msra.mxu0 %v1277
        %2539 = vmatprep.subr.bf16.mxu0 %v1282
        %2540 = vmatpush1.bf16.msra.mxu0 %v1281
        %2541 = vmatprep.subr.bf16.mxu0 %v1286
        %2542 = vmatpush1.bf16.msra.mxu0 %v1285
        %2543 = vmatprep.subr.bf16.mxu0 %v1290
        %2544 = vmatpush1.bf16.msra.mxu0 %v1289
        %2545 = vmatprep.subr.bf16.mxu0 %v1294
        %2546 = vmatpush1.bf16.msra.mxu0 %v1293
        %2547 = vmatprep.subr.bf16.mxu0 %v1298
        %2548 = vmatpush1.bf16.msra.mxu0 %v1297
        %2549 = vmatprep.subr.bf16.mxu0 %v1302
        %2550 = vmatpush1.bf16.msra.mxu0 %v1301
        %2551 = vmatprep.subr.bf16.mxu0 %v1306
        %2552 = vmatpush1.bf16.msra.mxu0 %v1305
        %2553 = vmatprep.subr.bf16.mxu0 %v1310
        %2554 = vmatpush1.bf16.msra.mxu0 %v1309
        %2555 = vmatprep.subr.bf16.mxu0 %v1314
        %2556 = vmatpush1.bf16.msra.mxu0 %v1313
        %2557 = vmatprep.subr.bf16.mxu0 %v1318
        %2558 = vmatpush1.bf16.msra.mxu0 %v1317
        %2559 = vmatprep.subr.bf16.mxu0 %v1322
        %2560 = vmatpush1.bf16.msra.mxu0 %v1321
        %2561 = vmatprep.mubr.bf16.mxu0 %v1702
        %2562 = vmatmul.mubr.bf16.gmra.mrb[0].mxu0 %v1701
        %v2563 = vpop.f32.mrb[0].mxu0
        %v2564 = vadd.f32 %v2481, %v2563
        %v2565 = vpop.f32.mrb[0].mxu0
        %v2566 = vadd.f32 %v2483, %v2565
        %v2567 = vpop.f32.mrb[0].mxu0
        %v2568 = vadd.f32 %v2485, %v2567
        %v2569 = vpop.f32.mrb[0].mxu0
        %v2570 = vadd.f32 %v2487, %v2569
        %2571 = vmatprep.mubr.bf16.mxu0 %v1720
        %2572 = vmatmul.mubr.bf16.gmra.mrb[0].mxu0 %v1719
        %v2573 = vpop.f32.mrb[0].mxu0
        %v2574 = vadd.f32 %v2491, %v2573
        %v2575 = vpop.f32.mrb[0].mxu0
        %v2576 = vadd.f32 %v2493, %v2575
        %v2577 = vpop.f32.mrb[0].mxu0
        %v2578 = vadd.f32 %v2495, %v2577
        %v2579 = vpop.f32.mrb[0].mxu0
        %v2580 = vadd.f32 %v2497, %v2579
        %2581 = vmatprep.mubr.bf16.mxu0 %v1738
        %2582 = vmatmul.mubr.bf16.gmra.mrb[0].mxu0 %v1737
        %v2583 = vpop.f32.mrb[0].mxu0
        %v2584 = vadd.f32 %v2501, %v2583
        %v2585 = vpop.f32.mrb[0].mxu0
        %v2586 = vadd.f32 %v2503, %v2585
        %v2587 = vpop.f32.mrb[0].mxu0
        %v2588 = vadd.f32 %v2505, %v2587
        %v2589 = vpop.f32.mrb[0].mxu0
        %v2590 = vadd.f32 %v2507, %v2589
        %2591 = vmatprep.mubr.bf16.mxu0 %v1756
        %2592 = vmatmul.mubr.bf16.gmra.mrb[0].mxu0 %v1755
        %v2593 = vpop.f32.mrb[0].mxu0
        %v2594 = vadd.f32 %v2511, %v2593
        %v2595 = vpop.f32.mrb[0].mxu0
        %v2596 = vadd.f32 %v2513, %v2595
        %v2597 = vpop.f32.mrb[0].mxu0
        %v2598 = vadd.f32 %v2515, %v2597
        %v2599 = vpop.f32.mrb[0].mxu0
        %v2600 = vadd.f32 %v2517, %v2599
        %2601 = vmatprep.mubr.bf16.mxu0 %v1774
        %2602 = vmatmul.mubr.bf16.gmra.mrb[0].mxu0 %v1773
        %v2603 = vpop.f32.mrb[0].mxu0
        %v2604 = vadd.f32 %v2521, %v2603
        %v2605 = vpop.f32.mrb[0].mxu0
        %v2606 = vadd.f32 %v2523, %v2605
        %v2607 = vpop.f32.mrb[0].mxu0
        %v2608 = vadd.f32 %v2525, %v2607
        %v2609 = vpop.f32.mrb[0].mxu0
        %v2610 = vadd.f32 %v2527, %v2609
        %2611 = vdwg.mxu0
        %2612 = vmatprep.subr.bf16.mxu0 %v752
        %2613 = vmatpush1.bf16.msra.mxu0 %v751
        %2614 = vmatprep.subr.bf16.mxu0 %v756
        %2615 = vmatpush1.bf16.msra.mxu0 %v755
        %2616 = vmatprep.subr.bf16.mxu0 %v760
        %2617 = vmatpush1.bf16.msra.mxu0 %v759
        %2618 = vmatprep.subr.bf16.mxu0 %v764
        %2619 = vmatpush1.bf16.msra.mxu0 %v763
        %2620 = vmatprep.subr.bf16.mxu0 %v768
        %2621 = vmatpush1.bf16.msra.mxu0 %v767
        %2622 = vmatprep.subr.bf16.mxu0 %v772
        %2623 = vmatpush1.bf16.msra.mxu0 %v771
        %2624 = vmatprep.subr.bf16.mxu0 %v776
        %2625 = vmatpush1.bf16.msra.mxu0 %v775
        %2626 = vmatprep.subr.bf16.mxu0 %v780
        %2627 = vmatpush1.bf16.msra.mxu0 %v779
        %2628 = vmatprep.subr.bf16.mxu0 %v784
        %2629 = vmatpush1.bf16.msra.mxu0 %v783
        %2630 = vmatprep.subr.bf16.mxu0 %v788
        %2631 = vmatpush1.bf16.msra.mxu0 %v787
        %2632 = vmatprep.subr.bf16.mxu0 %v792
        %2633 = vmatpush1.bf16.msra.mxu0 %v791
        %2634 = vmatprep.subr.bf16.mxu0 %v796
        %2635 = vmatpush1.bf16.msra.mxu0 %v795
        %2636 = vmatprep.subr.bf16.mxu0 %v800
        %2637 = vmatpush1.bf16.msra.mxu0 %v799
        %2638 = vmatprep.subr.bf16.mxu0 %v804
        %2639 = vmatpush1.bf16.msra.mxu0 %v803
        %2640 = vmatprep.subr.bf16.mxu0 %v808
        %2641 = vmatpush1.bf16.msra.mxu0 %v807
        %2642 = vmatprep.subr.bf16.mxu0 %v812
        %2643 = vmatpush1.bf16.msra.mxu0 %v811
        %2644 = vmatprep.mubr.bf16.mxu0 %v1686
        %2645 = vmatmul.mubr.bf16.gmra.mrb[0].mxu0 %v1685
        %v2646 = vpop.f32.mrb[0].mxu0
        %v2647 = vadd.f32 0.0, %v2646
        %v2648 = vpop.f32.mrb[0].mxu0
        %v2649 = vadd.f32 0.0, %v2648
        %v2650 = vpop.f32.mrb[0].mxu0
        %v2651 = vadd.f32 0.0, %v2650
        %v2652 = vpop.f32.mrb[0].mxu0
        %v2653 = vadd.f32 0.0, %v2652
        %2654 = vmatprep.mubr.bf16.mxu0 %v1704
        %2655 = vmatmul.mubr.bf16.gmra.mrb[0].mxu0 %v1703
        %v2656 = vpop.f32.mrb[0].mxu0
        %v2657 = vadd.f32 0.0, %v2656
        %v2658 = vpop.f32.mrb[0].mxu0
        %v2659 = vadd.f32 0.0, %v2658
        %v2660 = vpop.f32.mrb[0].mxu0
        %v2661 = vadd.f32 0.0, %v2660
        %v2662 = vpop.f32.mrb[0].mxu0
        %v2663 = vadd.f32 0.0, %v2662
        %2664 = vmatprep.mubr.bf16.mxu0 %v1722
        %2665 = vmatmul.mubr.bf16.gmra.mrb[0].mxu0 %v1721
        %v2666 = vpop.f32.mrb[0].mxu0
        %v2667 = vadd.f32 0.0, %v2666
        %v2668 = vpop.f32.mrb[0].mxu0
        %v2669 = vadd.f32 0.0, %v2668
        %v2670 = vpop.f32.mrb[0].mxu0
        %v2671 = vadd.f32 0.0, %v2670
        %v2672 = vpop.f32.mrb[0].mxu0
        %v2673 = vadd.f32 0.0, %v2672
        %2674 = vmatprep.mubr.bf16.mxu0 %v1740
        %2675 = vmatmul.mubr.bf16.gmra.mrb[0].mxu0 %v1739
        %v2676 = vpop.f32.mrb[0].mxu0
        %v2677 = vadd.f32 0.0, %v2676
        %v2678 = vpop.f32.mrb[0].mxu0
        %v2679 = vadd.f32 0.0, %v2678
        %v2680 = vpop.f32.mrb[0].mxu0
        %v2681 = vadd.f32 0.0, %v2680
        %v2682 = vpop.f32.mrb[0].mxu0
        %v2683 = vadd.f32 0.0, %v2682
        %2684 = vmatprep.mubr.bf16.mxu0 %v1758
        %2685 = vmatmul.mubr.bf16.gmra.mrb[0].mxu0 %v1757
        %v2686 = vpop.f32.mrb[0].mxu0
        %v2687 = vadd.f32 0.0, %v2686
        %v2688 = vpop.f32.mrb[0].mxu0
        %v2689 = vadd.f32 0.0, %v2688
        %v2690 = vpop.f32.mrb[0].mxu0
        %v2691 = vadd.f32 0.0, %v2690
        %v2692 = vpop.f32.mrb[0].mxu0
        %v2693 = vadd.f32 0.0, %v2692
        %2694 = vdwg.mxu0
        %2695 = vmatprep.subr.bf16.mxu0 %v816
        %2696 = vmatpush1.bf16.msra.mxu0 %v815
        %2697 = vmatprep.subr.bf16.mxu0 %v820
        %2698 = vmatpush1.bf16.msra.mxu0 %v819
        %2699 = vmatprep.subr.bf16.mxu0 %v824
        %2700 = vmatpush1.bf16.msra.mxu0 %v823
        %2701 = vmatprep.subr.bf16.mxu0 %v828
        %2702 = vmatpush1.bf16.msra.mxu0 %v827
        %2703 = vmatprep.subr.bf16.mxu0 %v832
        %2704 = vmatpush1.bf16.msra.mxu0 %v831
        %2705 = vmatprep.subr.bf16.mxu0 %v836
        %2706 = vmatpush1.bf16.msra.mxu0 %v835
        %2707 = vmatprep.subr.bf16.mxu0 %v840
        %2708 = vmatpush1.bf16.msra.mxu0 %v839
        %2709 = vmatprep.subr.bf16.mxu0 %v844
        %2710 = vmatpush1.bf16.msra.mxu0 %v843
        %2711 = vmatprep.subr.bf16.mxu0 %v848
        %2712 = vmatpush1.bf16.msra.mxu0 %v847
        %2713 = vmatprep.subr.bf16.mxu0 %v852
        %2714 = vmatpush1.bf16.msra.mxu0 %v851
        %2715 = vmatprep.subr.bf16.mxu0 %v856
        %2716 = vmatpush1.bf16.msra.mxu0 %v855
        %2717 = vmatprep.subr.bf16.mxu0 %v860
        %2718 = vmatpush1.bf16.msra.mxu0 %v859
        %2719 = vmatprep.subr.bf16.mxu0 %v864
        %2720 = vmatpush1.bf16.msra.mxu0 %v863
        %2721 = vmatprep.subr.bf16.mxu0 %v868
        %2722 = vmatpush1.bf16.msra.mxu0 %v867
        %2723 = vmatprep.subr.bf16.mxu0 %v872
        %2724 = vmatpush1.bf16.msra.mxu0 %v871
        %2725 = vmatprep.subr.bf16.mxu0 %v876
        %2726 = vmatpush1.bf16.msra.mxu0 %v875
        %2727 = vmatprep.mubr.bf16.mxu0 %v1688
        %2728 = vmatmul.mubr.bf16.gmra.mrb[0].mxu0 %v1687
        %v2729 = vpop.f32.mrb[0].mxu0
        %v2730 = vadd.f32 %v2647, %v2729
        %v2731 = vpop.f32.mrb[0].mxu0
        %v2732 = vadd.f32 %v2649, %v2731
        %v2733 = vpop.f32.mrb[0].mxu0
        %v2734 = vadd.f32 %v2651, %v2733
        %v2735 = vpop.f32.mrb[0].mxu0
        %v2736 = vadd.f32 %v2653, %v2735
        %2737 = vmatprep.mubr.bf16.mxu0 %v1706
        %2738 = vmatmul.mubr.bf16.gmra.mrb[0].mxu0 %v1705
        %v2739 = vpop.f32.mrb[0].mxu0
        %v2740 = vadd.f32 %v2657, %v2739
        %v2741 = vpop.f32.mrb[0].mxu0
        %v2742 = vadd.f32 %v2659, %v2741
        %v2743 = vpop.f32.mrb[0].mxu0
        %v2744 = vadd.f32 %v2661, %v2743
        %v2745 = vpop.f32.mrb[0].mxu0
        %v2746 = vadd.f32 %v2663, %v2745
        %2747 = vmatprep.mubr.bf16.mxu0 %v1724
        %2748 = vmatmul.mubr.bf16.gmra.mrb[0].mxu0 %v1723
        %v2749 = vpop.f32.mrb[0].mxu0
        %v2750 = vadd.f32 %v2667, %v2749
        %v2751 = vpop.f32.mrb[0].mxu0
        %v2752 = vadd.f32 %v2669, %v2751
        %v2753 = vpop.f32.mrb[0].mxu0
        %v2754 = vadd.f32 %v2671, %v2753
        %v2755 = vpop.f32.mrb[0].mxu0
        %v2756 = vadd.f32 %v2673, %v2755
        %2757 = vmatprep.mubr.bf16.mxu0 %v1742
        %2758 = vmatmul.mubr.bf16.gmra.mrb[0].mxu0 %v1741
        %v2759 = vpop.f32.mrb[0].mxu0
        %v2760 = vadd.f32 %v2677, %v2759
        %v2761 = vpop.f32.mrb[0].mxu0
        %v2762 = vadd.f32 %v2679, %v2761
        %v2763 = vpop.f32.mrb[0].mxu0
        %v2764 = vadd.f32 %v2681, %v2763
        %v2765 = vpop.f32.mrb[0].mxu0
        %v2766 = vadd.f32 %v2683, %v2765
        %2767 = vmatprep.mubr.bf16.mxu0 %v1760
        %2768 = vmatmul.mubr.bf16.gmra.mrb[0].mxu0 %v1759
        %v2769 = vpop.f32.mrb[0].mxu0
        %v2770 = vadd.f32 %v2687, %v2769
        %v2771 = vpop.f32.mrb[0].mxu0
        %v2772 = vadd.f32 %v2689, %v2771
        %v2773 = vpop.f32.mrb[0].mxu0
        %v2774 = vadd.f32 %v2691, %v2773
        %v2775 = vpop.f32.mrb[0].mxu0
        %v2776 = vadd.f32 %v2693, %v2775
        %2777 = vdwg.mxu0
        %2778 = vmatprep.subr.bf16.mxu0 %v880
        %2779 = vmatpush1.bf16.msra.mxu0 %v879
        %2780 = vmatprep.subr.bf16.mxu0 %v884
        %2781 = vmatpush1.bf16.msra.mxu0 %v883
        %2782 = vmatprep.subr.bf16.mxu0 %v888
        %2783 = vmatpush1.bf16.msra.mxu0 %v887
        %2784 = vmatprep.subr.bf16.mxu0 %v892
        %2785 = vmatpush1.bf16.msra.mxu0 %v891
        %2786 = vmatprep.subr.bf16.mxu0 %v896
        %2787 = vmatpush1.bf16.msra.mxu0 %v895
        %2788 = vmatprep.subr.bf16.mxu0 %v900
        %2789 = vmatpush1.bf16.msra.mxu0 %v899
        %2790 = vmatprep.subr.bf16.mxu0 %v904
        %2791 = vmatpush1.bf16.msra.mxu0 %v903
        %2792 = vmatprep.subr.bf16.mxu0 %v908
        %2793 = vmatpush1.bf16.msra.mxu0 %v907
        %2794 = vmatprep.subr.bf16.mxu0 %v912
        %2795 = vmatpush1.bf16.msra.mxu0 %v911
        %2796 = vmatprep.subr.bf16.mxu0 %v916
        %2797 = vmatpush1.bf16.msra.mxu0 %v915
        %2798 = vmatprep.subr.bf16.mxu0 %v920
        %2799 = vmatpush1.bf16.msra.mxu0 %v919
        %2800 = vmatprep.subr.bf16.mxu0 %v924
        %2801 = vmatpush1.bf16.msra.mxu0 %v923
        %2802 = vmatprep.subr.bf16.mxu0 %v928
        %2803 = vmatpush1.bf16.msra.mxu0 %v927
        %2804 = vmatprep.subr.bf16.mxu0 %v932
        %2805 = vmatpush1.bf16.msra.mxu0 %v931
        %2806 = vmatprep.subr.bf16.mxu0 %v936
        %2807 = vmatpush1.bf16.msra.mxu0 %v935
        %2808 = vmatprep.subr.bf16.mxu0 %v940
        %2809 = vmatpush1.bf16.msra.mxu0 %v939
        %2810 = vmatprep.mubr.bf16.mxu0 %v1690
        %2811 = vmatmul.mubr.bf16.gmra.mrb[0].mxu0 %v1689
        %v2812 = vpop.f32.mrb[0].mxu0
        %v2813 = vadd.f32 %v2730, %v2812
        %v2814 = vpop.f32.mrb[0].mxu0
        %v2815 = vadd.f32 %v2732, %v2814
        %v2816 = vpop.f32.mrb[0].mxu0
        %v2817 = vadd.f32 %v2734, %v2816
        %v2818 = vpop.f32.mrb[0].mxu0
        %v2819 = vadd.f32 %v2736, %v2818
        %2820 = vmatprep.mubr.bf16.mxu0 %v1708
        %2821 = vmatmul.mubr.bf16.gmra.mrb[0].mxu0 %v1707
        %v2822 = vpop.f32.mrb[0].mxu0
        %v2823 = vadd.f32 %v2740, %v2822
        %v2824 = vpop.f32.mrb[0].mxu0
        %v2825 = vadd.f32 %v2742, %v2824
        %v2826 = vpop.f32.mrb[0].mxu0
        %v2827 = vadd.f32 %v2744, %v2826
        %v2828 = vpop.f32.mrb[0].mxu0
        %v2829 = vadd.f32 %v2746, %v2828
        %2830 = vmatprep.mubr.bf16.mxu0 %v1726
        %2831 = vmatmul.mubr.bf16.gmra.mrb[0].mxu0 %v1725
        %v2832 = vpop.f32.mrb[0].mxu0
        %v2833 = vadd.f32 %v2750, %v2832
        %v2834 = vpop.f32.mrb[0].mxu0
        %v2835 = vadd.f32 %v2752, %v2834
        %v2836 = vpop.f32.mrb[0].mxu0
        %v2837 = vadd.f32 %v2754, %v2836
        %v2838 = vpop.f32.mrb[0].mxu0
        %v2839 = vadd.f32 %v2756, %v2838
        %2840 = vmatprep.mubr.bf16.mxu0 %v1744
        %2841 = vmatmul.mubr.bf16.gmra.mrb[0].mxu0 %v1743
        %v2842 = vpop.f32.mrb[0].mxu0
        %v2843 = vadd.f32 %v2760, %v2842
        %v2844 = vpop.f32.mrb[0].mxu0
        %v2845 = vadd.f32 %v2762, %v2844
        %v2846 = vpop.f32.mrb[0].mxu0
        %v2847 = vadd.f32 %v2764, %v2846
        %v2848 = vpop.f32.mrb[0].mxu0
        %v2849 = vadd.f32 %v2766, %v2848
        %2850 = vmatprep.mubr.bf16.mxu0 %v1762
        %2851 = vmatmul.mubr.bf16.gmra.mrb[0].mxu0 %v1761
        %v2852 = vpop.f32.mrb[0].mxu0
        %v2853 = vadd.f32 %v2770, %v2852
        %v2854 = vpop.f32.mrb[0].mxu0
        %v2855 = vadd.f32 %v2772, %v2854
        %v2856 = vpop.f32.mrb[0].mxu0
        %v2857 = vadd.f32 %v2774, %v2856
        %v2858 = vpop.f32.mrb[0].mxu0
        %v2859 = vadd.f32 %v2776, %v2858
        %2860 = vdwg.mxu0
        %2861 = vmatprep.subr.bf16.mxu0 %v944
        %2862 = vmatpush1.bf16.msra.mxu0 %v943
        %2863 = vmatprep.subr.bf16.mxu0 %v948
        %2864 = vmatpush1.bf16.msra.mxu0 %v947
        %2865 = vmatprep.subr.bf16.mxu0 %v952
        %2866 = vmatpush1.bf16.msra.mxu0 %v951
        %2867 = vmatprep.subr.bf16.mxu0 %v956
        %2868 = vmatpush1.bf16.msra.mxu0 %v955
        %2869 = vmatprep.subr.bf16.mxu0 %v960
        %2870 = vmatpush1.bf16.msra.mxu0 %v959
        %2871 = vmatprep.subr.bf16.mxu0 %v964
        %2872 = vmatpush1.bf16.msra.mxu0 %v963
        %2873 = vmatprep.subr.bf16.mxu0 %v968
        %2874 = vmatpush1.bf16.msra.mxu0 %v967
        %2875 = vmatprep.subr.bf16.mxu0 %v972
        %2876 = vmatpush1.bf16.msra.mxu0 %v971
        %2877 = vmatprep.subr.bf16.mxu0 %v976
        %2878 = vmatpush1.bf16.msra.mxu0 %v975
        %2879 = vmatprep.subr.bf16.mxu0 %v980
        %2880 = vmatpush1.bf16.msra.mxu0 %v979
        %2881 = vmatprep.subr.bf16.mxu0 %v984
        %2882 = vmatpush1.bf16.msra.mxu0 %v983
        %2883 = vmatprep.subr.bf16.mxu0 %v988
        %2884 = vmatpush1.bf16.msra.mxu0 %v987
        %2885 = vmatprep.subr.bf16.mxu0 %v992
        %2886 = vmatpush1.bf16.msra.mxu0 %v991
        %2887 = vmatprep.subr.bf16.mxu0 %v996
        %2888 = vmatpush1.bf16.msra.mxu0 %v995
        %2889 = vmatprep.subr.bf16.mxu0 %v1000
        %2890 = vmatpush1.bf16.msra.mxu0 %v999
        %2891 = vmatprep.subr.bf16.mxu0 %v1004
        %2892 = vmatpush1.bf16.msra.mxu0 %v1003
        %2893 = vmatprep.mubr.bf16.mxu0 %v1692
        %2894 = vmatmul.mubr.bf16.gmra.mrb[0].mxu0 %v1691
        %v2895 = vpop.f32.mrb[0].mxu0
        %v2896 = vadd.f32 %v2813, %v2895
        %v2897 = vpop.f32.mrb[0].mxu0
        %v2898 = vadd.f32 %v2815, %v2897
        %v2899 = vpop.f32.mrb[0].mxu0
        %v2900 = vadd.f32 %v2817, %v2899
        %v2901 = vpop.f32.mrb[0].mxu0
        %v2902 = vadd.f32 %v2819, %v2901
        %2903 = vmatprep.mubr.bf16.mxu0 %v1710
        %2904 = vmatmul.mubr.bf16.gmra.mrb[0].mxu0 %v1709
        %v2905 = vpop.f32.mrb[0].mxu0
        %v2906 = vadd.f32 %v2823, %v2905
        %v2907 = vpop.f32.mrb[0].mxu0
        %v2908 = vadd.f32 %v2825, %v2907
        %v2909 = vpop.f32.mrb[0].mxu0
        %v2910 = vadd.f32 %v2827, %v2909
        %v2911 = vpop.f32.mrb[0].mxu0
        %v2912 = vadd.f32 %v2829, %v2911
        %2913 = vmatprep.mubr.bf16.mxu0 %v1728
        %2914 = vmatmul.mubr.bf16.gmra.mrb[0].mxu0 %v1727
        %v2915 = vpop.f32.mrb[0].mxu0
        %v2916 = vadd.f32 %v2833, %v2915
        %v2917 = vpop.f32.mrb[0].mxu0
        %v2918 = vadd.f32 %v2835, %v2917
        %v2919 = vpop.f32.mrb[0].mxu0
        %v2920 = vadd.f32 %v2837, %v2919
        %v2921 = vpop.f32.mrb[0].mxu0
        %v2922 = vadd.f32 %v2839, %v2921
        %2923 = vmatprep.mubr.bf16.mxu0 %v1746
        %2924 = vmatmul.mubr.bf16.gmra.mrb[0].mxu0 %v1745
        %v2925 = vpop.f32.mrb[0].mxu0
        %v2926 = vadd.f32 %v2843, %v2925
        %v2927 = vpop.f32.mrb[0].mxu0
        %v2928 = vadd.f32 %v2845, %v2927
        %v2929 = vpop.f32.mrb[0].mxu0
        %v2930 = vadd.f32 %v2847, %v2929
        %v2931 = vpop.f32.mrb[0].mxu0
        %v2932 = vadd.f32 %v2849, %v2931
        %2933 = vmatprep.mubr.bf16.mxu0 %v1764
        %2934 = vmatmul.mubr.bf16.gmra.mrb[0].mxu0 %v1763
        %v2935 = vpop.f32.mrb[0].mxu0
        %v2936 = vadd.f32 %v2853, %v2935
        %v2937 = vpop.f32.mrb[0].mxu0
        %v2938 = vadd.f32 %v2855, %v2937
        %v2939 = vpop.f32.mrb[0].mxu0
        %v2940 = vadd.f32 %v2857, %v2939
        %v2941 = vpop.f32.mrb[0].mxu0
        %v2942 = vadd.f32 %v2859, %v2941
        %2943 = vdwg.mxu0
        %2944 = vmatprep.subr.bf16.mxu0 %v1008
        %2945 = vmatpush1.bf16.msra.mxu0 %v1007
        %2946 = vmatprep.subr.bf16.mxu0 %v1012
        %2947 = vmatpush1.bf16.msra.mxu0 %v1011
        %2948 = vmatprep.subr.bf16.mxu0 %v1016
        %2949 = vmatpush1.bf16.msra.mxu0 %v1015
        %2950 = vmatprep.subr.bf16.mxu0 %v1020
        %2951 = vmatpush1.bf16.msra.mxu0 %v1019
        %2952 = vmatprep.subr.bf16.mxu0 %v1024
        %2953 = vmatpush1.bf16.msra.mxu0 %v1023
        %2954 = vmatprep.subr.bf16.mxu0 %v1028
        %2955 = vmatpush1.bf16.msra.mxu0 %v1027
        %2956 = vmatprep.subr.bf16.mxu0 %v1032
        %2957 = vmatpush1.bf16.msra.mxu0 %v1031
        %2958 = vmatprep.subr.bf16.mxu0 %v1036
        %2959 = vmatpush1.bf16.msra.mxu0 %v1035
        %2960 = vmatprep.subr.bf16.mxu0 %v1040
        %2961 = vmatpush1.bf16.msra.mxu0 %v1039
        %2962 = vmatprep.subr.bf16.mxu0 %v1044
        %2963 = vmatpush1.bf16.msra.mxu0 %v1043
        %2964 = vmatprep.subr.bf16.mxu0 %v1048
        %2965 = vmatpush1.bf16.msra.mxu0 %v1047
        %2966 = vmatprep.subr.bf16.mxu0 %v1052
        %2967 = vmatpush1.bf16.msra.mxu0 %v1051
        %2968 = vmatprep.subr.bf16.mxu0 %v1056
        %2969 = vmatpush1.bf16.msra.mxu0 %v1055
        %2970 = vmatprep.subr.bf16.mxu0 %v1060
        %2971 = vmatpush1.bf16.msra.mxu0 %v1059
        %2972 = vmatprep.subr.bf16.mxu0 %v1064
        %2973 = vmatpush1.bf16.msra.mxu0 %v1063
        %2974 = vmatprep.subr.bf16.mxu0 %v1068
        %2975 = vmatpush1.bf16.msra.mxu0 %v1067
        %2976 = vmatprep.mubr.bf16.mxu0 %v1694
        %2977 = vmatmul.mubr.bf16.gmra.mrb[0].mxu0 %v1693
        %v2978 = vpop.f32.mrb[0].mxu0
        %v2979 = vadd.f32 %v2896, %v2978
        %v2980 = vpop.f32.mrb[0].mxu0
        %v2981 = vadd.f32 %v2898, %v2980
        %v2982 = vpop.f32.mrb[0].mxu0
        %v2983 = vadd.f32 %v2900, %v2982
        %v2984 = vpop.f32.mrb[0].mxu0
        %v2985 = vadd.f32 %v2902, %v2984
        %2986 = vmatprep.mubr.bf16.mxu0 %v1712
        %2987 = vmatmul.mubr.bf16.gmra.mrb[0].mxu0 %v1711
        %v2988 = vpop.f32.mrb[0].mxu0
        %v2989 = vadd.f32 %v2906, %v2988
        %v2990 = vpop.f32.mrb[0].mxu0
        %v2991 = vadd.f32 %v2908, %v2990
        %v2992 = vpop.f32.mrb[0].mxu0
        %v2993 = vadd.f32 %v2910, %v2992
        %v2994 = vpop.f32.mrb[0].mxu0
        %v2995 = vadd.f32 %v2912, %v2994
        %2996 = vmatprep.mubr.bf16.mxu0 %v1730
        %2997 = vmatmul.mubr.bf16.gmra.mrb[0].mxu0 %v1729
        %v2998 = vpop.f32.mrb[0].mxu0
        %v2999 = vadd.f32 %v2916, %v2998
        %v3000 = vpop.f32.mrb[0].mxu0
        %v3001 = vadd.f32 %v2918, %v3000
        %v3002 = vpop.f32.mrb[0].mxu0
        %v3003 = vadd.f32 %v2920, %v3002
        %v3004 = vpop.f32.mrb[0].mxu0
        %v3005 = vadd.f32 %v2922, %v3004
        %3006 = vmatprep.mubr.bf16.mxu0 %v1748
        %3007 = vmatmul.mubr.bf16.gmra.mrb[0].mxu0 %v1747
        %v3008 = vpop.f32.mrb[0].mxu0
        %v3009 = vadd.f32 %v2926, %v3008
        %v3010 = vpop.f32.mrb[0].mxu0
        %v3011 = vadd.f32 %v2928, %v3010
        %v3012 = vpop.f32.mrb[0].mxu0
        %v3013 = vadd.f32 %v2930, %v3012
        %v3014 = vpop.f32.mrb[0].mxu0
        %v3015 = vadd.f32 %v2932, %v3014
        %3016 = vmatprep.mubr.bf16.mxu0 %v1766
        %3017 = vmatmul.mubr.bf16.gmra.mrb[0].mxu0 %v1765
        %v3018 = vpop.f32.mrb[0].mxu0
        %v3019 = vadd.f32 %v2936, %v3018
        %v3020 = vpop.f32.mrb[0].mxu0
        %v3021 = vadd.f32 %v2938, %v3020
        %v3022 = vpop.f32.mrb[0].mxu0
        %v3023 = vadd.f32 %v2940, %v3022
        %v3024 = vpop.f32.mrb[0].mxu0
        %v3025 = vadd.f32 %v2942, %v3024
        %3026 = vdwg.mxu0
        %3027 = vmatprep.subr.bf16.mxu0 %v1072
        %3028 = vmatpush1.bf16.msra.mxu0 %v1071
        %3029 = vmatprep.subr.bf16.mxu0 %v1076
        %3030 = vmatpush1.bf16.msra.mxu0 %v1075
        %3031 = vmatprep.subr.bf16.mxu0 %v1080
        %3032 = vmatpush1.bf16.msra.mxu0 %v1079
        %3033 = vmatprep.subr.bf16.mxu0 %v1084
        %3034 = vmatpush1.bf16.msra.mxu0 %v1083
        %3035 = vmatprep.subr.bf16.mxu0 %v1088
        %3036 = vmatpush1.bf16.msra.mxu0 %v1087
        %3037 = vmatprep.subr.bf16.mxu0 %v1092
        %3038 = vmatpush1.bf16.msra.mxu0 %v1091
        %3039 = vmatprep.subr.bf16.mxu0 %v1096
        %3040 = vmatpush1.bf16.msra.mxu0 %v1095
        %3041 = vmatprep.subr.bf16.mxu0 %v1100
        %3042 = vmatpush1.bf16.msra.mxu0 %v1099
        %3043 = vmatprep.subr.bf16.mxu0 %v1104
        %3044 = vmatpush1.bf16.msra.mxu0 %v1103
        %3045 = vmatprep.subr.bf16.mxu0 %v1108
        %3046 = vmatpush1.bf16.msra.mxu0 %v1107
        %3047 = vmatprep.subr.bf16.mxu0 %v1112
        %3048 = vmatpush1.bf16.msra.mxu0 %v1111
        %3049 = vmatprep.subr.bf16.mxu0 %v1116
        %3050 = vmatpush1.bf16.msra.mxu0 %v1115
        %3051 = vmatprep.subr.bf16.mxu0 %v1120
        %3052 = vmatpush1.bf16.msra.mxu0 %v1119
        %3053 = vmatprep.subr.bf16.mxu0 %v1124
        %3054 = vmatpush1.bf16.msra.mxu0 %v1123
        %3055 = vmatprep.subr.bf16.mxu0 %v1128
        %3056 = vmatpush1.bf16.msra.mxu0 %v1127
        %3057 = vmatprep.subr.bf16.mxu0 %v1132
        %3058 = vmatpush1.bf16.msra.mxu0 %v1131
        %3059 = vmatprep.mubr.bf16.mxu0 %v1696
        %3060 = vmatmul.mubr.bf16.gmra.mrb[0].mxu0 %v1695
        %v3061 = vpop.f32.mrb[0].mxu0
        %v3062 = vadd.f32 %v2979, %v3061
        %v3063 = vpop.f32.mrb[0].mxu0
        %v3064 = vadd.f32 %v2981, %v3063
        %v3065 = vpop.f32.mrb[0].mxu0
        %v3066 = vadd.f32 %v2983, %v3065
        %v3067 = vpop.f32.mrb[0].mxu0
        %v3068 = vadd.f32 %v2985, %v3067
        %3069 = vmatprep.mubr.bf16.mxu0 %v1714
        %3070 = vmatmul.mubr.bf16.gmra.mrb[0].mxu0 %v1713
        %v3071 = vpop.f32.mrb[0].mxu0
        %v3072 = vadd.f32 %v2989, %v3071
        %v3073 = vpop.f32.mrb[0].mxu0
        %v3074 = vadd.f32 %v2991, %v3073
        %v3075 = vpop.f32.mrb[0].mxu0
        %v3076 = vadd.f32 %v2993, %v3075
        %v3077 = vpop.f32.mrb[0].mxu0
        %v3078 = vadd.f32 %v2995, %v3077
        %3079 = vmatprep.mubr.bf16.mxu0 %v1732
        %3080 = vmatmul.mubr.bf16.gmra.mrb[0].mxu0 %v1731
        %v3081 = vpop.f32.mrb[0].mxu0
        %v3082 = vadd.f32 %v2999, %v3081
        %v3083 = vpop.f32.mrb[0].mxu0
        %v3084 = vadd.f32 %v3001, %v3083
        %v3085 = vpop.f32.mrb[0].mxu0
        %v3086 = vadd.f32 %v3003, %v3085
        %v3087 = vpop.f32.mrb[0].mxu0
        %v3088 = vadd.f32 %v3005, %v3087
        %3089 = vmatprep.mubr.bf16.mxu0 %v1750
        %3090 = vmatmul.mubr.bf16.gmra.mrb[0].mxu0 %v1749
        %v3091 = vpop.f32.mrb[0].mxu0
        %v3092 = vadd.f32 %v3009, %v3091
        %v3093 = vpop.f32.mrb[0].mxu0
        %v3094 = vadd.f32 %v3011, %v3093
        %v3095 = vpop.f32.mrb[0].mxu0
        %v3096 = vadd.f32 %v3013, %v3095
        %v3097 = vpop.f32.mrb[0].mxu0
        %v3098 = vadd.f32 %v3015, %v3097
        %3099 = vmatprep.mubr.bf16.mxu0 %v1768
        %3100 = vmatmul.mubr.bf16.gmra.mrb[0].mxu0 %v1767
        %v3101 = vpop.f32.mrb[0].mxu0
        %v3102 = vadd.f32 %v3019, %v3101
        %v3103 = vpop.f32.mrb[0].mxu0
        %v3104 = vadd.f32 %v3021, %v3103
        %v3105 = vpop.f32.mrb[0].mxu0
        %v3106 = vadd.f32 %v3023, %v3105
        %v3107 = vpop.f32.mrb[0].mxu0
        %v3108 = vadd.f32 %v3025, %v3107
        %3109 = vdwg.mxu0
        %3110 = vmatprep.subr.bf16.mxu0 %v1136
        %3111 = vmatpush1.bf16.msra.mxu0 %v1135
        %3112 = vmatprep.subr.bf16.mxu0 %v1140
        %3113 = vmatpush1.bf16.msra.mxu0 %v1139
        %3114 = vmatprep.subr.bf16.mxu0 %v1144
        %3115 = vmatpush1.bf16.msra.mxu0 %v1143
        %3116 = vmatprep.subr.bf16.mxu0 %v1148
        %3117 = vmatpush1.bf16.msra.mxu0 %v1147
        %3118 = vmatprep.subr.bf16.mxu0 %v1152
        %3119 = vmatpush1.bf16.msra.mxu0 %v1151
        %3120 = vmatprep.subr.bf16.mxu0 %v1156
        %3121 = vmatpush1.bf16.msra.mxu0 %v1155
        %3122 = vmatprep.subr.bf16.mxu0 %v1160
        %3123 = vmatpush1.bf16.msra.mxu0 %v1159
        %3124 = vmatprep.subr.bf16.mxu0 %v1164
        %3125 = vmatpush1.bf16.msra.mxu0 %v1163
        %3126 = vmatprep.subr.bf16.mxu0 %v1168
        %3127 = vmatpush1.bf16.msra.mxu0 %v1167
        %3128 = vmatprep.subr.bf16.mxu0 %v1172
        %3129 = vmatpush1.bf16.msra.mxu0 %v1171
        %3130 = vmatprep.subr.bf16.mxu0 %v1176
        %3131 = vmatpush1.bf16.msra.mxu0 %v1175
        %3132 = vmatprep.subr.bf16.mxu0 %v1180
        %3133 = vmatpush1.bf16.msra.mxu0 %v1179
        %3134 = vmatprep.subr.bf16.mxu0 %v1184
        %3135 = vmatpush1.bf16.msra.mxu0 %v1183
        %3136 = vmatprep.subr.bf16.mxu0 %v1188
        %3137 = vmatpush1.bf16.msra.mxu0 %v1187
        %3138 = vmatprep.subr.bf16.mxu0 %v1192
        %3139 = vmatpush1.bf16.msra.mxu0 %v1191
        %3140 = vmatprep.subr.bf16.mxu0 %v1196
        %3141 = vmatpush1.bf16.msra.mxu0 %v1195
        %3142 = vmatprep.mubr.bf16.mxu0 %v1698
        %3143 = vmatmul.mubr.bf16.gmra.mrb[0].mxu0 %v1697
        %v3144 = vpop.f32.mrb[0].mxu0
        %v3145 = vadd.f32 %v3062, %v3144
        %v3146 = vpop.f32.mrb[0].mxu0
        %v3147 = vadd.f32 %v3064, %v3146
        %v3148 = vpop.f32.mrb[0].mxu0
        %v3149 = vadd.f32 %v3066, %v3148
        %v3150 = vpop.f32.mrb[0].mxu0
        %v3151 = vadd.f32 %v3068, %v3150
        %3152 = vmatprep.mubr.bf16.mxu0 %v1716
        %3153 = vmatmul.mubr.bf16.gmra.mrb[0].mxu0 %v1715
        %v3154 = vpop.f32.mrb[0].mxu0
        %v3155 = vadd.f32 %v3072, %v3154
        %v3156 = vpop.f32.mrb[0].mxu0
        %v3157 = vadd.f32 %v3074, %v3156
        %v3158 = vpop.f32.mrb[0].mxu0
        %v3159 = vadd.f32 %v3076, %v3158
        %v3160 = vpop.f32.mrb[0].mxu0
        %v3161 = vadd.f32 %v3078, %v3160
        %3162 = vmatprep.mubr.bf16.mxu0 %v1734
        %3163 = vmatmul.mubr.bf16.gmra.mrb[0].mxu0 %v1733
        %v3164 = vpop.f32.mrb[0].mxu0
        %v3165 = vadd.f32 %v3082, %v3164
        %v3166 = vpop.f32.mrb[0].mxu0
        %v3167 = vadd.f32 %v3084, %v3166
        %v3168 = vpop.f32.mrb[0].mxu0
        %v3169 = vadd.f32 %v3086, %v3168
        %v3170 = vpop.f32.mrb[0].mxu0
        %v3171 = vadd.f32 %v3088, %v3170
        %3172 = vmatprep.mubr.bf16.mxu0 %v1752
        %3173 = vmatmul.mubr.bf16.gmra.mrb[0].mxu0 %v1751
        %v3174 = vpop.f32.mrb[0].mxu0
        %v3175 = vadd.f32 %v3092, %v3174
        %v3176 = vpop.f32.mrb[0].mxu0
        %v3177 = vadd.f32 %v3094, %v3176
        %v3178 = vpop.f32.mrb[0].mxu0
        %v3179 = vadd.f32 %v3096, %v3178
        %v3180 = vpop.f32.mrb[0].mxu0
        %v3181 = vadd.f32 %v3098, %v3180
        %3182 = vmatprep.mubr.bf16.mxu0 %v1770
        %3183 = vmatmul.mubr.bf16.gmra.mrb[0].mxu0 %v1769
        %v3184 = vpop.f32.mrb[0].mxu0
        %v3185 = vadd.f32 %v3102, %v3184
        %v3186 = vpop.f32.mrb[0].mxu0
        %v3187 = vadd.f32 %v3104, %v3186
        %v3188 = vpop.f32.mrb[0].mxu0
        %v3189 = vadd.f32 %v3106, %v3188
        %v3190 = vpop.f32.mrb[0].mxu0
        %v3191 = vadd.f32 %v3108, %v3190
        %3192 = vdwg.mxu0
        %3193 = vmatprep.subr.bf16.mxu0 %v1200
        %3194 = vmatpush1.bf16.msra.mxu0 %v1199
        %3195 = vmatprep.subr.bf16.mxu0 %v1204
        %3196 = vmatpush1.bf16.msra.mxu0 %v1203
        %3197 = vmatprep.subr.bf16.mxu0 %v1208
        %3198 = vmatpush1.bf16.msra.mxu0 %v1207
        %3199 = vmatprep.subr.bf16.mxu0 %v1212
        %3200 = vmatpush1.bf16.msra.mxu0 %v1211
        %3201 = vmatprep.subr.bf16.mxu0 %v1216
        %3202 = vmatpush1.bf16.msra.mxu0 %v1215
        %3203 = vmatprep.subr.bf16.mxu0 %v1220
        %3204 = vmatpush1.bf16.msra.mxu0 %v1219
        %3205 = vmatprep.subr.bf16.mxu0 %v1224
        %3206 = vmatpush1.bf16.msra.mxu0 %v1223
        %3207 = vmatprep.subr.bf16.mxu0 %v1228
        %3208 = vmatpush1.bf16.msra.mxu0 %v1227
        %3209 = vmatprep.subr.bf16.mxu0 %v1232
        %3210 = vmatpush1.bf16.msra.mxu0 %v1231
        %3211 = vmatprep.subr.bf16.mxu0 %v1236
        %3212 = vmatpush1.bf16.msra.mxu0 %v1235
        %3213 = vmatprep.subr.bf16.mxu0 %v1240
        %3214 = vmatpush1.bf16.msra.mxu0 %v1239
        %3215 = vmatprep.subr.bf16.mxu0 %v1244
        %3216 = vmatpush1.bf16.msra.mxu0 %v1243
        %3217 = vmatprep.subr.bf16.mxu0 %v1248
        %3218 = vmatpush1.bf16.msra.mxu0 %v1247
        %3219 = vmatprep.subr.bf16.mxu0 %v1252
        %3220 = vmatpush1.bf16.msra.mxu0 %v1251
        %3221 = vmatprep.subr.bf16.mxu0 %v1256
        %3222 = vmatpush1.bf16.msra.mxu0 %v1255
        %3223 = vmatprep.subr.bf16.mxu0 %v1260
        %3224 = vmatpush1.bf16.msra.mxu0 %v1259
        %3225 = vmatprep.mubr.bf16.mxu0 %v1700
        %3226 = vmatmul.mubr.bf16.gmra.mrb[0].mxu0 %v1699
        %v3227 = vpop.f32.mrb[0].mxu0
        %v3228 = vadd.f32 %v3145, %v3227
        %v3229 = vpop.f32.mrb[0].mxu0
        %v3230 = vadd.f32 %v3147, %v3229
        %v3231 = vpop.f32.mrb[0].mxu0
        %v3232 = vadd.f32 %v3149, %v3231
        %v3233 = vpop.f32.mrb[0].mxu0
        %v3234 = vadd.f32 %v3151, %v3233
        %3235 = vmatprep.mubr.bf16.mxu0 %v1718
        %3236 = vmatmul.mubr.bf16.gmra.mrb[0].mxu0 %v1717
        %v3237 = vpop.f32.mrb[0].mxu0
        %v3238 = vadd.f32 %v3155, %v3237
        %v3239 = vpop.f32.mrb[0].mxu0
        %v3240 = vadd.f32 %v3157, %v3239
        %v3241 = vpop.f32.mrb[0].mxu0
        %v3242 = vadd.f32 %v3159, %v3241
        %v3243 = vpop.f32.mrb[0].mxu0
        %v3244 = vadd.f32 %v3161, %v3243
        %3245 = vmatprep.mubr.bf16.mxu0 %v1736
        %3246 = vmatmul.mubr.bf16.gmra.mrb[0].mxu0 %v1735
        %v3247 = vpop.f32.mrb[0].mxu0
        %v3248 = vadd.f32 %v3165, %v3247
        %v3249 = vpop.f32.mrb[0].mxu0
        %v3250 = vadd.f32 %v3167, %v3249
        %v3251 = vpop.f32.mrb[0].mxu0
        %v3252 = vadd.f32 %v3169, %v3251
        %v3253 = vpop.f32.mrb[0].mxu0
        %v3254 = vadd.f32 %v3171, %v3253
        %3255 = vmatprep.mubr.bf16.mxu0 %v1754
        %3256 = vmatmul.mubr.bf16.gmra.mrb[0].mxu0 %v1753
        %v3257 = vpop.f32.mrb[0].mxu0
        %v3258 = vadd.f32 %v3175, %v3257
        %v3259 = vpop.f32.mrb[0].mxu0
        %v3260 = vadd.f32 %v3177, %v3259
        %v3261 = vpop.f32.mrb[0].mxu0
        %v3262 = vadd.f32 %v3179, %v3261
        %v3263 = vpop.f32.mrb[0].mxu0
        %v3264 = vadd.f32 %v3181, %v3263
        %3265 = vmatprep.mubr.bf16.mxu0 %v1772
        %3266 = vmatmul.mubr.bf16.gmra.mrb[0].mxu0 %v1771
        %v3267 = vpop.f32.mrb[0].mxu0
        %v3268 = vadd.f32 %v3185, %v3267
        %v3269 = vpop.f32.mrb[0].mxu0
        %v3270 = vadd.f32 %v3187, %v3269
        %v3271 = vpop.f32.mrb[0].mxu0
        %v3272 = vadd.f32 %v3189, %v3271
        %v3273 = vpop.f32.mrb[0].mxu0
        %v3274 = vadd.f32 %v3191, %v3273
        %3275 = vdwg.mxu0
        %3276 = vmatprep.subr.bf16.mxu0 %v1264
        %3277 = vmatpush1.bf16.msra.mxu0 %v1263
        %3278 = vmatprep.subr.bf16.mxu0 %v1268
        %3279 = vmatpush1.bf16.msra.mxu0 %v1267
        %3280 = vmatprep.subr.bf16.mxu0 %v1272
        %3281 = vmatpush1.bf16.msra.mxu0 %v1271
        %3282 = vmatprep.subr.bf16.mxu0 %v1276
        %3283 = vmatpush1.bf16.msra.mxu0 %v1275
        %3284 = vmatprep.subr.bf16.mxu0 %v1280
        %3285 = vmatpush1.bf16.msra.mxu0 %v1279
        %3286 = vmatprep.subr.bf16.mxu0 %v1284
        %3287 = vmatpush1.bf16.msra.mxu0 %v1283
        %3288 = vmatprep.subr.bf16.mxu0 %v1288
        %3289 = vmatpush1.bf16.msra.mxu0 %v1287
        %3290 = vmatprep.subr.bf16.mxu0 %v1292
        %3291 = vmatpush1.bf16.msra.mxu0 %v1291
        %3292 = vmatprep.subr.bf16.mxu0 %v1296
        %3293 = vmatpush1.bf16.msra.mxu0 %v1295
        %3294 = vmatprep.subr.bf16.mxu0 %v1300
        %3295 = vmatpush1.bf16.msra.mxu0 %v1299
        %3296 = vmatprep.subr.bf16.mxu0 %v1304
        %3297 = vmatpush1.bf16.msra.mxu0 %v1303
        %3298 = vmatprep.subr.bf16.mxu0 %v1308
        %3299 = vmatpush1.bf16.msra.mxu0 %v1307
        %3300 = vmatprep.subr.bf16.mxu0 %v1312
        %3301 = vmatpush1.bf16.msra.mxu0 %v1311
        %3302 = vmatprep.subr.bf16.mxu0 %v1316
        %3303 = vmatpush1.bf16.msra.mxu0 %v1315
        %3304 = vmatprep.subr.bf16.mxu0 %v1320
        %3305 = vmatpush1.bf16.msra.mxu0 %v1319
        %3306 = vmatprep.subr.bf16.mxu0 %v1324
        %3307 = vmatpush1.bf16.msra.mxu0 %v1323
        %3308 = vmatprep.mubr.bf16.mxu0 %v1702
        %3309 = vmatmul.mubr.bf16.gmra.mrb[0].mxu0 %v1701
        %v3310 = vpop.f32.mrb[0].mxu0
        %v3311 = vadd.f32 %v3228, %v3310
        %v3312 = vpop.f32.mrb[0].mxu0
        %v3313 = vadd.f32 %v3230, %v3312
        %v3314 = vpop.f32.mrb[0].mxu0
        %v3315 = vadd.f32 %v3232, %v3314
        %v3316 = vpop.f32.mrb[0].mxu0
        %v3317 = vadd.f32 %v3234, %v3316
        %3318 = vmatprep.mubr.bf16.mxu0 %v1720
        %3319 = vmatmul.mubr.bf16.gmra.mrb[0].mxu0 %v1719
        %v3320 = vpop.f32.mrb[0].mxu0
        %v3321 = vadd.f32 %v3238, %v3320
        %v3322 = vpop.f32.mrb[0].mxu0
        %v3323 = vadd.f32 %v3240, %v3322
        %v3324 = vpop.f32.mrb[0].mxu0
        %v3325 = vadd.f32 %v3242, %v3324
        %v3326 = vpop.f32.mrb[0].mxu0
        %v3327 = vadd.f32 %v3244, %v3326
        %3328 = vmatprep.mubr.bf16.mxu0 %v1738
        %3329 = vmatmul.mubr.bf16.gmra.mrb[0].mxu0 %v1737
        %v3330 = vpop.f32.mrb[0].mxu0
        %v3331 = vadd.f32 %v3248, %v3330
        %v3332 = vpop.f32.mrb[0].mxu0
        %v3333 = vadd.f32 %v3250, %v3332
        %v3334 = vpop.f32.mrb[0].mxu0
        %v3335 = vadd.f32 %v3252, %v3334
        %v3336 = vpop.f32.mrb[0].mxu0
        %v3337 = vadd.f32 %v3254, %v3336
        %3338 = vmatprep.mubr.bf16.mxu0 %v1756
        %3339 = vmatmul.mubr.bf16.gmra.mrb[0].mxu0 %v1755
        %v3340 = vpop.f32.mrb[0].mxu0
        %v3341 = vadd.f32 %v3258, %v3340
        %v3342 = vpop.f32.mrb[0].mxu0
        %v3343 = vadd.f32 %v3260, %v3342
        %v3344 = vpop.f32.mrb[0].mxu0
        %v3345 = vadd.f32 %v3262, %v3344
        %v3346 = vpop.f32.mrb[0].mxu0
        %v3347 = vadd.f32 %v3264, %v3346
        %3348 = vmatprep.mubr.bf16.mxu0 %v1774
        %3349 = vmatmul.mubr.bf16.gmra.mrb[0].mxu0 %v1773
        %v3350 = vpop.f32.mrb[0].mxu0
        %v3351 = vadd.f32 %v3268, %v3350
        %v3352 = vpop.f32.mrb[0].mxu0
        %v3353 = vadd.f32 %v3270, %v3352
        %v3354 = vpop.f32.mrb[0].mxu0
        %v3355 = vadd.f32 %v3272, %v3354
        %v3356 = vpop.f32.mrb[0].mxu0
        %v3357 = vadd.f32 %v3274, %v3356
        %3358 = vdwg.mxu0
        %v3359 = vld [vmem:[%s384] sm:$0xf]
        %v3361 = vlaneseq
        %v3362 = vshrl.u32 %v3361, 7
        %v3363 = vsub.s32 0, %v3362
        %v3364 = vrot.slane %v3359, %v3363
        %v3365 = vlaneseq
        %v3366 = vshrl.u32 %v3365, 7
        %v3367 = vsub.s32 1, %v3366
        %v3368 = vrot.slane %v3359, %v3367
        %v3369 = vlaneseq
        %v3370 = vshrl.u32 %v3369, 7
        %v3371 = vsub.s32 2, %v3370
        %v3372 = vrot.slane %v3359, %v3371
        %v3373 = vlaneseq
        %v3374 = vshrl.u32 %v3373, 7
        %v3375 = vsub.s32 3, %v3374
        %v3376 = vrot.slane %v3359, %v3375
        %v3381 = vmul.f32 %v2564, %v3364
        %v3382 = vmul.f32 %v2566, %v3368
        %v3383 = vmul.f32 %v3311, %v3372
        %v3384 = vmul.f32 %v3313, %v3376
        %v3385 = vmul.f32 %v2568, %v3364
        %v3386 = vmul.f32 %v2570, %v3368
        %v3387 = vmul.f32 %v3315, %v3372
        %v3388 = vmul.f32 %v3317, %v3376
        %v3389 = vmul.f32 %v2574, %v3364
        %v3390 = vmul.f32 %v2576, %v3368
        %v3391 = vmul.f32 %v3321, %v3372
        %v3392 = vmul.f32 %v3323, %v3376
        %v3393 = vmul.f32 %v2578, %v3364
        %v3394 = vmul.f32 %v2580, %v3368
        %v3395 = vmul.f32 %v3325, %v3372
        %v3396 = vmul.f32 %v3327, %v3376
        %v3397 = vmul.f32 %v2584, %v3364
        %v3398 = vmul.f32 %v2586, %v3368
        %v3399 = vmul.f32 %v3331, %v3372
        %v3400 = vmul.f32 %v3333, %v3376
        %v3401 = vmul.f32 %v2588, %v3364
        %v3402 = vmul.f32 %v2590, %v3368
        %v3403 = vmul.f32 %v3335, %v3372
        %v3404 = vmul.f32 %v3337, %v3376
        %v3405 = vmul.f32 %v2594, %v3364
        %v3406 = vmul.f32 %v2596, %v3368
        %v3407 = vmul.f32 %v3341, %v3372
        %v3408 = vmul.f32 %v3343, %v3376
        %v3409 = vmul.f32 %v2598, %v3364
        %v3410 = vmul.f32 %v2600, %v3368
        %v3411 = vmul.f32 %v3345, %v3372
        %v3412 = vmul.f32 %v3347, %v3376
        %v3413 = vmul.f32 %v2604, %v3364
        %v3414 = vmul.f32 %v2606, %v3368
        %v3415 = vmul.f32 %v3351, %v3372
        %v3416 = vmul.f32 %v3353, %v3376
        %v3417 = vmul.f32 %v2608, %v3364
        %v3418 = vmul.f32 %v2610, %v3368
        %v3419 = vmul.f32 %v3355, %v3372
        %v3420 = vmul.f32 %v3357, %v3376
        %v3421 = vld [vmem:[%s393] sm:$0xf]
        %v3423 = vlaneseq
        %v3424 = vshrl.u32 %v3423, 7
        %v3425 = vsub.s32 0, %v3424
        %v3426 = vrot.slane %v3421, %v3425
        %v3427 = vlaneseq
        %v3428 = vshrl.u32 %v3427, 7
        %v3429 = vsub.s32 1, %v3428
        %v3430 = vrot.slane %v3421, %v3429
        %v3431 = vlaneseq
        %v3432 = vshrl.u32 %v3431, 7
        %v3433 = vsub.s32 2, %v3432
        %v3434 = vrot.slane %v3421, %v3433
        %v3435 = vlaneseq
        %v3436 = vshrl.u32 %v3435, 7
        %v3437 = vsub.s32 3, %v3436
        %v3438 = vrot.slane %v3421, %v3437
        %v3443 = vadd.f32 %v3381, %v3426
        %v3444 = vadd.f32 %v3382, %v3430
        %v3445 = vadd.f32 %v3383, %v3434
        %v3446 = vadd.f32 %v3384, %v3438
        %v3447 = vadd.f32 %v3385, %v3426
        %v3448 = vadd.f32 %v3386, %v3430
        %v3449 = vadd.f32 %v3387, %v3434
        %v3450 = vadd.f32 %v3388, %v3438
        %v3451 = vadd.f32 %v3389, %v3426
        %v3452 = vadd.f32 %v3390, %v3430
        %v3453 = vadd.f32 %v3391, %v3434
        %v3454 = vadd.f32 %v3392, %v3438
        %v3455 = vadd.f32 %v3393, %v3426
        %v3456 = vadd.f32 %v3394, %v3430
        %v3457 = vadd.f32 %v3395, %v3434
        %v3458 = vadd.f32 %v3396, %v3438
        %v3459 = vadd.f32 %v3397, %v3426
        %v3460 = vadd.f32 %v3398, %v3430
        %v3461 = vadd.f32 %v3399, %v3434
        %v3462 = vadd.f32 %v3400, %v3438
        %v3463 = vadd.f32 %v3401, %v3426
        %v3464 = vadd.f32 %v3402, %v3430
        %v3465 = vadd.f32 %v3403, %v3434
        %v3466 = vadd.f32 %v3404, %v3438
        %v3467 = vadd.f32 %v3405, %v3426
        %v3468 = vadd.f32 %v3406, %v3430
        %v3469 = vadd.f32 %v3407, %v3434
        %v3470 = vadd.f32 %v3408, %v3438
        %v3471 = vadd.f32 %v3409, %v3426
        %v3472 = vadd.f32 %v3410, %v3430
        %v3473 = vadd.f32 %v3411, %v3434
        %v3474 = vadd.f32 %v3412, %v3438
        %v3475 = vadd.f32 %v3413, %v3426
        %v3476 = vadd.f32 %v3414, %v3430
        %v3477 = vadd.f32 %v3415, %v3434
        %v3478 = vadd.f32 %v3416, %v3438
        %v3479 = vadd.f32 %v3417, %v3426
        %v3480 = vadd.f32 %v3418, %v3430
        %v3481 = vadd.f32 %v3419, %v3434
        %v3482 = vadd.f32 %v3420, %v3438
        %v3483 = vxor.u32 %v3443, 2147483648
        %v3484 = vxor.u32 %v3444, 2147483648
        %v3485 = vxor.u32 %v3445, 2147483648
        %v3486 = vxor.u32 %v3446, 2147483648
        %v3487 = vxor.u32 %v3447, 2147483648
        %v3488 = vxor.u32 %v3448, 2147483648
        %v3489 = vxor.u32 %v3449, 2147483648
        %v3490 = vxor.u32 %v3450, 2147483648
        %v3491 = vxor.u32 %v3451, 2147483648
        %v3492 = vxor.u32 %v3452, 2147483648
        %v3493 = vxor.u32 %v3453, 2147483648
        %v3494 = vxor.u32 %v3454, 2147483648
        %v3495 = vxor.u32 %v3455, 2147483648
        %v3496 = vxor.u32 %v3456, 2147483648
        %v3497 = vxor.u32 %v3457, 2147483648
        %v3498 = vxor.u32 %v3458, 2147483648
        %v3499 = vxor.u32 %v3459, 2147483648
        %v3500 = vxor.u32 %v3460, 2147483648
        %v3501 = vxor.u32 %v3461, 2147483648
        %v3502 = vxor.u32 %v3462, 2147483648
        %v3503 = vxor.u32 %v3463, 2147483648
        %v3504 = vxor.u32 %v3464, 2147483648
        %v3505 = vxor.u32 %v3465, 2147483648
        %v3506 = vxor.u32 %v3466, 2147483648
        %v3507 = vxor.u32 %v3467, 2147483648
        %v3508 = vxor.u32 %v3468, 2147483648
        %v3509 = vxor.u32 %v3469, 2147483648
        %v3510 = vxor.u32 %v3470, 2147483648
        %v3511 = vxor.u32 %v3471, 2147483648
        %v3512 = vxor.u32 %v3472, 2147483648
        %v3513 = vxor.u32 %v3473, 2147483648
        %v3514 = vxor.u32 %v3474, 2147483648
        %v3515 = vxor.u32 %v3475, 2147483648
        %v3516 = vxor.u32 %v3476, 2147483648
        %v3517 = vxor.u32 %v3477, 2147483648
        %v3518 = vxor.u32 %v3478, 2147483648
        %v3519 = vxor.u32 %v3479, 2147483648
        %v3520 = vxor.u32 %v3480, 2147483648
        %v3521 = vxor.u32 %v3481, 2147483648
        %v3522 = vxor.u32 %v3482, 2147483648
        %v3523 = vmul.f32 %v3483, 1.442695
        %v3524 = vpow.pop %v3523
        %v3525 = vmul.f32 %v3484, 1.442695
        %v3526 = vpow.pop %v3525
        %v3527 = vmul.f32 %v3485, 1.442695
        %v3528 = vpow.pop %v3527
        %v3529 = vmul.f32 %v3486, 1.442695
        %v3530 = vpow.pop %v3529
        %v3531 = vmul.f32 %v3487, 1.442695
        %v3532 = vpow.pop %v3531
        %v3533 = vmul.f32 %v3488, 1.442695
        %v3534 = vpow.pop %v3533
        %v3535 = vmul.f32 %v3489, 1.442695
        %v3536 = vpow.pop %v3535
        %v3537 = vmul.f32 %v3490, 1.442695
        %v3538 = vpow.pop %v3537
        %v3539 = vmul.f32 %v3491, 1.442695
        %v3540 = vpow.pop %v3539
        %v3541 = vmul.f32 %v3492, 1.442695
        %v3542 = vpow.pop %v3541
        %v3543 = vmul.f32 %v3493, 1.442695
        %v3544 = vpow.pop %v3543
        %v3545 = vmul.f32 %v3494, 1.442695
        %v3546 = vpow.pop %v3545
        %v3547 = vmul.f32 %v3495, 1.442695
        %v3548 = vpow.pop %v3547
        %v3549 = vmul.f32 %v3496, 1.442695
        %v3550 = vpow.pop %v3549
        %v3551 = vmul.f32 %v3497, 1.442695
        %v3552 = vpow.pop %v3551
        %v3553 = vmul.f32 %v3498, 1.442695
        %v3554 = vpow.pop %v3553
        %v3555 = vmul.f32 %v3499, 1.442695
        %v3556 = vpow.pop %v3555
        %v3557 = vmul.f32 %v3500, 1.442695
        %v3558 = vpow.pop %v3557
        %v3559 = vmul.f32 %v3501, 1.442695
        %v3560 = vpow.pop %v3559
        %v3561 = vmul.f32 %v3502, 1.442695
        %v3562 = vpow.pop %v3561
        %v3563 = vmul.f32 %v3503, 1.442695
        %v3564 = vpow.pop %v3563
        %v3565 = vmul.f32 %v3504, 1.442695
        %v3566 = vpow.pop %v3565
        %v3567 = vmul.f32 %v3505, 1.442695
        %v3568 = vpow.pop %v3567
        %v3569 = vmul.f32 %v3506, 1.442695
        %v3570 = vpow.pop %v3569
        %v3571 = vmul.f32 %v3507, 1.442695
        %v3572 = vpow.pop %v3571
        %v3573 = vmul.f32 %v3508, 1.442695
        %v3574 = vpow.pop %v3573
        %v3575 = vmul.f32 %v3509, 1.442695
        %v3576 = vpow.pop %v3575
        %v3577 = vmul.f32 %v3510, 1.442695
        %v3578 = vpow.pop %v3577
        %v3579 = vmul.f32 %v3511, 1.442695
        %v3580 = vpow.pop %v3579
        %v3581 = vmul.f32 %v3512, 1.442695
        %v3582 = vpow.pop %v3581
        %v3583 = vmul.f32 %v3513, 1.442695
        %v3584 = vpow.pop %v3583
        %v3585 = vmul.f32 %v3514, 1.442695
        %v3586 = vpow.pop %v3585
        %v3587 = vmul.f32 %v3515, 1.442695
        %v3588 = vpow.pop %v3587
        %v3589 = vmul.f32 %v3516, 1.442695
        %v3590 = vpow.pop %v3589
        %v3591 = vmul.f32 %v3517, 1.442695
        %v3592 = vpow.pop %v3591
        %v3593 = vmul.f32 %v3518, 1.442695
        %v3594 = vpow.pop %v3593
        %v3595 = vmul.f32 %v3519, 1.442695
        %v3596 = vpow.pop %v3595
        %v3597 = vmul.f32 %v3520, 1.442695
        %v3598 = vpow.pop %v3597
        %v3599 = vmul.f32 %v3521, 1.442695
        %v3600 = vpow.pop %v3599
        %v3601 = vmul.f32 %v3522, 1.442695
        %v3602 = vpow.pop %v3601
        %v3603 = vadd.f32 %v3524, 1.0
        %v3604 = vadd.f32 %v3526, 1.0
        %v3605 = vadd.f32 %v3528, 1.0
        %v3606 = vadd.f32 %v3530, 1.0
        %v3607 = vadd.f32 %v3532, 1.0
        %v3608 = vadd.f32 %v3534, 1.0
        %v3609 = vadd.f32 %v3536, 1.0
        %v3610 = vadd.f32 %v3538, 1.0
        %v3611 = vadd.f32 %v3540, 1.0
        %v3612 = vadd.f32 %v3542, 1.0
        %v3613 = vadd.f32 %v3544, 1.0
        %v3614 = vadd.f32 %v3546, 1.0
        %v3615 = vadd.f32 %v3548, 1.0
        %v3616 = vadd.f32 %v3550, 1.0
        %v3617 = vadd.f32 %v3552, 1.0
        %v3618 = vadd.f32 %v3554, 1.0
        %v3619 = vadd.f32 %v3556, 1.0
        %v3620 = vadd.f32 %v3558, 1.0
        %v3621 = vadd.f32 %v3560, 1.0
        %v3622 = vadd.f32 %v3562, 1.0
        %v3623 = vadd.f32 %v3564, 1.0
        %v3624 = vadd.f32 %v3566, 1.0
        %v3625 = vadd.f32 %v3568, 1.0
        %v3626 = vadd.f32 %v3570, 1.0
        %v3627 = vadd.f32 %v3572, 1.0
        %v3628 = vadd.f32 %v3574, 1.0
        %v3629 = vadd.f32 %v3576, 1.0
        %v3630 = vadd.f32 %v3578, 1.0
        %v3631 = vadd.f32 %v3580, 1.0
        %v3632 = vadd.f32 %v3582, 1.0
        %v3633 = vadd.f32 %v3584, 1.0
        %v3634 = vadd.f32 %v3586, 1.0
        %v3635 = vadd.f32 %v3588, 1.0
        %v3636 = vadd.f32 %v3590, 1.0
        %v3637 = vadd.f32 %v3592, 1.0
        %v3638 = vadd.f32 %v3594, 1.0
        %v3639 = vadd.f32 %v3596, 1.0
        %v3640 = vadd.f32 %v3598, 1.0
        %v3641 = vadd.f32 %v3600, 1.0
        %v3642 = vadd.f32 %v3602, 1.0
        %v3643 = vrcp.pop %v3603
        %v3644 = vmul.f32 1.0, %v3643
        %v3645 = vrcp.pop %v3604
        %v3646 = vmul.f32 1.0, %v3645
        %v3647 = vrcp.pop %v3605
        %v3648 = vmul.f32 1.0, %v3647
        %v3649 = vrcp.pop %v3606
        %v3650 = vmul.f32 1.0, %v3649
        %v3651 = vrcp.pop %v3607
        %v3652 = vmul.f32 1.0, %v3651
        %v3653 = vrcp.pop %v3608
        %v3654 = vmul.f32 1.0, %v3653
        %v3655 = vrcp.pop %v3609
        %v3656 = vmul.f32 1.0, %v3655
        %v3657 = vrcp.pop %v3610
        %v3658 = vmul.f32 1.0, %v3657
        %v3659 = vrcp.pop %v3611
        %v3660 = vmul.f32 1.0, %v3659
        %v3661 = vrcp.pop %v3612
        %v3662 = vmul.f32 1.0, %v3661
        %v3663 = vrcp.pop %v3613
        %v3664 = vmul.f32 1.0, %v3663
        %v3665 = vrcp.pop %v3614
        %v3666 = vmul.f32 1.0, %v3665
        %v3667 = vrcp.pop %v3615
        %v3668 = vmul.f32 1.0, %v3667
        %v3669 = vrcp.pop %v3616
        %v3670 = vmul.f32 1.0, %v3669
        %v3671 = vrcp.pop %v3617
        %v3672 = vmul.f32 1.0, %v3671
        %v3673 = vrcp.pop %v3618
        %v3674 = vmul.f32 1.0, %v3673
        %v3675 = vrcp.pop %v3619
        %v3676 = vmul.f32 1.0, %v3675
        %v3677 = vrcp.pop %v3620
        %v3678 = vmul.f32 1.0, %v3677
        %v3679 = vrcp.pop %v3621
        %v3680 = vmul.f32 1.0, %v3679
        %v3681 = vrcp.pop %v3622
        %v3682 = vmul.f32 1.0, %v3681
        %v3683 = vrcp.pop %v3623
        %v3684 = vmul.f32 1.0, %v3683
        %v3685 = vrcp.pop %v3624
        %v3686 = vmul.f32 1.0, %v3685
        %v3687 = vrcp.pop %v3625
        %v3688 = vmul.f32 1.0, %v3687
        %v3689 = vrcp.pop %v3626
        %v3690 = vmul.f32 1.0, %v3689
        %v3691 = vrcp.pop %v3627
        %v3692 = vmul.f32 1.0, %v3691
        %v3693 = vrcp.pop %v3628
        %v3694 = vmul.f32 1.0, %v3693
        %v3695 = vrcp.pop %v3629
        %v3696 = vmul.f32 1.0, %v3695
        %v3697 = vrcp.pop %v3630
        %v3698 = vmul.f32 1.0, %v3697
        %v3699 = vrcp.pop %v3631
        %v3700 = vmul.f32 1.0, %v3699
        %v3701 = vrcp.pop %v3632
        %v3702 = vmul.f32 1.0, %v3701
        %v3703 = vrcp.pop %v3633
        %v3704 = vmul.f32 1.0, %v3703
        %v3705 = vrcp.pop %v3634
        %v3706 = vmul.f32 1.0, %v3705
        %v3707 = vrcp.pop %v3635
        %v3708 = vmul.f32 1.0, %v3707
        %v3709 = vrcp.pop %v3636
        %v3710 = vmul.f32 1.0, %v3709
        %v3711 = vrcp.pop %v3637
        %v3712 = vmul.f32 1.0, %v3711
        %v3713 = vrcp.pop %v3638
        %v3714 = vmul.f32 1.0, %v3713
        %v3715 = vrcp.pop %v3639
        %v3716 = vmul.f32 1.0, %v3715
        %v3717 = vrcp.pop %v3640
        %v3718 = vmul.f32 1.0, %v3717
        %v3719 = vrcp.pop %v3641
        %v3720 = vmul.f32 1.0, %v3719
        %v3721 = vrcp.pop %v3642
        %v3722 = vmul.f32 1.0, %v3721
        %v3723 = vmul.f32 %v3443, %v3644
        %v3724 = vmul.f32 %v3444, %v3646
        %v3725 = vmul.f32 %v3445, %v3648
        %v3726 = vmul.f32 %v3446, %v3650
        %v3727 = vmul.f32 %v3447, %v3652
        %v3728 = vmul.f32 %v3448, %v3654
        %v3729 = vmul.f32 %v3449, %v3656
        %v3730 = vmul.f32 %v3450, %v3658
        %v3731 = vmul.f32 %v3451, %v3660
        %v3732 = vmul.f32 %v3452, %v3662
        %v3733 = vmul.f32 %v3453, %v3664
        %v3734 = vmul.f32 %v3454, %v3666
        %v3735 = vmul.f32 %v3455, %v3668
        %v3736 = vmul.f32 %v3456, %v3670
        %v3737 = vmul.f32 %v3457, %v3672
        %v3738 = vmul.f32 %v3458, %v3674
        %v3739 = vmul.f32 %v3459, %v3676
        %v3740 = vmul.f32 %v3460, %v3678
        %v3741 = vmul.f32 %v3461, %v3680
        %v3742 = vmul.f32 %v3462, %v3682
        %v3743 = vmul.f32 %v3463, %v3684
        %v3744 = vmul.f32 %v3464, %v3686
        %v3745 = vmul.f32 %v3465, %v3688
        %v3746 = vmul.f32 %v3466, %v3690
        %v3747 = vmul.f32 %v3467, %v3692
        %v3748 = vmul.f32 %v3468, %v3694
        %v3749 = vmul.f32 %v3469, %v3696
        %v3750 = vmul.f32 %v3470, %v3698
        %v3751 = vmul.f32 %v3471, %v3700
        %v3752 = vmul.f32 %v3472, %v3702
        %v3753 = vmul.f32 %v3473, %v3704
        %v3754 = vmul.f32 %v3474, %v3706
        %v3755 = vmul.f32 %v3475, %v3708
        %v3756 = vmul.f32 %v3476, %v3710
        %v3757 = vmul.f32 %v3477, %v3712
        %v3758 = vmul.f32 %v3478, %v3714
        %v3759 = vmul.f32 %v3479, %v3716
        %v3760 = vmul.f32 %v3480, %v3718
        %v3761 = vmul.f32 %v3481, %v3720
        %v3762 = vmul.f32 %v3482, %v3722
        %v3763 = vld [vmem:[#allocation5] sm:$0x1]
        %v3764 = vpack.c.bf16 %v3727, %v3723
        %v3765 = vpack.c.bf16 %v3728, %v3724
        %v3766 = vpack.c.bf16 %v3729, %v3725
        %v3767 = vpack.c.bf16 %v3730, %v3726
        %v3768 = vpack.c.bf16 %v3735, %v3731
        %v3769 = vpack.c.bf16 %v3736, %v3732
        %v3770 = vpack.c.bf16 %v3737, %v3733
        %v3771 = vpack.c.bf16 %v3738, %v3734
        %v3772 = vpack.c.bf16 %v3743, %v3739
        %v3773 = vpack.c.bf16 %v3744, %v3740
        %v3774 = vpack.c.bf16 %v3745, %v3741
        %v3775 = vpack.c.bf16 %v3746, %v3742
        %v3776 = vpack.c.bf16 %v3751, %v3747
        %v3777 = vpack.c.bf16 %v3752, %v3748
        %v3778 = vpack.c.bf16 %v3753, %v3749
        %v3779 = vpack.c.bf16 %v3754, %v3750
        %v3780 = vpack.c.bf16 %v3759, %v3755
        %v3781 = vpack.c.bf16 %v3760, %v3756
        %v3782 = vpack.c.bf16 %v3761, %v3757
        %v3783 = vpack.c.bf16 %v3762, %v3758
        %vm3784 = vcmask 654336
        %v3786 = vsel %vm3784, %v3763, 0
        %3788 = vmatprep.subr.bf16.mxu0 %v3765
        %3789 = vmatpush1.bf16.msra.mxu0 %v3764
        %3790 = vmatprep.subr.bf16.mxu0 %v3769
        %3791 = vmatpush1.bf16.msra.mxu0 %v3768
        %3792 = vmatprep.subr.bf16.mxu0 %v3773
        %3793 = vmatpush1.bf16.msra.mxu0 %v3772
        %3794 = vmatprep.subr.bf16.mxu0 %v3777
        %3795 = vmatpush1.bf16.msra.mxu0 %v3776
        %3796 = vmatprep.subr.bf16.mxu0 %v3781
        %3797 = vmatpush1.bf16.msra.mxu0 %v3780
        %3798 = vmatprep.subr.bf16.mxu0 0
        %3799 = vmatpush1.bf16.msra.mxu0 0
        %3800 = vmatprep.subr.bf16.mxu0 0
        %3801 = vmatpush1.bf16.msra.mxu0 0
        %3802 = vmatprep.subr.bf16.mxu0 0
        %3803 = vmatpush1.bf16.msra.mxu0 0
        %3804 = vmatprep.subr.bf16.mxu0 0
        %3805 = vmatpush1.bf16.msra.mxu0 0
        %3806 = vmatprep.subr.bf16.mxu0 0
        %3807 = vmatpush1.bf16.msra.mxu0 0
        %3808 = vmatprep.subr.bf16.mxu0 0
        %3809 = vmatpush1.bf16.msra.mxu0 0
        %3810 = vmatprep.subr.bf16.mxu0 0
        %3811 = vmatpush1.bf16.msra.mxu0 0
        %3812 = vmatprep.subr.bf16.mxu0 0
        %3813 = vmatpush1.bf16.msra.mxu0 0
        %3814 = vmatprep.subr.bf16.mxu0 0
        %3815 = vmatpush1.bf16.msra.mxu0 0
        %3816 = vmatprep.subr.bf16.mxu0 0
        %3817 = vmatpush1.bf16.msra.mxu0 0
        %3818 = vmatprep.subr.bf16.mxu0 0
        %3819 = vmatpush1.bf16.msra.mxu0 0
        %3820 = vmatprep.mubr.bf16.mxu0 0
        %3821 = vmatmul.mubr.bf16.gmra.mrb[0].mxu0 %v3786
        %v3822 = vpop.f32.mrb[0].mxu0
        %v3823 = vadd.f32 0.0, %v3822
        %v3824 = vpop.f32.mrb[0].mxu0
        %v3825 = vadd.f32 0.0, %v3824
        %v3826 = vpop.f32.mrb[0].mxu0
        %v3827 = vpop.f32.mrb[0].mxu0
        %3828 = vdwg.mxu0
        %3829 = vmatprep.subr.bf16.mxu0 %v3767
        %3830 = vmatpush1.bf16.msra.mxu0 %v3766
        %3831 = vmatprep.subr.bf16.mxu0 %v3771
        %3832 = vmatpush1.bf16.msra.mxu0 %v3770
        %3833 = vmatprep.subr.bf16.mxu0 %v3775
        %3834 = vmatpush1.bf16.msra.mxu0 %v3774
        %3835 = vmatprep.subr.bf16.mxu0 %v3779
        %3836 = vmatpush1.bf16.msra.mxu0 %v3778
        %3837 = vmatprep.subr.bf16.mxu0 %v3783
        %3838 = vmatpush1.bf16.msra.mxu0 %v3782
        %3839 = vmatprep.subr.bf16.mxu0 0
        %3840 = vmatpush1.bf16.msra.mxu0 0
        %3841 = vmatprep.subr.bf16.mxu0 0
        %3842 = vmatpush1.bf16.msra.mxu0 0
        %3843 = vmatprep.subr.bf16.mxu0 0
        %3844 = vmatpush1.bf16.msra.mxu0 0
        %3845 = vmatprep.subr.bf16.mxu0 0
        %3846 = vmatpush1.bf16.msra.mxu0 0
        %3847 = vmatprep.subr.bf16.mxu0 0
        %3848 = vmatpush1.bf16.msra.mxu0 0
        %3849 = vmatprep.subr.bf16.mxu0 0
        %3850 = vmatpush1.bf16.msra.mxu0 0
        %3851 = vmatprep.subr.bf16.mxu0 0
        %3852 = vmatpush1.bf16.msra.mxu0 0
        %3853 = vmatprep.subr.bf16.mxu0 0
        %3854 = vmatpush1.bf16.msra.mxu0 0
        %3855 = vmatprep.subr.bf16.mxu0 0
        %3856 = vmatpush1.bf16.msra.mxu0 0
        %3857 = vmatprep.subr.bf16.mxu0 0
        %3858 = vmatpush1.bf16.msra.mxu0 0
        %3859 = vmatprep.subr.bf16.mxu0 0
        %3860 = vmatpush1.bf16.msra.mxu0 0
        %3861 = vmatprep.mubr.bf16.mxu0 0
        %3862 = vmatmul.mubr.bf16.gmra.mrb[0].mxu0 %v3786
        %v3863 = vpop.f32.mrb[0].mxu0
        %v3864 = vadd.f32 0.0, %v3863
        %v3865 = vpop.f32.mrb[0].mxu0
        %v3866 = vadd.f32 0.0, %v3865
        %v3867 = vpop.f32.mrb[0].mxu0
        %v3868 = vpop.f32.mrb[0].mxu0
        %3869 = vdwg.mxu0
        %v3870 = vpack.c.bf16 %v3823, %v3823
        %v3871 = vpack.c.bf16 %v3825, %v3825
        %v3872 = vpack.c.bf16 %v3864, %v3864
        %v3873 = vpack.c.bf16 %v3866, %v3866
        %v3874 = vld [vmem:[%s402] sm:$0xf]
        %v3875 = vld [vmem:[%s402 + $0x4] sm:$0xf]
        %v3876 = vld [vmem:[%s402 + $0x8] sm:$0xf]
        %v3877 = vld [vmem:[%s402 + $0xc] sm:$0xf]
        %v3878 = vld [vmem:[%s402 + $0x10] sm:$0xf]
        %v3879 = vld [vmem:[%s402 + $0x14] sm:$0xf]
        %v3880 = vld [vmem:[%s402 + $0x18] sm:$0xf]
        %v3881 = vld [vmem:[%s402 + $0x1c] sm:$0xf]
        %v3882 = vld [vmem:[%s402 + $0x20] sm:$0xf]
        %v3883 = vld [vmem:[%s402 + $0x24] sm:$0xf]
        %v3884 = vld [vmem:[%s402 + $0x28] sm:$0xf]
        %v3885 = vld [vmem:[%s402 + $0x2c] sm:$0xf]
        %v3886 = vld [vmem:[%s402 + $0x30] sm:$0xf]
        %v3887 = vld [vmem:[%s402 + $0x34] sm:$0xf]
        %v3888 = vld [vmem:[%s402 + $0x38] sm:$0xf]
        %v3889 = vld [vmem:[%s402 + $0x3c] sm:$0xf]
        %v3890 = vld [vmem:[%s402 + $0x40] sm:$0xf]
        %v3891 = vld [vmem:[%s402 + $0x44] sm:$0xf]
        %v3892 = vld [vmem:[%s402 + $0x48] sm:$0xf]
        %v3893 = vld [vmem:[%s402 + $0x4c] sm:$0xf]
        %v3894 = vld [vmem:[%s402 + $0x50] sm:$0xf]
        %v3895 = vld [vmem:[%s402 + $0x54] sm:$0xf]
        %v3896 = vld [vmem:[%s402 + $0x58] sm:$0xf]
        %v3897 = vld [vmem:[%s402 + $0x5c] sm:$0xf]
        %v3898 = vld [vmem:[%s402 + $0x60] sm:$0xf]
        %v3899 = vld [vmem:[%s402 + $0x64] sm:$0xf]
        %v3900 = vld [vmem:[%s402 + $0x68] sm:$0xf]
        %v3901 = vld [vmem:[%s402 + $0x6c] sm:$0xf]
        %v3902 = vld [vmem:[%s402 + $0x70] sm:$0xf]
        %v3903 = vld [vmem:[%s402 + $0x74] sm:$0xf]
        %v3904 = vld [vmem:[%s402 + $0x78] sm:$0xf]
        %v3905 = vld [vmem:[%s402 + $0x7c] sm:$0xf]
        %v3906 = vld [vmem:[%s402 + $0x80] sm:$0xf]
        %v3907 = vld [vmem:[%s402 + $0x84] sm:$0xf]
        %v3908 = vld [vmem:[%s402 + $0x88] sm:$0xf]
        %v3909 = vld [vmem:[%s402 + $0x8c] sm:$0xf]
        %v3910 = vld [vmem:[%s402 + $0x90] sm:$0xf]
        %v3911 = vld [vmem:[%s402 + $0x94] sm:$0xf]
        %v3912 = vld [vmem:[%s402 + $0x98] sm:$0xf]
        %v3913 = vld [vmem:[%s402 + $0x9c] sm:$0xf]
        %v3914 = vld [vmem:[%s402 + $0xa0] sm:$0xf]
        %v3915 = vld [vmem:[%s402 + $0xa4] sm:$0xf]
        %v3916 = vld [vmem:[%s402 + $0xa8] sm:$0xf]
        %v3917 = vld [vmem:[%s402 + $0xac] sm:$0xf]
        %v3918 = vld [vmem:[%s402 + $0xb0] sm:$0xf]
        %v3919 = vld [vmem:[%s402 + $0xb4] sm:$0xf]
        %v3920 = vld [vmem:[%s402 + $0xb8] sm:$0xf]
        %v3921 = vld [vmem:[%s402 + $0xbc] sm:$0xf]
        %v3922 = vld [vmem:[%s402 + $0xc0] sm:$0xf]
        %v3923 = vld [vmem:[%s402 + $0xc4] sm:$0xf]
        %v3924 = vld [vmem:[%s402 + $0xc8] sm:$0xf]
        %v3925 = vld [vmem:[%s402 + $0xcc] sm:$0xf]
        %v3926 = vld [vmem:[%s402 + $0xd0] sm:$0xf]
        %v3927 = vld [vmem:[%s402 + $0xd4] sm:$0xf]
        %v3928 = vld [vmem:[%s402 + $0xd8] sm:$0xf]
        %v3929 = vld [vmem:[%s402 + $0xdc] sm:$0xf]
        %v3930 = vld [vmem:[%s402 + $0xe0] sm:$0xf]
        %v3931 = vld [vmem:[%s402 + $0xe4] sm:$0xf]
        %v3932 = vld [vmem:[%s402 + $0xe8] sm:$0xf]
        %v3933 = vld [vmem:[%s402 + $0xec] sm:$0xf]
        %v3934 = vld [vmem:[%s402 + $0xf0] sm:$0xf]
        %v3935 = vld [vmem:[%s402 + $0xf4] sm:$0xf]
        %v3936 = vld [vmem:[%s402 + $0xf8] sm:$0xf]
        %v3937 = vld [vmem:[%s402 + $0xfc] sm:$0xf]
        %v3938 = vld [vmem:[%s410] sm:$0x1]
        %v3940 = vlaneseq
        %v3941 = vshrl.u32 %v3940, 7
        %v3942 = vsub.s32 0, %v3941
        %v3943 = vrot.slane %v3938, %v3942
        %v4009 = vunpack.c.l.b16 %v3874
        %v4010 = vunpack.c.l.b16 %v3875
        %v4011 = vunpack.c.l.b16 %v3876
        %v4012 = vunpack.c.l.b16 %v3877
        %v4013 = vunpack.c.l.b16 %v3878
        %v4014 = vunpack.c.l.b16 %v3879
        %v4015 = vunpack.c.l.b16 %v3880
        %v4016 = vunpack.c.l.b16 %v3881
        %v4017 = vunpack.c.l.b16 %v3882
        %v4018 = vunpack.c.l.b16 %v3883
        %v4019 = vunpack.c.l.b16 %v3884
        %v4020 = vunpack.c.l.b16 %v3885
        %v4021 = vunpack.c.l.b16 %v3886
        %v4022 = vunpack.c.l.b16 %v3887
        %v4023 = vunpack.c.l.b16 %v3888
        %v4024 = vunpack.c.l.b16 %v3889
        %v4025 = vunpack.c.l.b16 %v3890
        %v4026 = vunpack.c.l.b16 %v3891
        %v4027 = vunpack.c.l.b16 %v3892
        %v4028 = vunpack.c.l.b16 %v3893
        %v4029 = vunpack.c.l.b16 %v3894
        %v4030 = vunpack.c.l.b16 %v3895
        %v4031 = vunpack.c.l.b16 %v3896
        %v4032 = vunpack.c.l.b16 %v3897
        %v4033 = vunpack.c.l.b16 %v3898
        %v4034 = vunpack.c.l.b16 %v3899
        %v4035 = vunpack.c.l.b16 %v3900
        %v4036 = vunpack.c.l.b16 %v3901
        %v4037 = vunpack.c.l.b16 %v3902
        %v4038 = vunpack.c.l.b16 %v3903
        %v4039 = vunpack.c.l.b16 %v3904
        %v4040 = vunpack.c.l.b16 %v3905
        %v4041 = vunpack.c.l.b16 %v3906
        %v4042 = vunpack.c.l.b16 %v3907
        %v4043 = vunpack.c.l.b16 %v3908
        %v4044 = vunpack.c.l.b16 %v3909
        %v4045 = vunpack.c.l.b16 %v3910
        %v4046 = vunpack.c.l.b16 %v3911
        %v4047 = vunpack.c.l.b16 %v3912
        %v4048 = vunpack.c.l.b16 %v3913
        %v4049 = vunpack.c.l.b16 %v3914
        %v4050 = vunpack.c.l.b16 %v3915
        %v4051 = vunpack.c.l.b16 %v3916
        %v4052 = vunpack.c.l.b16 %v3917
        %v4053 = vunpack.c.l.b16 %v3918
        %v4054 = vunpack.c.l.b16 %v3919
        %v4055 = vunpack.c.l.b16 %v3920
        %v4056 = vunpack.c.l.b16 %v3921
        %v4057 = vunpack.c.l.b16 %v3922
        %v4058 = vunpack.c.l.b16 %v3923
        %v4059 = vunpack.c.l.b16 %v3924
        %v4060 = vunpack.c.l.b16 %v3925
        %v4061 = vunpack.c.l.b16 %v3926
        %v4062 = vunpack.c.l.b16 %v3927
        %v4063 = vunpack.c.l.b16 %v3928
        %v4064 = vunpack.c.l.b16 %v3929
        %v4065 = vunpack.c.l.b16 %v3930
        %v4066 = vunpack.c.l.b16 %v3931
        %v4067 = vunpack.c.l.b16 %v3932
        %v4068 = vunpack.c.l.b16 %v3933
        %v4069 = vunpack.c.l.b16 %v3934
        %v4070 = vunpack.c.l.b16 %v3935
        %v4071 = vunpack.c.l.b16 %v3936
        %v4072 = vunpack.c.l.b16 %v3937
        %v4073 = vpack.c.b16 %v4010, %v4009
        %v4074 = vpack.c.b16 %v4012, %v4011
        %v4075 = vpack.c.b16 %v4014, %v4013
        %v4076 = vpack.c.b16 %v4016, %v4015
        %v4077 = vpack.c.b16 %v4018, %v4017
        %v4078 = vpack.c.b16 %v4020, %v4019
        %v4079 = vpack.c.b16 %v4022, %v4021
        %v4080 = vpack.c.b16 %v4024, %v4023
        %v4081 = vpack.c.b16 %v4026, %v4025
        %v4082 = vpack.c.b16 %v4028, %v4027
        %v4083 = vpack.c.b16 %v4030, %v4029
        %v4084 = vpack.c.b16 %v4032, %v4031
        %v4085 = vpack.c.b16 %v4034, %v4033
        %v4086 = vpack.c.b16 %v4036, %v4035
        %v4087 = vpack.c.b16 %v4038, %v4037
        %v4088 = vpack.c.b16 %v4040, %v4039
        %v4089 = vpack.c.b16 %v4042, %v4041
        %v4090 = vpack.c.b16 %v4044, %v4043
        %v4091 = vpack.c.b16 %v4046, %v4045
        %v4092 = vpack.c.b16 %v4048, %v4047
        %v4093 = vpack.c.b16 %v4050, %v4049
        %v4094 = vpack.c.b16 %v4052, %v4051
        %v4095 = vpack.c.b16 %v4054, %v4053
        %v4096 = vpack.c.b16 %v4056, %v4055
        %v4097 = vpack.c.b16 %v4058, %v4057
        %v4098 = vpack.c.b16 %v4060, %v4059
        %v4099 = vpack.c.b16 %v4062, %v4061
        %v4100 = vpack.c.b16 %v4064, %v4063
        %v4101 = vpack.c.b16 %v4066, %v4065
        %v4102 = vpack.c.b16 %v4068, %v4067
        %v4103 = vpack.c.b16 %v4070, %v4069
        %v4104 = vpack.c.b16 %v4072, %v4071
        %4137 = vmatprep.subr.bf16.mxu0 0
        %4138 = vmatpush1.bf16.msra.mxu0 %v4073
        %4139 = vmatprep.subr.bf16.mxu0 0
        %4140 = vmatpush1.bf16.msra.mxu0 %v4074
        %4141 = vmatprep.subr.bf16.mxu0 0
        %4142 = vmatpush1.bf16.msra.mxu0 %v4075
        %4143 = vmatprep.subr.bf16.mxu0 0
        %4144 = vmatpush1.bf16.msra.mxu0 %v4076
        %4145 = vmatprep.subr.bf16.mxu0 0
        %4146 = vmatpush1.bf16.msra.mxu0 %v4077
        %4147 = vmatprep.subr.bf16.mxu0 0
        %4148 = vmatpush1.bf16.msra.mxu0 %v4078
        %4149 = vmatprep.subr.bf16.mxu0 0
        %4150 = vmatpush1.bf16.msra.mxu0 %v4079
        %4151 = vmatprep.subr.bf16.mxu0 0
        %4152 = vmatpush1.bf16.msra.mxu0 %v4080
        %4153 = vmatprep.subr.bf16.mxu0 0
        %4154 = vmatpush1.bf16.msra.mxu0 %v4081
        %4155 = vmatprep.subr.bf16.mxu0 0
        %4156 = vmatpush1.bf16.msra.mxu0 %v4082
        %4157 = vmatprep.subr.bf16.mxu0 0
        %4158 = vmatpush1.bf16.msra.mxu0 %v4083
        %4159 = vmatprep.subr.bf16.mxu0 0
        %4160 = vmatpush1.bf16.msra.mxu0 %v4084
        %4161 = vmatprep.subr.bf16.mxu0 0
        %4162 = vmatpush1.bf16.msra.mxu0 %v4085
        %4163 = vmatprep.subr.bf16.mxu0 0
        %4164 = vmatpush1.bf16.msra.mxu0 %v4086
        %4165 = vmatprep.subr.bf16.mxu0 0
        %4166 = vmatpush1.bf16.msra.mxu0 %v4087
        %4167 = vmatprep.subr.bf16.mxu0 0
        %4168 = vmatpush1.bf16.msra.mxu0 %v4088
        %4169 = vmatprep.mubr.bf16.mxu0 %v3871
        %4170 = vmatmul.mubr.bf16.gmra.mrb[0].mxu0 %v3870
        %v4171 = vpop.f32.mrb[0].mxu0
        %v4172 = vadd.f32 %v3943, %v4171
        %v4173 = vpop.f32.mrb[0].mxu0
        %v4174 = vpop.f32.mrb[0].mxu0
        %v4175 = vpop.f32.mrb[0].mxu0
        %4176 = vdwg.mxu0
        %4177 = vmatprep.subr.bf16.mxu0 0
        %4178 = vmatpush1.bf16.msra.mxu0 %v4089
        %4179 = vmatprep.subr.bf16.mxu0 0
        %4180 = vmatpush1.bf16.msra.mxu0 %v4090
        %4181 = vmatprep.subr.bf16.mxu0 0
        %4182 = vmatpush1.bf16.msra.mxu0 %v4091
        %4183 = vmatprep.subr.bf16.mxu0 0
        %4184 = vmatpush1.bf16.msra.mxu0 %v4092
        %4185 = vmatprep.subr.bf16.mxu0 0
        %4186 = vmatpush1.bf16.msra.mxu0 %v4093
        %4187 = vmatprep.subr.bf16.mxu0 0
        %4188 = vmatpush1.bf16.msra.mxu0 %v4094
        %4189 = vmatprep.subr.bf16.mxu0 0
        %4190 = vmatpush1.bf16.msra.mxu0 %v4095
        %4191 = vmatprep.subr.bf16.mxu0 0
        %4192 = vmatpush1.bf16.msra.mxu0 %v4096
        %4193 = vmatprep.subr.bf16.mxu0 0
        %4194 = vmatpush1.bf16.msra.mxu0 %v4097
        %4195 = vmatprep.subr.bf16.mxu0 0
        %4196 = vmatpush1.bf16.msra.mxu0 %v4098
        %4197 = vmatprep.subr.bf16.mxu0 0
        %4198 = vmatpush1.bf16.msra.mxu0 %v4099
        %4199 = vmatprep.subr.bf16.mxu0 0
        %4200 = vmatpush1.bf16.msra.mxu0 %v4100
        %4201 = vmatprep.subr.bf16.mxu0 0
        %4202 = vmatpush1.bf16.msra.mxu0 %v4101
        %4203 = vmatprep.subr.bf16.mxu0 0
        %4204 = vmatpush1.bf16.msra.mxu0 %v4102
        %4205 = vmatprep.subr.bf16.mxu0 0
        %4206 = vmatpush1.bf16.msra.mxu0 %v4103
        %4207 = vmatprep.subr.bf16.mxu0 0
        %4208 = vmatpush1.bf16.msra.mxu0 %v4104
        %4209 = vmatprep.mubr.bf16.mxu0 %v3873
        %4210 = vmatmul.mubr.bf16.gmra.mrb[0].mxu0 %v3872
        %v4211 = vpop.f32.mrb[0].mxu0
        %v4212 = vadd.f32 %v4172, %v4211
        %v4213 = vpop.f32.mrb[0].mxu0
        %v4214 = vpop.f32.mrb[0].mxu0
        %v4215 = vpop.f32.mrb[0].mxu0
        %4216 = vdwg.mxu0
        %4217 = vst [vmem:[%s459] sm:$0x3] %v4212
        %s4218 = sand.u32 %s203, 1
        %s4219 = scalar_lea.sflag [#allocation4], %s4218
        %s4220 = sand.u32 %s203, 1
        %s4221 = smul.addr %s4220, 2
        %s4222 = scalar_lea.vmem [#allocation12], %s4221
        // Predicated region
        $region77: #{tpu_custom_call.1} parent=47 // pred_check
          %p4223 = pneg %p213
        $region78: #{tpu_custom_call.1} parent=47 // pred_check_branch
          %4225 = sbr.rel (%p4223) target = $region80
        $region79: #{tpu_custom_call.1} parent=47 // pred_region
          %s4227 = ssub.s32 32, 32
          %4228 = vsyncadd %s4219, %s4227
          %s4229 = smul.addr %s23, 32
          %s4230 = scalar_lea.hbm %s7, %s4229
          %s4232 = sshll.u32 %s4222, 4
          %s4233 = int_to_ptr.vmem [resolvable:$true] %s4232
          %4235 = dma.vmem_to_hbm [thread:$0]  %s4233, 32, %s4230, %s4219
        $region80: #{tpu_custom_call.1} parent=47 // pred_fallthru
          _
      $region48: #{tpu_custom_call.1} parent=5 // pred_fallthru
        _
      %p4236 = scmp.le.s32.totalorder 2, %s18
      // Predicated region
      $region81: #{tpu_custom_call.1} parent=5 // pred_check
        %p4237 = pneg %p4236
      $region82: #{tpu_custom_call.1} parent=5 // pred_check_branch
        %4239 = sbr.rel (%p4237) target = $region84
      $region83: #{tpu_custom_call.1} parent=5 // pred_region
        %s4240 = ssub.s32 %s18, 2
        // Predicated region
        $region85: #{tpu_custom_call.1} parent=83 // pred_check
          %p4241 = pneg %p219
        $region86: #{tpu_custom_call.1} parent=83 // pred_check_branch
          %4243 = sbr.rel (%p4241) target = $region88
        $region87: #{tpu_custom_call.1} parent=83 // pred_region
          %s4244 = sand.u32 %s204, 1
          %s4245 = scalar_lea.sflag [#allocation4], %s4244
          %s4246 = sand.u32 %s204, 1
          %s4247 = smul.addr %s4246, 2
          %s4248 = scalar_lea.vmem [#allocation12], %s4247
          %4249 = dma.done %s4245, 32
        $region88: #{tpu_custom_call.1} parent=83 // pred_fallthru
          _
      $region84: #{tpu_custom_call.1} parent=5 // pred_fallthru
        _
    $region6: #{tpu_custom_call.1} parent=1 // loop_footer
      %s22 = sadd.s32 1, %s18
    $region7: #{tpu_custom_call.1} parent=1 // loop_footer_branch
      %17 = sbr.rel target = $region3
    $region8: #{tpu_custom_call.1} parent=1 // loop_exit
      _
    %4250 = vsyncpa [#allocation3], 1
    %s4251 = scalar_lea.sflag [#allocation3], 1
    %4252 = vsyncpa %s4251, 1
    %4253 = vsyncpa [#allocation6], 1
    %4254 = vsyncpa [#allocation4], 1
    %s4255 = scalar_lea.sflag [#allocation4], 1
    %4256 = vsyncpa %s4255, 1

</llo_original>
